<compile_context>
chip_gen: v5e
topology: v5e:2x2
jax: 0.10.0
libtpu: 0.0.40
codegen_flags: <defaults>
</compile_context>

<pallas_src>
import functools

import jax
import jax.numpy as jnp
from jax import lax
from jax.experimental import pallas as pl
from jax.experimental.pallas import tpu as pltpu


# ----------------------------------------------------------------------------
# Fused forward kernel: one graph per grid step runs the WHOLE depth-D MLAP
# forward (GAT + ReLU + residual + attention pooling + virtual-node MLP).
# ----------------------------------------------------------------------------
def mlap_kernel(feat_ref, adj_ref, vemb_ref,
                wn_ref, ans_ref, and_ref, wt_ref, bt_ref,
                pw1_ref, pb1_ref, pw2_ref, pb2_ref,
                vw1_ref, vb1_ref, vw2_ref, vb2_ref,
                out_ref, agg_scr,
                *, depth, num_heads, dim_feat, res, vir):
    F = dim_feat
    H = num_heads
    bf16 = jnp.bfloat16
    f32 = jnp.float32

    x = feat_ref[0]                        # [N, F] f32
    mask = adj_ref[0] > 0.0                # [N, N]; adj[i, j] = 1 iff edge i -> j
    neg = jnp.float32(-1e30)
    bn_inv = jnp.float32(1.0 / (1.0 + 1e-5) ** 0.5)   # eval-mode BatchNorm1d scale

    vnode = vemb_ref[...]                  # [1, F] f32
    emb_acc = jnp.zeros((1, F), f32)

    for d in range(depth):                 # static (compile-time) depth loop
        if vir:
            x = x + vnode                  # broadcast virtual-node embedding
        x_in = x

        # ----------------- GAT layer: head-fused wide MXU matmuls -------------
        xb = x.astype(bf16)
        ft = jnp.dot(xb, wn_ref[d], preferred_element_type=f32)        # [N, H*F]
        ftb = ft.astype(bf16)
        # attention scalars for ALL heads in two small fused matmuls
        ns = jnp.dot(ftb, ans_ref[d], preferred_element_type=f32)      # [N, H]
        nd = lax.dot_general(and_ref[d], ftb, (((1,), (1,)), ((), ())),
                             preferred_element_type=f32)               # [H, N]

        for h in range(H):                 # static head loop (H = 3)
            e = ns[:, h:h + 1] + nd[h:h + 1, :]          # e[i,j] = ns_i + nd_j
            e = jnp.where(e >= 0, e, 0.2 * e)            # LeakyReLU(0.2)
            logits = jnp.where(mask, e, neg)
            m = jnp.max(logits, axis=0, keepdims=True)   # softmax over in-edges
            p = jnp.exp(logits - m)                      # masked entries underflow to 0
            att = p / jnp.sum(p, axis=0, keepdims=True)  # [N, N]
            # agg[j, f] = sum_i att[i, j] * ft_h[i, f]
            agg = lax.dot_general(att.astype(bf16), ftb[:, h * F:(h + 1) * F],
                                  (((0,), (0,)), ((), ())),
                                  preferred_element_type=f32)          # [N, F]
            agg_scr[:, h * F:(h + 1) * F] = agg          # concat heads in scratch

        # single wide [N, H*F] @ [H*F, F] trans matmul
        y = jnp.dot(agg_scr[...].astype(bf16), wt_ref[d],
                    preferred_element_type=f32) + bt_ref[d]            # [N, F]

        if d < depth - 1:
            y = jnp.maximum(y, 0.0)        # ReLU on all but the last layer
        # F.dropout(training=False) -> identity (eval mode)
        if res:
            y = y + x_in

        # --------------- GlobalAttentionPooling (fused epilogue) --------------
        yb = y.astype(bf16)
        g1 = jnp.maximum(
            jnp.dot(yb, pw1_ref[d], preferred_element_type=f32) + pb1_ref[d],
            0.0)                                                       # [N, 2F]
        gate = jnp.sum(g1 * pw2_ref[d], axis=-1, keepdims=True) + pb2_ref[d]
        gm = jnp.max(gate, axis=0, keepdims=True)
        gp = jnp.exp(gate - gm)
        a = gp / jnp.sum(gp, axis=0, keepdims=True)       # softmax over nodes
        emb_acc = emb_acc + jnp.sum(a * y, axis=0, keepdims=True)      # [1, F]

        # --------------- virtual-node update (SumPooling + MLP) ---------------
        if vir and d < depth - 1:
            # TODO(synk): training-mode BatchNorm statistics / dropout not modeled.
            vtmp = jnp.sum(y, axis=0, keepdims=True) + vnode           # [1, F]
            h1 = jnp.maximum(
                (jnp.dot(vtmp.astype(bf16), vw1_ref[d],
                         preferred_element_type=f32) + vb1_ref[d]) * bn_inv, 0.0)
            h2 = jnp.maximum(
                (jnp.dot(h1.astype(bf16), vw2_ref[d],
                         preferred_element_type=f32) + vb2_ref[d]) * bn_inv, 0.0)
            vnode = (vnode + h2) if res else h2

        x = y

    # _aggregate(): mean over depth of the pooled graph embeddings
    out_ref[0] = (emb_acc * (1.0 / depth)).astype(out_ref.dtype)


# ----------------------------------------------------------------------------
# Wrapper: head-fuses / stacks parameters, casts matmul weights to bf16, and
# launches the single fused pallas_call (grid over graphs, "parallel").
# ----------------------------------------------------------------------------
def mlap_forward_pallas(feat, adj, params, *, depth, res=True, vir=True):
    B, N, F = feat.shape
    H = params["gat"][0]["wn"].shape[0]
    HF = H * F
    bf16 = jnp.bfloat16

    # ---- head-fuse GAT weights (done once, outside the kernel) ----
    eye = jnp.eye(H, dtype=jnp.float32)
    wn_all, ans_all, and_all, wt_all, bt_all = [], [], [], [], []
    for d in range(depth):
        g = params["gat"][d]
        wn_all.append(jnp.transpose(g["wn"], (1, 0, 2)).reshape(F, HF))     # [F, H*F]
        ans = g["ans"].reshape(H, F)
        anr = g["and"].reshape(H, F)
        ans_all.append((ans[:, :, None] * eye[:, None, :]).reshape(HF, H))  # [H*F, H]
        and_all.append((eye[:, :, None] * anr[None, :, :]).reshape(H, HF))  # [H, H*F]
        wt_all.append(g["wt"].reshape(HF, F))                               # [H*F, F]
        bt_all.append(g["bt"])                                              # [1, F]
    wn_all = jnp.stack(wn_all).astype(bf16)       # [D, F, H*F]
    ans_all = jnp.stack(ans_all).astype(bf16)     # [D, H*F, H]
    and_all = jnp.stack(and_all).astype(bf16)     # [D, H, H*F]
    wt_all = jnp.stack(wt_all).astype(bf16)       # [D, H*F, F]
    bt_all = jnp.stack(bt_all)                    # [D, 1, F]  f32

    pw1 = jnp.stack([p["w1"] for p in params["pool"]]).astype(bf16)   # [D, F, 2F]
    pb1 = jnp.stack([p["b1"] for p in params["pool"]])                # [D, 1, 2F]
    pw2 = jnp.stack([p["w2"] for p in params["pool"]])                # [D, 1, 2F] (VPU reduce)
    pb2 = jnp.stack([p["b2"] for p in params["pool"]])                # [D, 1, 1]

    if vir and depth > 1:
        vw1 = jnp.stack([p["w1"] for p in params["vmlp"]]).astype(bf16)       # [D-1, F, 2F]
        vb1 = jnp.stack([p["b1"].reshape(1, -1) for p in params["vmlp"]])     # [D-1, 1, 2F]
        vw2 = jnp.stack([p["w2"] for p in params["vmlp"]]).astype(bf16)       # [D-1, 2F, F]
        vb2 = jnp.stack([p["b2"].reshape(1, -1) for p in params["vmlp"]])     # [D-1, 1, F]
    else:  # dummies (never indexed when depth == 1 or vir=False)
        vw1 = jnp.zeros((1, F, 2 * F), bf16)
        vb1 = jnp.zeros((1, 1, 2 * F), jnp.float32)
        vw2 = jnp.zeros((1, 2 * F, F), bf16)
        vb2 = jnp.zeros((1, 1, F), jnp.float32)

    vemb = params["vnode_emb"].reshape(1, F)
    D, DV = depth, vw1.shape[0]

    kernel = functools.partial(mlap_kernel, depth=depth, num_heads=H,
                               dim_feat=F, res=res, vir=vir)

    grid_spec = pltpu.PrefetchScalarGridSpec(
        num_scalar_prefetch=0,
        grid=(B,),
        in_specs=[
            pl.BlockSpec((1, N, F), lambda b: (b, 0, 0)),        # feat (per graph)
            pl.BlockSpec((1, N, N), lambda b: (b, 0, 0)),        # adjacency mask
            pl.BlockSpec((1, F), lambda b: (0, 0)),              # vnode embedding
            pl.BlockSpec((D, F, HF), lambda b: (0, 0, 0)),       # fused fc_n weights
            pl.BlockSpec((D, HF, H), lambda b: (0, 0, 0)),       # attention_ns (block-diag)
            pl.BlockSpec((D, H, HF), lambda b: (0, 0, 0)),       # attention_nd (block-diag)
            pl.BlockSpec((D, HF, F), lambda b: (0, 0, 0)),       # stacked trans weight
            pl.BlockSpec((D, 1, F), lambda b: (0, 0, 0)),        # trans bias
            pl.BlockSpec((D, F, 2 * F), lambda b: (0, 0, 0)),    # pool gate W1
            pl.BlockSpec((D, 1, 2 * F), lambda b: (0, 0, 0)),    # pool gate b1
            pl.BlockSpec((D, 1, 2 * F), lambda b: (0, 0, 0)),    # pool gate W2 (row)
            pl.BlockSpec((D, 1, 1), lambda b: (0, 0, 0)),        # pool gate b2
            pl.BlockSpec((DV, F, 2 * F), lambda b: (0, 0, 0)),   # vnode MLP W1
            pl.BlockSpec((DV, 1, 2 * F), lambda b: (0, 0, 0)),   # vnode MLP b1
            pl.BlockSpec((DV, 2 * F, F), lambda b: (0, 0, 0)),   # vnode MLP W2
            pl.BlockSpec((DV, 1, F), lambda b: (0, 0, 0)),       # vnode MLP b2
        ],
        out_specs=pl.BlockSpec((1, 1, F), lambda b: (b, 0, 0)),
        scratch_shapes=[pltpu.VMEM((N, HF), jnp.float32)],       # head-concat buffer
    )
    out = pl.pallas_call(
        kernel,
        out_shape=jax.ShapeDtypeStruct((B, 1, F), jnp.float32),
        grid_spec=grid_spec,
        compiler_params=pltpu.CompilerParams(dimension_semantics=("parallel",)),
    )(feat, adj, vemb, wn_all, ans_all, and_all, wt_all, bt_all,
      pw1, pb1, pw2, pb2, vw1, vb1, vw2, vb2)
    return out[:, 0, :]


# ----------------------------------------------------------------------------
# Plain-JAX reference with the SAME mixed-precision policy as the kernel
# (bf16 MXU operands, f32 softmax/accumulation) — used for the correctness check.
# ----------------------------------------------------------------------------
def mlap_forward_ref(feat, adj, params, *, depth, res=True, vir=True):
    bf16, f32 = jnp.bfloat16, jnp.float32
    B, N, F = feat.shape
    H = params["gat"][0]["wn"].shape[0]
    bn_inv = 1.0 / jnp.sqrt(1.0 + 1e-5)

    x = feat
    vnode = jnp.broadcast_to(params["vnode_emb"][None, :], (B, F))
    embs = []
    for d in range(depth):
        g = params["gat"][d]
        if vir:
            x = x + vnode[:, None, :]
        x_in = x
        xb = x.astype(bf16)
        acc_heads = []
        for h in range(H):
            ft = jnp.einsum("bnf,fk->bnk", xb, g["wn"][h].astype(bf16),
                            preferred_element_type=f32)
            ftb = ft.astype(bf16)
            ns = jnp.einsum("bnf,f->bn", ftb, g["ans"][h, 0].astype(bf16),
                            preferred_element_type=f32)[..., None]
            nd = jnp.einsum("bnf,f->bn", ftb, g["and"][h, 0].astype(bf16),
                            preferred_element_type=f32)[:, None, :]
            e = ns + nd
            e = jnp.where(e >= 0, e, 0.2 * e)
            logits = jnp.where(adj > 0, e, -1e30)
            m = jnp.max(logits, axis=1, keepdims=True)
            p = jnp.exp(logits - m)
            att = p / jnp.sum(p, axis=1, keepdims=True)
            acc_heads.append(jnp.einsum("bij,bif->bjf", att.astype(bf16), ftb,
                                        preferred_element_type=f32))
        agg_all = jnp.concatenate(acc_heads, axis=-1)
        wt_all = g["wt"].reshape(H * F, F).astype(bf16)
        y = jnp.einsum("bnk,kf->bnf", agg_all.astype(bf16), wt_all,
                       preferred_element_type=f32) + g["bt"]
        if d < depth - 1:
            y = jnp.maximum(y, 0.0)
        if res:
            y = y + x_in
        pp = params["pool"][d]
        g1 = jnp.maximum(jnp.einsum("bnf,fk->bnk", y.astype(bf16),
                                    pp["w1"].astype(bf16),
                                    preferred_element_type=f32) + pp["b1"], 0.0)
        gate = jnp.sum(g1 * pp["w2"], axis=-1, keepdims=True) + pp["b2"]
        gate = jax.nn.softmax(gate, axis=1)
        embs.append(jnp.sum(gate * y, axis=1))
        if vir and d < depth - 1:
            v = params["vmlp"][d]
            vtmp = jnp.sum(y, axis=1) + vnode
            h1 = jnp.maximum((jnp.dot(vtmp.astype(bf16), v["w1"].astype(bf16),
                                      preferred_element_type=f32) + v["b1"]) * bn_inv, 0.0)
            h2 = jnp.maximum((jnp.dot(h1.astype(bf16), v["w2"].astype(bf16),
                                      preferred_element_type=f32) + v["b2"]) * bn_inv, 0.0)
            vnode = (vnode + h2) if res else h2
        x = y
    return jnp.mean(jnp.stack(embs, axis=0), axis=0)


# ----------------------------------------------------------------------------
# Deterministic parameter init (shapes follow the PyTorch module __init__)
# ----------------------------------------------------------------------------
def init_params(key, dim_feat, num_heads, depth):
    F, H = dim_feat, num_heads
    params = {"gat": [], "pool": [], "vmlp": [],
              "vnode_emb": jnp.zeros((F,), jnp.float32)}   # nn.init.constant_(0)
    gain = 2.0 ** 0.5  # calculate_gain('relu')

    for _ in range(depth):
        key, k0, k1, k2, k3, k4 = jax.random.split(key, 6)
        std_wn = gain * (2.0 / (F + H * F)) ** 0.5
        params["gat"].append({
            "wn": std_wn * jax.random.normal(k0, (H, F, F), jnp.float32),
            "ans": 0.3 * jax.random.normal(k1, (H, 1, F), jnp.float32),
            "and": 0.3 * jax.random.normal(k2, (H, 1, F), jnp.float32),
            "wt": (1.0 / (H * F)) ** 0.5 * jax.random.normal(k3, (H, F, F), jnp.float32),
            "bt": 0.01 * jax.random.normal(k4, (1, F), jnp.float32),
        })

    for _ in range(depth):
        key, k0, k1 = jax.random.split(key, 3)
        params["pool"].append({
            "w1": (1.0 / F) ** 0.5 * jax.random.normal(k0, (F, 2 * F), jnp.float32),
            "b1": jnp.zeros((1, 2 * F), jnp.float32),
            "w2": (1.0 / (2 * F)) ** 0.5 * jax.random.normal(k1, (1, 2 * F), jnp.float32),
            "b2": jnp.zeros((1, 1), jnp.float32),
        })

    for _ in range(depth - 1):
        key, k0, k1 = jax.random.split(key, 3)
        params["vmlp"].append({
            "w1": (1.0 / F) ** 0.5 * jax.random.normal(k0, (F, 2 * F), jnp.float32),
            "b1": jnp.zeros((2 * F,), jnp.float32),
            "w2": (1.0 / (2 * F)) ** 0.5 * jax.random.normal(k1, (2 * F, F), jnp.float32),
            "b2": jnp.zeros((F,), jnp.float32),
        })
    return params


# ----------------------------------------------------------------------------
if __name__ == "__main__":
    B, N, F, H, DEPTH = 2, 8, 32, 3, 3

    key = jax.random.PRNGKey(0)
    kf, ka, kp = jax.random.split(key, 3)

    feat = jax.random.normal(kf, (B, N, F), jnp.float32)
    adj = (jax.random.uniform(ka, (B, N, N)) < 0.4).astype(jnp.float32)
    adj = jnp.maximum(adj, jnp.eye(N, dtype=jnp.float32)[None])  # self-loops => softmax well defined

    params = init_params(kp, F, H, DEPTH)

    fwd = jax.jit(functools.partial(mlap_forward_pallas, depth=DEPTH,
                                    res=True, vir=True))
    out = jax.block_until_ready(fwd(feat, adj, params))
    assert out.shape == (B, F)

    ref = mlap_forward_ref(feat, adj, params, depth=DEPTH, res=True, vir=True)
    err = float(jnp.max(jnp.abs(out - ref)))
    assert err < 1e-2, f"pallas vs reference mismatch: {err}"

    print("KERNEL_OK")
</pallas_src>

<mosaic_0001>
module attributes {stable_mosaic.version = 11 : i64} {
  func.func @mlap_kernel(%arg0: i32, %arg1: memref<1x8x32xf32, #tpu.memory_space<vmem>>, %arg2: memref<1x8x8xf32, #tpu.memory_space<vmem>>, %arg3: memref<1x32xf32, #tpu.memory_space<vmem>>, %arg4: memref<3x32x96xbf16, #tpu.memory_space<vmem>>, %arg5: memref<3x96x3xbf16, #tpu.memory_space<vmem>>, %arg6: memref<3x3x96xbf16, #tpu.memory_space<vmem>>, %arg7: memref<3x96x32xbf16, #tpu.memory_space<vmem>>, %arg8: memref<3x1x32xf32, #tpu.memory_space<vmem>>, %arg9: memref<3x32x64xbf16, #tpu.memory_space<vmem>>, %arg10: memref<3x1x64xf32, #tpu.memory_space<vmem>>, %arg11: memref<3x1x64xf32, #tpu.memory_space<vmem>>, %arg12: memref<3x1x1xf32, #tpu.memory_space<vmem>>, %arg13: memref<2x32x64xbf16, #tpu.memory_space<vmem>>, %arg14: memref<2x1x64xf32, #tpu.memory_space<vmem>>, %arg15: memref<2x64x32xbf16, #tpu.memory_space<vmem>>, %arg16: memref<2x1x32xf32, #tpu.memory_space<vmem>>, %arg17: memref<1x1x32xf32, #tpu.memory_space<vmem>>, %arg18: memref<8x96xf32, #tpu.memory_space<vmem>>) attributes {dimension_semantics = [#tpu.dimension_semantics<parallel>], iteration_bounds = array<i64: 2>, scalar_prefetch = 0 : i64, scratch_operands = 1 : i64, tpu.core_type = #tpu.core_type<tc>, window_params = [{transform_indices = @transform_0, window_bounds = array<i64: 1, 8, 32>}, {transform_indices = @transform_1, window_bounds = array<i64: 1, 8, 8>}, {pipeline_mode = #tpu.pipeline_mode<synchronous>, transform_indices = @transform_2, window_bounds = array<i64: 1, 32>}, {pipeline_mode = #tpu.pipeline_mode<synchronous>, transform_indices = @transform_3, window_bounds = array<i64: 3, 32, 96>}, {pipeline_mode = #tpu.pipeline_mode<synchronous>, transform_indices = @transform_4, window_bounds = array<i64: 3, 96, 3>}, {pipeline_mode = #tpu.pipeline_mode<synchronous>, transform_indices = @transform_5, window_bounds = array<i64: 3, 3, 96>}, {pipeline_mode = #tpu.pipeline_mode<synchronous>, transform_indices = @transform_6, window_bounds = array<i64: 3, 96, 32>}, {pipeline_mode = #tpu.pipeline_mode<synchronous>, transform_indices = @transform_7, window_bounds = array<i64: 3, 1, 32>}, {pipeline_mode = #tpu.pipeline_mode<synchronous>, transform_indices = @transform_8, window_bounds = array<i64: 3, 32, 64>}, {pipeline_mode = #tpu.pipeline_mode<synchronous>, transform_indices = @transform_9, window_bounds = array<i64: 3, 1, 64>}, {pipeline_mode = #tpu.pipeline_mode<synchronous>, transform_indices = @transform_10, window_bounds = array<i64: 3, 1, 64>}, {pipeline_mode = #tpu.pipeline_mode<synchronous>, transform_indices = @transform_11, window_bounds = array<i64: 3, 1, 1>}, {pipeline_mode = #tpu.pipeline_mode<synchronous>, transform_indices = @transform_12, window_bounds = array<i64: 2, 32, 64>}, {pipeline_mode = #tpu.pipeline_mode<synchronous>, transform_indices = @transform_13, window_bounds = array<i64: 2, 1, 64>}, {pipeline_mode = #tpu.pipeline_mode<synchronous>, transform_indices = @transform_14, window_bounds = array<i64: 2, 64, 32>}, {pipeline_mode = #tpu.pipeline_mode<synchronous>, transform_indices = @transform_15, window_bounds = array<i64: 2, 1, 32>}, {transform_indices = @transform_16, window_bounds = array<i64: 1, 1, 32>}]} {
    %c0 = arith.constant 0 : index
    %c0_0 = arith.constant 0 : index
    %c0_1 = arith.constant 0 : index
    %0 = vector.load %arg1[%c0, %c0_0, %c0_1] : memref<1x8x32xf32, #tpu.memory_space<vmem>>, vector<1x8x32xf32>
    %1 = vector.shape_cast %0 : vector<1x8x32xf32> to vector<8x32xf32>
    %c0_2 = arith.constant 0 : index
    %c0_3 = arith.constant 0 : index
    %c0_4 = arith.constant 0 : index
    %2 = vector.load %arg2[%c0_2, %c0_3, %c0_4] : memref<1x8x8xf32, #tpu.memory_space<vmem>>, vector<1x8x8xf32>
    %3 = vector.shape_cast %2 : vector<1x8x8xf32> to vector<8x8xf32>
    %cst = arith.constant 0.000000e+00 : f32
    %4 = vector.broadcast %cst : f32 to vector<8x8xf32>
    %5 = arith.cmpf ogt, %3, %4 : vector<8x8xf32>
    %c0_5 = arith.constant 0 : index
    %c0_6 = arith.constant 0 : index
    %6 = vector.load %arg3[%c0_5, %c0_6] : memref<1x32xf32, #tpu.memory_space<vmem>>, vector<1x32xf32>
    %cst_7 = arith.constant 0.000000e+00 : f32
    %7 = vector.broadcast %cst_7 : f32 to vector<1x32xf32>
    %8 = vector.broadcast %6 : vector<1x32xf32> to vector<8x32xf32>
    %9 = arith.addf %1, %8 : vector<8x32xf32>
    %10 = arith.truncf %9 : vector<8x32xf32> to vector<8x32xbf16>
    %c0_8 = arith.constant 0 : index
    %c0_9 = arith.constant 0 : index
    %c0_10 = arith.constant 0 : index
    %11 = vector.load %arg4[%c0_8, %c0_9, %c0_10] : memref<3x32x96xbf16, #tpu.memory_space<vmem>>, vector<1x32x96xbf16>
    %12 = vector.shape_cast %11 : vector<1x32x96xbf16> to vector<32x96xbf16>
    %cst_11 = arith.constant dense<0.000000e+00> : vector<8x96xf32>
    %13 = tpu.matmul %10, %12, %cst_11 {dimension_numbers = #tpu.dot_dimension_numbers<[1], [0], [0], [1], [0, 0, 1, 1], [], []>} : vector<8x32xbf16>, vector<32x96xbf16>, vector<8x96xf32> -> vector<8x96xf32>
    %14 = arith.truncf %13 : vector<8x96xf32> to vector<8x96xbf16>
    %c0_12 = arith.constant 0 : index
    %c0_13 = arith.constant 0 : index
    %c0_14 = arith.constant 0 : index
    %15 = vector.load %arg5[%c0_12, %c0_13, %c0_14] : memref<3x96x3xbf16, #tpu.memory_space<vmem>>, vector<1x96x3xbf16>
    %16 = vector.shape_cast %15 : vector<1x96x3xbf16> to vector<96x3xbf16>
    %cst_15 = arith.constant dense<0.000000e+00> : vector<8x3xf32>
    %17 = tpu.matmul %14, %16, %cst_15 {dimension_numbers = #tpu.dot_dimension_numbers<[1], [0], [0], [1], [0, 0, 1, 1], [], []>} : vector<8x96xbf16>, vector<96x3xbf16>, vector<8x3xf32> -> vector<8x3xf32>
    %c0_16 = arith.constant 0 : index
    %c0_17 = arith.constant 0 : index
    %c0_18 = arith.constant 0 : index
    %18 = vector.load %arg6[%c0_16, %c0_17, %c0_18] : memref<3x3x96xbf16, #tpu.memory_space<vmem>>, vector<1x3x96xbf16>
    %19 = vector.shape_cast %18 : vector<1x3x96xbf16> to vector<3x96xbf16>
    %cst_19 = arith.constant dense<0.000000e+00> : vector<3x8xf32>
    %20 = tpu.matmul %19, %14, %cst_19 {dimension_numbers = #tpu.dot_dimension_numbers<[1], [1], [0], [0], [0, 0, 1, 0], [], []>} : vector<3x96xbf16>, vector<8x96xbf16>, vector<3x8xf32> -> vector<3x8xf32>
    %21 = vector.extract_strided_slice %17 {offsets = [0, 0], sizes = [8, 1], strides = [1, 1]} : vector<8x3xf32> to vector<8x1xf32>
    %22 = vector.extract_strided_slice %20 {offsets = [0, 0], sizes = [1, 8], strides = [1, 1]} : vector<3x8xf32> to vector<1x8xf32>
    %23 = vector.broadcast %21 : vector<8x1xf32> to vector<8x8xf32>
    %24 = vector.broadcast %22 : vector<1x8xf32> to vector<8x8xf32>
    %25 = arith.addf %23, %24 : vector<8x8xf32>
    %cst_20 = arith.constant 0.000000e+00 : f32
    %26 = vector.broadcast %cst_20 : f32 to vector<8x8xf32>
    %27 = arith.cmpf oge, %25, %26 : vector<8x8xf32>
    %cst_21 = arith.constant 2.000000e-01 : f32
    %28 = vector.broadcast %cst_21 : f32 to vector<8x8xf32>
    %29 = arith.mulf %28, %25 : vector<8x8xf32>
    %30 = arith.select %27, %25, %29 : vector<8x8xi1>, vector<8x8xf32>
    %cst_22 = arith.constant -1.000000e+30 : f32
    %31 = vector.broadcast %cst_22 : f32 to vector<8x8xf32>
    %32 = arith.select %5, %30, %31 : vector<8x8xi1>, vector<8x8xf32>
    %cst_23 = arith.constant dense<0xFF800000> : vector<8xf32>
    %33 = vector.multi_reduction <maximumf>, %32, %cst_23 [0] : vector<8x8xf32> to vector<8xf32>
    %34 = vector.shape_cast %33 : vector<8xf32> to vector<1x8xf32>
    %35 = vector.broadcast %34 : vector<1x8xf32> to vector<8x8xf32>
    %36 = arith.subf %32, %35 : vector<8x8xf32>
    %37 = math.exp %36 : vector<8x8xf32>
    %cst_24 = arith.constant dense<0.000000e+00> : vector<8xf32>
    %38 = vector.multi_reduction <add>, %37, %cst_24 [0] : vector<8x8xf32> to vector<8xf32>
    %39 = vector.shape_cast %38 : vector<8xf32> to vector<1x8xf32>
    %40 = vector.broadcast %39 : vector<1x8xf32> to vector<8x8xf32>
    %41 = arith.divf %37, %40 : vector<8x8xf32>
    %42 = arith.truncf %41 : vector<8x8xf32> to vector<8x8xbf16>
    %43 = vector.extract_strided_slice %14 {offsets = [0, 0], sizes = [8, 32], strides = [1, 1]} : vector<8x96xbf16> to vector<8x32xbf16>
    %cst_25 = arith.constant dense<0.000000e+00> : vector<8x32xf32>
    %44 = tpu.matmul %42, %43, %cst_25 {dimension_numbers = #tpu.dot_dimension_numbers<[0], [0], [1], [1], [0, 1, 1, 1], [], []>} : vector<8x8xbf16>, vector<8x32xbf16>, vector<8x32xf32> -> vector<8x32xf32>
    %c0_26 = arith.constant 0 : index
    %c0_27 = arith.constant 0 : index
    %45 = vector.load %arg18[%c0_26, %c0_27] : memref<8x96xf32, #tpu.memory_space<vmem>>, vector<8x32xf32>
    tpu.vector_store %arg18[%c0_26, %c0_27], %44 {strides = array<i32>} : memref<8x96xf32, #tpu.memory_space<vmem>>, vector<8x32xf32>,
    %46 = vector.extract_strided_slice %17 {offsets = [0, 1], sizes = [8, 1], strides = [1, 1]} : vector<8x3xf32> to vector<8x1xf32>
    %47 = vector.extract_strided_slice %20 {offsets = [1, 0], sizes = [1, 8], strides = [1, 1]} : vector<3x8xf32> to vector<1x8xf32>
    %48 = vector.broadcast %46 : vector<8x1xf32> to vector<8x8xf32>
    %49 = vector.broadcast %47 : vector<1x8xf32> to vector<8x8xf32>
    %50 = arith.addf %48, %49 : vector<8x8xf32>
    %cst_28 = arith.constant 0.000000e+00 : f32
    %51 = vector.broadcast %cst_28 : f32 to vector<8x8xf32>
    %52 = arith.cmpf oge, %50, %51 : vector<8x8xf32>
    %cst_29 = arith.constant 2.000000e-01 : f32
    %53 = vector.broadcast %cst_29 : f32 to vector<8x8xf32>
    %54 = arith.mulf %53, %50 : vector<8x8xf32>
    %55 = arith.select %52, %50, %54 : vector<8x8xi1>, vector<8x8xf32>
    %cst_30 = arith.constant -1.000000e+30 : f32
    %56 = vector.broadcast %cst_30 : f32 to vector<8x8xf32>
    %57 = arith.select %5, %55, %56 : vector<8x8xi1>, vector<8x8xf32>
    %cst_31 = arith.constant dense<0xFF800000> : vector<8xf32>
    %58 = vector.multi_reduction <maximumf>, %57, %cst_31 [0] : vector<8x8xf32> to vector<8xf32>
    %59 = vector.shape_cast %58 : vector<8xf32> to vector<1x8xf32>
    %60 = vector.broadcast %59 : vector<1x8xf32> to vector<8x8xf32>
    %61 = arith.subf %57, %60 : vector<8x8xf32>
    %62 = math.exp %61 : vector<8x8xf32>
    %cst_32 = arith.constant dense<0.000000e+00> : vector<8xf32>
    %63 = vector.multi_reduction <add>, %62, %cst_32 [0] : vector<8x8xf32> to vector<8xf32>
    %64 = vector.shape_cast %63 : vector<8xf32> to vector<1x8xf32>
    %65 = vector.broadcast %64 : vector<1x8xf32> to vector<8x8xf32>
    %66 = arith.divf %62, %65 : vector<8x8xf32>
    %67 = arith.truncf %66 : vector<8x8xf32> to vector<8x8xbf16>
    %68 = vector.extract_strided_slice %14 {offsets = [0, 32], sizes = [8, 32], strides = [1, 1]} : vector<8x96xbf16> to vector<8x32xbf16>
    %cst_33 = arith.constant dense<0.000000e+00> : vector<8x32xf32>
    %69 = tpu.matmul %67, %68, %cst_33 {dimension_numbers = #tpu.dot_dimension_numbers<[0], [0], [1], [1], [0, 1, 1, 1], [], []>} : vector<8x8xbf16>, vector<8x32xbf16>, vector<8x32xf32> -> vector<8x32xf32>
    %c0_34 = arith.constant 0 : index
    %c32 = arith.constant 32 : index
    %70 = vector.load %arg18[%c0_34, %c32] : memref<8x96xf32, #tpu.memory_space<vmem>>, vector<8x32xf32>
    tpu.vector_store %arg18[%c0_34, %c32], %69 {strides = array<i32>} : memref<8x96xf32, #tpu.memory_space<vmem>>, vector<8x32xf32>,
    %71 = vector.extract_strided_slice %17 {offsets = [0, 2], sizes = [8, 1], strides = [1, 1]} : vector<8x3xf32> to vector<8x1xf32>
    %72 = vector.extract_strided_slice %20 {offsets = [2, 0], sizes = [1, 8], strides = [1, 1]} : vector<3x8xf32> to vector<1x8xf32>
    %73 = vector.broadcast %71 : vector<8x1xf32> to vector<8x8xf32>
    %74 = vector.broadcast %72 : vector<1x8xf32> to vector<8x8xf32>
    %75 = arith.addf %73, %74 : vector<8x8xf32>
    %cst_35 = arith.constant 0.000000e+00 : f32
    %76 = vector.broadcast %cst_35 : f32 to vector<8x8xf32>
    %77 = arith.cmpf oge, %75, %76 : vector<8x8xf32>
    %cst_36 = arith.constant 2.000000e-01 : f32
    %78 = vector.broadcast %cst_36 : f32 to vector<8x8xf32>
    %79 = arith.mulf %78, %75 : vector<8x8xf32>
    %80 = arith.select %77, %75, %79 : vector<8x8xi1>, vector<8x8xf32>
    %cst_37 = arith.constant -1.000000e+30 : f32
    %81 = vector.broadcast %cst_37 : f32 to vector<8x8xf32>
    %82 = arith.select %5, %80, %81 : vector<8x8xi1>, vector<8x8xf32>
    %cst_38 = arith.constant dense<0xFF800000> : vector<8xf32>
    %83 = vector.multi_reduction <maximumf>, %82, %cst_38 [0] : vector<8x8xf32> to vector<8xf32>
    %84 = vector.shape_cast %83 : vector<8xf32> to vector<1x8xf32>
    %85 = vector.broadcast %84 : vector<1x8xf32> to vector<8x8xf32>
    %86 = arith.subf %82, %85 : vector<8x8xf32>
    %87 = math.exp %86 : vector<8x8xf32>
    %cst_39 = arith.constant dense<0.000000e+00> : vector<8xf32>
    %88 = vector.multi_reduction <add>, %87, %cst_39 [0] : vector<8x8xf32> to vector<8xf32>
    %89 = vector.shape_cast %88 : vector<8xf32> to vector<1x8xf32>
    %90 = vector.broadcast %89 : vector<1x8xf32> to vector<8x8xf32>
    %91 = arith.divf %87, %90 : vector<8x8xf32>
    %92 = arith.truncf %91 : vector<8x8xf32> to vector<8x8xbf16>
    %93 = vector.extract_strided_slice %14 {offsets = [0, 64], sizes = [8, 32], strides = [1, 1]} : vector<8x96xbf16> to vector<8x32xbf16>
    %cst_40 = arith.constant dense<0.000000e+00> : vector<8x32xf32>
    %94 = tpu.matmul %92, %93, %cst_40 {dimension_numbers = #tpu.dot_dimension_numbers<[0], [0], [1], [1], [0, 1, 1, 1], [], []>} : vector<8x8xbf16>, vector<8x32xbf16>, vector<8x32xf32> -> vector<8x32xf32>
    %c0_41 = arith.constant 0 : index
    %c64 = arith.constant 64 : index
    %95 = vector.load %arg18[%c0_41, %c64] : memref<8x96xf32, #tpu.memory_space<vmem>>, vector<8x32xf32>
    tpu.vector_store %arg18[%c0_41, %c64], %94 {strides = array<i32>} : memref<8x96xf32, #tpu.memory_space<vmem>>, vector<8x32xf32>,
    %c0_42 = arith.constant 0 : index
    %c0_43 = arith.constant 0 : index
    %96 = vector.load %arg18[%c0_42, %c0_43] : memref<8x96xf32, #tpu.memory_space<vmem>>, vector<8x96xf32>
    %97 = arith.truncf %96 : vector<8x96xf32> to vector<8x96xbf16>
    %c0_44 = arith.constant 0 : index
    %c0_45 = arith.constant 0 : index
    %c0_46 = arith.constant 0 : index
    %98 = vector.load %arg7[%c0_44, %c0_45, %c0_46] : memref<3x96x32xbf16, #tpu.memory_space<vmem>>, vector<1x96x32xbf16>
    %99 = vector.shape_cast %98 : vector<1x96x32xbf16> to vector<96x32xbf16>
    %cst_47 = arith.constant dense<0.000000e+00> : vector<8x32xf32>
    %100 = tpu.matmul %97, %99, %cst_47 {dimension_numbers = #tpu.dot_dimension_numbers<[1], [0], [0], [1], [0, 0, 1, 1], [], []>} : vector<8x96xbf16>, vector<96x32xbf16>, vector<8x32xf32> -> vector<8x32xf32>
    %c0_48 = arith.constant 0 : index
    %c0_49 = arith.constant 0 : index
    %c0_50 = arith.constant 0 : index
    %101 = vector.load %arg8[%c0_48, %c0_49, %c0_50] : memref<3x1x32xf32, #tpu.memory_space<vmem>>, vector<1x1x32xf32>
    %102 = vector.shape_cast %101 : vector<1x1x32xf32> to vector<1x32xf32>
    %103 = vector.broadcast %102 : vector<1x32xf32> to vector<8x32xf32>
    %104 = arith.addf %100, %103 : vector<8x32xf32>
    %cst_51 = arith.constant 0.000000e+00 : f32
    %105 = vector.broadcast %cst_51 : f32 to vector<8x32xf32>
    %106 = arith.maximumf %104, %105 : vector<8x32xf32>
    %107 = arith.addf %106, %9 : vector<8x32xf32>
    %108 = arith.truncf %107 : vector<8x32xf32> to vector<8x32xbf16>
    %c0_52 = arith.constant 0 : index
    %c0_53 = arith.constant 0 : index
    %c0_54 = arith.constant 0 : index
    %109 = vector.load %arg9[%c0_52, %c0_53, %c0_54] : memref<3x32x64xbf16, #tpu.memory_space<vmem>>, vector<1x32x64xbf16>
    %110 = vector.shape_cast %109 : vector<1x32x64xbf16> to vector<32x64xbf16>
    %cst_55 = arith.constant dense<0.000000e+00> : vector<8x64xf32>
    %111 = tpu.matmul %108, %110, %cst_55 {dimension_numbers = #tpu.dot_dimension_numbers<[1], [0], [0], [1], [0, 0, 1, 1], [], []>} : vector<8x32xbf16>, vector<32x64xbf16>, vector<8x64xf32> -> vector<8x64xf32>
    %c0_56 = arith.constant 0 : index
    %c0_57 = arith.constant 0 : index
    %c0_58 = arith.constant 0 : index
    %112 = vector.load %arg10[%c0_56, %c0_57, %c0_58] : memref<3x1x64xf32, #tpu.memory_space<vmem>>, vector<1x1x64xf32>
    %113 = vector.shape_cast %112 : vector<1x1x64xf32> to vector<1x64xf32>
    %114 = vector.broadcast %113 : vector<1x64xf32> to vector<8x64xf32>
    %115 = arith.addf %111, %114 : vector<8x64xf32>
    %cst_59 = arith.constant 0.000000e+00 : f32
    %116 = vector.broadcast %cst_59 : f32 to vector<8x64xf32>
    %117 = arith.maximumf %115, %116 : vector<8x64xf32>
    %c0_60 = arith.constant 0 : index
    %c0_61 = arith.constant 0 : index
    %c0_62 = arith.constant 0 : index
    %118 = vector.load %arg11[%c0_60, %c0_61, %c0_62] : memref<3x1x64xf32, #tpu.memory_space<vmem>>, vector<1x1x64xf32>
    %119 = vector.shape_cast %118 : vector<1x1x64xf32> to vector<1x64xf32>
    %120 = vector.broadcast %119 : vector<1x64xf32> to vector<8x64xf32>
    %121 = arith.mulf %117, %120 : vector<8x64xf32>
    %cst_63 = arith.constant dense<0.000000e+00> : vector<8xf32>
    %122 = vector.multi_reduction <add>, %121, %cst_63 [1] : vector<8x64xf32> to vector<8xf32>
    %123 = vector.shape_cast %122 : vector<8xf32> to vector<8x1xf32>
    %c0_64 = arith.constant 0 : index
    %c0_65 = arith.constant 0 : index
    %c0_66 = arith.constant 0 : index
    %124 = vector.load %arg12[%c0_64, %c0_65, %c0_66] : memref<3x1x1xf32, #tpu.memory_space<vmem>>, vector<1x1x1xf32>
    %125 = vector.shape_cast %124 : vector<1x1x1xf32> to vector<1x1xf32>
    %126 = vector.broadcast %125 : vector<1x1xf32> to vector<8x1xf32>
    %127 = arith.addf %123, %126 : vector<8x1xf32>
    %cst_67 = arith.constant dense<0xFF800000> : vector<1xf32>
    %128 = vector.multi_reduction <maximumf>, %127, %cst_67 [0] : vector<8x1xf32> to vector<1xf32>
    %129 = vector.shape_cast %128 : vector<1xf32> to vector<1x1xf32>
    %130 = vector.broadcast %129 : vector<1x1xf32> to vector<8x1xf32>
    %131 = arith.subf %127, %130 : vector<8x1xf32>
    %132 = math.exp %131 : vector<8x1xf32>
    %cst_68 = arith.constant dense<0.000000e+00> : vector<1xf32>
    %133 = vector.multi_reduction <add>, %132, %cst_68 [0] : vector<8x1xf32> to vector<1xf32>
    %134 = vector.shape_cast %133 : vector<1xf32> to vector<1x1xf32>
    %135 = vector.broadcast %134 : vector<1x1xf32> to vector<8x1xf32>
    %136 = arith.divf %132, %135 : vector<8x1xf32>
    %137 = vector.broadcast %136 : vector<8x1xf32> to vector<8x32xf32>
    %138 = arith.mulf %137, %107 : vector<8x32xf32>
    %cst_69 = arith.constant dense<0.000000e+00> : vector<32xf32>
    %139 = vector.multi_reduction <add>, %138, %cst_69 [0] : vector<8x32xf32> to vector<32xf32>
    %140 = vector.shape_cast %139 : vector<32xf32> to vector<1x32xf32>
    %141 = arith.addf %7, %140 : vector<1x32xf32>
    %cst_70 = arith.constant dense<0.000000e+00> : vector<32xf32>
    %142 = vector.multi_reduction <add>, %107, %cst_70 [0] : vector<8x32xf32> to vector<32xf32>
    %143 = vector.shape_cast %142 : vector<32xf32> to vector<1x32xf32>
    %144 = arith.addf %143, %6 : vector<1x32xf32>
    %145 = arith.truncf %144 : vector<1x32xf32> to vector<1x32xbf16>
    %c0_71 = arith.constant 0 : index
    %c0_72 = arith.constant 0 : index
    %c0_73 = arith.constant 0 : index
    %146 = vector.load %arg13[%c0_71, %c0_72, %c0_73] : memref<2x32x64xbf16, #tpu.memory_space<vmem>>, vector<1x32x64xbf16>
    %147 = vector.shape_cast %146 : vector<1x32x64xbf16> to vector<32x64xbf16>
    %cst_74 = arith.constant dense<0.000000e+00> : vector<1x64xf32>
    %148 = tpu.matmul %145, %147, %cst_74 {dimension_numbers = #tpu.dot_dimension_numbers<[1], [0], [0], [1], [0, 0, 1, 1], [], []>} : vector<1x32xbf16>, vector<32x64xbf16>, vector<1x64xf32> -> vector<1x64xf32>
    %c0_75 = arith.constant 0 : index
    %c0_76 = arith.constant 0 : index
    %c0_77 = arith.constant 0 : index
    %149 = vector.load %arg14[%c0_75, %c0_76, %c0_77] : memref<2x1x64xf32, #tpu.memory_space<vmem>>, vector<1x1x64xf32>
    %150 = vector.shape_cast %149 : vector<1x1x64xf32> to vector<1x64xf32>
    %151 = arith.addf %148, %150 : vector<1x64xf32>
    %cst_78 = arith.constant 0.999994993 : f32
    %152 = vector.broadcast %cst_78 : f32 to vector<1x64xf32>
    %153 = arith.mulf %151, %152 : vector<1x64xf32>
    %cst_79 = arith.constant 0.000000e+00 : f32
    %154 = vector.broadcast %cst_79 : f32 to vector<1x64xf32>
    %155 = arith.maximumf %153, %154 : vector<1x64xf32>
    %156 = arith.truncf %155 : vector<1x64xf32> to vector<1x64xbf16>
    %c0_80 = arith.constant 0 : index
    %c0_81 = arith.constant 0 : index
    %c0_82 = arith.constant 0 : index
    %157 = vector.load %arg15[%c0_80, %c0_81, %c0_82] : memref<2x64x32xbf16, #tpu.memory_space<vmem>>, vector<1x64x32xbf16>
    %158 = vector.shape_cast %157 : vector<1x64x32xbf16> to vector<64x32xbf16>
    %cst_83 = arith.constant dense<0.000000e+00> : vector<1x32xf32>
    %159 = tpu.matmul %156, %158, %cst_83 {dimension_numbers = #tpu.dot_dimension_numbers<[1], [0], [0], [1], [0, 0, 1, 1], [], []>} : vector<1x64xbf16>, vector<64x32xbf16>, vector<1x32xf32> -> vector<1x32xf32>
    %c0_84 = arith.constant 0 : index
    %c0_85 = arith.constant 0 : index
    %c0_86 = arith.constant 0 : index
    %160 = vector.load %arg16[%c0_84, %c0_85, %c0_86] : memref<2x1x32xf32, #tpu.memory_space<vmem>>, vector<1x1x32xf32>
    %161 = vector.shape_cast %160 : vector<1x1x32xf32> to vector<1x32xf32>
    %162 = arith.addf %159, %161 : vector<1x32xf32>
    %cst_87 = arith.constant 0.999994993 : f32
    %163 = vector.broadcast %cst_87 : f32 to vector<1x32xf32>
    %164 = arith.mulf %162, %163 : vector<1x32xf32>
    %cst_88 = arith.constant 0.000000e+00 : f32
    %165 = vector.broadcast %cst_88 : f32 to vector<1x32xf32>
    %166 = arith.maximumf %164, %165 : vector<1x32xf32>
    %167 = arith.addf %6, %166 : vector<1x32xf32>
    %168 = vector.broadcast %167 : vector<1x32xf32> to vector<8x32xf32>
    %169 = arith.addf %107, %168 : vector<8x32xf32>
    %170 = arith.truncf %169 : vector<8x32xf32> to vector<8x32xbf16>
    %c1 = arith.constant 1 : index
    %c0_89 = arith.constant 0 : index
    %c0_90 = arith.constant 0 : index
    %171 = vector.load %arg4[%c1, %c0_89, %c0_90] : memref<3x32x96xbf16, #tpu.memory_space<vmem>>, vector<1x32x96xbf16>
    %172 = vector.shape_cast %171 : vector<1x32x96xbf16> to vector<32x96xbf16>
    %cst_91 = arith.constant dense<0.000000e+00> : vector<8x96xf32>
    %173 = tpu.matmul %170, %172, %cst_91 {dimension_numbers = #tpu.dot_dimension_numbers<[1], [0], [0], [1], [0, 0, 1, 1], [], []>} : vector<8x32xbf16>, vector<32x96xbf16>, vector<8x96xf32> -> vector<8x96xf32>
    %174 = arith.truncf %173 : vector<8x96xf32> to vector<8x96xbf16>
    %c1_92 = arith.constant 1 : index
    %c0_93 = arith.constant 0 : index
    %c0_94 = arith.constant 0 : index
    %175 = vector.load %arg5[%c1_92, %c0_93, %c0_94] : memref<3x96x3xbf16, #tpu.memory_space<vmem>>, vector<1x96x3xbf16>
    %176 = vector.shape_cast %175 : vector<1x96x3xbf16> to vector<96x3xbf16>
    %cst_95 = arith.constant dense<0.000000e+00> : vector<8x3xf32>
    %177 = tpu.matmul %174, %176, %cst_95 {dimension_numbers = #tpu.dot_dimension_numbers<[1], [0], [0], [1], [0, 0, 1, 1], [], []>} : vector<8x96xbf16>, vector<96x3xbf16>, vector<8x3xf32> -> vector<8x3xf32>
    %c1_96 = arith.constant 1 : index
    %c0_97 = arith.constant 0 : index
    %c0_98 = arith.constant 0 : index
    %178 = vector.load %arg6[%c1_96, %c0_97, %c0_98] : memref<3x3x96xbf16, #tpu.memory_space<vmem>>, vector<1x3x96xbf16>
    %179 = vector.shape_cast %178 : vector<1x3x96xbf16> to vector<3x96xbf16>
    %cst_99 = arith.constant dense<0.000000e+00> : vector<3x8xf32>
    %180 = tpu.matmul %179, %174, %cst_99 {dimension_numbers = #tpu.dot_dimension_numbers<[1], [1], [0], [0], [0, 0, 1, 0], [], []>} : vector<3x96xbf16>, vector<8x96xbf16>, vector<3x8xf32> -> vector<3x8xf32>
    %181 = vector.extract_strided_slice %177 {offsets = [0, 0], sizes = [8, 1], strides = [1, 1]} : vector<8x3xf32> to vector<8x1xf32>
    %182 = vector.extract_strided_slice %180 {offsets = [0, 0], sizes = [1, 8], strides = [1, 1]} : vector<3x8xf32> to vector<1x8xf32>
    %183 = vector.broadcast %181 : vector<8x1xf32> to vector<8x8xf32>
    %184 = vector.broadcast %182 : vector<1x8xf32> to vector<8x8xf32>
    %185 = arith.addf %183, %184 : vector<8x8xf32>
    %cst_100 = arith.constant 0.000000e+00 : f32
    %186 = vector.broadcast %cst_100 : f32 to vector<8x8xf32>
    %187 = arith.cmpf oge, %185, %186 : vector<8x8xf32>
    %cst_101 = arith.constant 2.000000e-01 : f32
    %188 = vector.broadcast %cst_101 : f32 to vector<8x8xf32>
    %189 = arith.mulf %188, %185 : vector<8x8xf32>
    %190 = arith.select %187, %185, %189 : vector<8x8xi1>, vector<8x8xf32>
    %cst_102 = arith.constant -1.000000e+30 : f32
    %191 = vector.broadcast %cst_102 : f32 to vector<8x8xf32>
    %192 = arith.select %5, %190, %191 : vector<8x8xi1>, vector<8x8xf32>
    %cst_103 = arith.constant dense<0xFF800000> : vector<8xf32>
    %193 = vector.multi_reduction <maximumf>, %192, %cst_103 [0] : vector<8x8xf32> to vector<8xf32>
    %194 = vector.shape_cast %193 : vector<8xf32> to vector<1x8xf32>
    %195 = vector.broadcast %194 : vector<1x8xf32> to vector<8x8xf32>
    %196 = arith.subf %192, %195 : vector<8x8xf32>
    %197 = math.exp %196 : vector<8x8xf32>
    %cst_104 = arith.constant dense<0.000000e+00> : vector<8xf32>
    %198 = vector.multi_reduction <add>, %197, %cst_104 [0] : vector<8x8xf32> to vector<8xf32>
    %199 = vector.shape_cast %198 : vector<8xf32> to vector<1x8xf32>
    %200 = vector.broadcast %199 : vector<1x8xf32> to vector<8x8xf32>
    %201 = arith.divf %197, %200 : vector<8x8xf32>
    %202 = arith.truncf %201 : vector<8x8xf32> to vector<8x8xbf16>
    %203 = vector.extract_strided_slice %174 {offsets = [0, 0], sizes = [8, 32], strides = [1, 1]} : vector<8x96xbf16> to vector<8x32xbf16>
    %cst_105 = arith.constant dense<0.000000e+00> : vector<8x32xf32>
    %204 = tpu.matmul %202, %203, %cst_105 {dimension_numbers = #tpu.dot_dimension_numbers<[0], [0], [1], [1], [0, 1, 1, 1], [], []>} : vector<8x8xbf16>, vector<8x32xbf16>, vector<8x32xf32> -> vector<8x32xf32>
    %c0_106 = arith.constant 0 : index
    %c0_107 = arith.constant 0 : index
    %205 = vector.load %arg18[%c0_106, %c0_107] : memref<8x96xf32, #tpu.memory_space<vmem>>, vector<8x32xf32>
    tpu.vector_store %arg18[%c0_106, %c0_107], %204 {strides = array<i32>} : memref<8x96xf32, #tpu.memory_space<vmem>>, vector<8x32xf32>,
    %206 = vector.extract_strided_slice %177 {offsets = [0, 1], sizes = [8, 1], strides = [1, 1]} : vector<8x3xf32> to vector<8x1xf32>
    %207 = vector.extract_strided_slice %180 {offsets = [1, 0], sizes = [1, 8], strides = [1, 1]} : vector<3x8xf32> to vector<1x8xf32>
    %208 = vector.broadcast %206 : vector<8x1xf32> to vector<8x8xf32>
    %209 = vector.broadcast %207 : vector<1x8xf32> to vector<8x8xf32>
    %210 = arith.addf %208, %209 : vector<8x8xf32>
    %cst_108 = arith.constant 0.000000e+00 : f32
    %211 = vector.broadcast %cst_108 : f32 to vector<8x8xf32>
    %212 = arith.cmpf oge, %210, %211 : vector<8x8xf32>
    %cst_109 = arith.constant 2.000000e-01 : f32
    %213 = vector.broadcast %cst_109 : f32 to vector<8x8xf32>
    %214 = arith.mulf %213, %210 : vector<8x8xf32>
    %215 = arith.select %212, %210, %214 : vector<8x8xi1>, vector<8x8xf32>
    %cst_110 = arith.constant -1.000000e+30 : f32
    %216 = vector.broadcast %cst_110 : f32 to vector<8x8xf32>
    %217 = arith.select %5, %215, %216 : vector<8x8xi1>, vector<8x8xf32>
    %cst_111 = arith.constant dense<0xFF800000> : vector<8xf32>
    %218 = vector.multi_reduction <maximumf>, %217, %cst_111 [0] : vector<8x8xf32> to vector<8xf32>
    %219 = vector.shape_cast %218 : vector<8xf32> to vector<1x8xf32>
    %220 = vector.broadcast %219 : vector<1x8xf32> to vector<8x8xf32>
    %221 = arith.subf %217, %220 : vector<8x8xf32>
    %222 = math.exp %221 : vector<8x8xf32>
    %cst_112 = arith.constant dense<0.000000e+00> : vector<8xf32>
    %223 = vector.multi_reduction <add>, %222, %cst_112 [0] : vector<8x8xf32> to vector<8xf32>
    %224 = vector.shape_cast %223 : vector<8xf32> to vector<1x8xf32>
    %225 = vector.broadcast %224 : vector<1x8xf32> to vector<8x8xf32>
    %226 = arith.divf %222, %225 : vector<8x8xf32>
    %227 = arith.truncf %226 : vector<8x8xf32> to vector<8x8xbf16>
    %228 = vector.extract_strided_slice %174 {offsets = [0, 32], sizes = [8, 32], strides = [1, 1]} : vector<8x96xbf16> to vector<8x32xbf16>
    %cst_113 = arith.constant dense<0.000000e+00> : vector<8x32xf32>
    %229 = tpu.matmul %227, %228, %cst_113 {dimension_numbers = #tpu.dot_dimension_numbers<[0], [0], [1], [1], [0, 1, 1, 1], [], []>} : vector<8x8xbf16>, vector<8x32xbf16>, vector<8x32xf32> -> vector<8x32xf32>
    %c0_114 = arith.constant 0 : index
    %c32_115 = arith.constant 32 : index
    %230 = vector.load %arg18[%c0_114, %c32_115] : memref<8x96xf32, #tpu.memory_space<vmem>>, vector<8x32xf32>
    tpu.vector_store %arg18[%c0_114, %c32_115], %229 {strides = array<i32>} : memref<8x96xf32, #tpu.memory_space<vmem>>, vector<8x32xf32>,
    %231 = vector.extract_strided_slice %177 {offsets = [0, 2], sizes = [8, 1], strides = [1, 1]} : vector<8x3xf32> to vector<8x1xf32>
    %232 = vector.extract_strided_slice %180 {offsets = [2, 0], sizes = [1, 8], strides = [1, 1]} : vector<3x8xf32> to vector<1x8xf32>
    %233 = vector.broadcast %231 : vector<8x1xf32> to vector<8x8xf32>
    %234 = vector.broadcast %232 : vector<1x8xf32> to vector<8x8xf32>
    %235 = arith.addf %233, %234 : vector<8x8xf32>
    %cst_116 = arith.constant 0.000000e+00 : f32
    %236 = vector.broadcast %cst_116 : f32 to vector<8x8xf32>
    %237 = arith.cmpf oge, %235, %236 : vector<8x8xf32>
    %cst_117 = arith.constant 2.000000e-01 : f32
    %238 = vector.broadcast %cst_117 : f32 to vector<8x8xf32>
    %239 = arith.mulf %238, %235 : vector<8x8xf32>
    %240 = arith.select %237, %235, %239 : vector<8x8xi1>, vector<8x8xf32>
    %cst_118 = arith.constant -1.000000e+30 : f32
    %241 = vector.broadcast %cst_118 : f32 to vector<8x8xf32>
    %242 = arith.select %5, %240, %241 : vector<8x8xi1>, vector<8x8xf32>
    %cst_119 = arith.constant dense<0xFF800000> : vector<8xf32>
    %243 = vector.multi_reduction <maximumf>, %242, %cst_119 [0] : vector<8x8xf32> to vector<8xf32>
    %244 = vector.shape_cast %243 : vector<8xf32> to vector<1x8xf32>
    %245 = vector.broadcast %244 : vector<1x8xf32> to vector<8x8xf32>
    %246 = arith.subf %242, %245 : vector<8x8xf32>
    %247 = math.exp %246 : vector<8x8xf32>
    %cst_120 = arith.constant dense<0.000000e+00> : vector<8xf32>
    %248 = vector.multi_reduction <add>, %247, %cst_120 [0] : vector<8x8xf32> to vector<8xf32>
    %249 = vector.shape_cast %248 : vector<8xf32> to vector<1x8xf32>
    %250 = vector.broadcast %249 : vector<1x8xf32> to vector<8x8xf32>
    %251 = arith.divf %247, %250 : vector<8x8xf32>
    %252 = arith.truncf %251 : vector<8x8xf32> to vector<8x8xbf16>
    %253 = vector.extract_strided_slice %174 {offsets = [0, 64], sizes = [8, 32], strides = [1, 1]} : vector<8x96xbf16> to vector<8x32xbf16>
    %cst_121 = arith.constant dense<0.000000e+00> : vector<8x32xf32>
    %254 = tpu.matmul %252, %253, %cst_121 {dimension_numbers = #tpu.dot_dimension_numbers<[0], [0], [1], [1], [0, 1, 1, 1], [], []>} : vector<8x8xbf16>, vector<8x32xbf16>, vector<8x32xf32> -> vector<8x32xf32>
    %c0_122 = arith.constant 0 : index
    %c64_123 = arith.constant 64 : index
    %255 = vector.load %arg18[%c0_122, %c64_123] : memref<8x96xf32, #tpu.memory_space<vmem>>, vector<8x32xf32>
    tpu.vector_store %arg18[%c0_122, %c64_123], %254 {strides = array<i32>} : memref<8x96xf32, #tpu.memory_space<vmem>>, vector<8x32xf32>,
    %c0_124 = arith.constant 0 : index
    %c0_125 = arith.constant 0 : index
    %256 = vector.load %arg18[%c0_124, %c0_125] : memref<8x96xf32, #tpu.memory_space<vmem>>, vector<8x96xf32>
    %257 = arith.truncf %256 : vector<8x96xf32> to vector<8x96xbf16>
    %c1_126 = arith.constant 1 : index
    %c0_127 = arith.constant 0 : index
    %c0_128 = arith.constant 0 : index
    %258 = vector.load %arg7[%c1_126, %c0_127, %c0_128] : memref<3x96x32xbf16, #tpu.memory_space<vmem>>, vector<1x96x32xbf16>
    %259 = vector.shape_cast %258 : vector<1x96x32xbf16> to vector<96x32xbf16>
    %cst_129 = arith.constant dense<0.000000e+00> : vector<8x32xf32>
    %260 = tpu.matmul %257, %259, %cst_129 {dimension_numbers = #tpu.dot_dimension_numbers<[1], [0], [0], [1], [0, 0, 1, 1], [], []>} : vector<8x96xbf16>, vector<96x32xbf16>, vector<8x32xf32> -> vector<8x32xf32>
    %c1_130 = arith.constant 1 : index
    %c0_131 = arith.constant 0 : index
    %c0_132 = arith.constant 0 : index
    %261 = vector.load %arg8[%c1_130, %c0_131, %c0_132] : memref<3x1x32xf32, #tpu.memory_space<vmem>>, vector<1x1x32xf32>
    %262 = vector.shape_cast %261 : vector<1x1x32xf32> to vector<1x32xf32>
    %263 = vector.broadcast %262 : vector<1x32xf32> to vector<8x32xf32>
    %264 = arith.addf %260, %263 : vector<8x32xf32>
    %cst_133 = arith.constant 0.000000e+00 : f32
    %265 = vector.broadcast %cst_133 : f32 to vector<8x32xf32>
    %266 = arith.maximumf %264, %265 : vector<8x32xf32>
    %267 = arith.addf %266, %169 : vector<8x32xf32>
    %268 = arith.truncf %267 : vector<8x32xf32> to vector<8x32xbf16>
    %c1_134 = arith.constant 1 : index
    %c0_135 = arith.constant 0 : index
    %c0_136 = arith.constant 0 : index
    %269 = vector.load %arg9[%c1_134, %c0_135, %c0_136] : memref<3x32x64xbf16, #tpu.memory_space<vmem>>, vector<1x32x64xbf16>
    %270 = vector.shape_cast %269 : vector<1x32x64xbf16> to vector<32x64xbf16>
    %cst_137 = arith.constant dense<0.000000e+00> : vector<8x64xf32>
    %271 = tpu.matmul %268, %270, %cst_137 {dimension_numbers = #tpu.dot_dimension_numbers<[1], [0], [0], [1], [0, 0, 1, 1], [], []>} : vector<8x32xbf16>, vector<32x64xbf16>, vector<8x64xf32> -> vector<8x64xf32>
    %c1_138 = arith.constant 1 : index
    %c0_139 = arith.constant 0 : index
    %c0_140 = arith.constant 0 : index
    %272 = vector.load %arg10[%c1_138, %c0_139, %c0_140] : memref<3x1x64xf32, #tpu.memory_space<vmem>>, vector<1x1x64xf32>
    %273 = vector.shape_cast %272 : vector<1x1x64xf32> to vector<1x64xf32>
    %274 = vector.broadcast %273 : vector<1x64xf32> to vector<8x64xf32>
    %275 = arith.addf %271, %274 : vector<8x64xf32>
    %cst_141 = arith.constant 0.000000e+00 : f32
    %276 = vector.broadcast %cst_141 : f32 to vector<8x64xf32>
    %277 = arith.maximumf %275, %276 : vector<8x64xf32>
    %c1_142 = arith.constant 1 : index
    %c0_143 = arith.constant 0 : index
    %c0_144 = arith.constant 0 : index
    %278 = vector.load %arg11[%c1_142, %c0_143, %c0_144] : memref<3x1x64xf32, #tpu.memory_space<vmem>>, vector<1x1x64xf32>
    %279 = vector.shape_cast %278 : vector<1x1x64xf32> to vector<1x64xf32>
    %280 = vector.broadcast %279 : vector<1x64xf32> to vector<8x64xf32>
    %281 = arith.mulf %277, %280 : vector<8x64xf32>
    %cst_145 = arith.constant dense<0.000000e+00> : vector<8xf32>
    %282 = vector.multi_reduction <add>, %281, %cst_145 [1] : vector<8x64xf32> to vector<8xf32>
    %283 = vector.shape_cast %282 : vector<8xf32> to vector<8x1xf32>
    %c1_146 = arith.constant 1 : index
    %c0_147 = arith.constant 0 : index
    %c0_148 = arith.constant 0 : index
    %284 = vector.load %arg12[%c1_146, %c0_147, %c0_148] : memref<3x1x1xf32, #tpu.memory_space<vmem>>, vector<1x1x1xf32>
    %285 = vector.shape_cast %284 : vector<1x1x1xf32> to vector<1x1xf32>
    %286 = vector.broadcast %285 : vector<1x1xf32> to vector<8x1xf32>
    %287 = arith.addf %283, %286 : vector<8x1xf32>
    %cst_149 = arith.constant dense<0xFF800000> : vector<1xf32>
    %288 = vector.multi_reduction <maximumf>, %287, %cst_149 [0] : vector<8x1xf32> to vector<1xf32>
    %289 = vector.shape_cast %288 : vector<1xf32> to vector<1x1xf32>
    %290 = vector.broadcast %289 : vector<1x1xf32> to vector<8x1xf32>
    %291 = arith.subf %287, %290 : vector<8x1xf32>
    %292 = math.exp %291 : vector<8x1xf32>
    %cst_150 = arith.constant dense<0.000000e+00> : vector<1xf32>
    %293 = vector.multi_reduction <add>, %292, %cst_150 [0] : vector<8x1xf32> to vector<1xf32>
    %294 = vector.shape_cast %293 : vector<1xf32> to vector<1x1xf32>
    %295 = vector.broadcast %294 : vector<1x1xf32> to vector<8x1xf32>
    %296 = arith.divf %292, %295 : vector<8x1xf32>
    %297 = vector.broadcast %296 : vector<8x1xf32> to vector<8x32xf32>
    %298 = arith.mulf %297, %267 : vector<8x32xf32>
    %cst_151 = arith.constant dense<0.000000e+00> : vector<32xf32>
    %299 = vector.multi_reduction <add>, %298, %cst_151 [0] : vector<8x32xf32> to vector<32xf32>
    %300 = vector.shape_cast %299 : vector<32xf32> to vector<1x32xf32>
    %301 = arith.addf %141, %300 : vector<1x32xf32>
    %cst_152 = arith.constant dense<0.000000e+00> : vector<32xf32>
    %302 = vector.multi_reduction <add>, %267, %cst_152 [0] : vector<8x32xf32> to vector<32xf32>
    %303 = vector.shape_cast %302 : vector<32xf32> to vector<1x32xf32>
    %304 = arith.addf %303, %167 : vector<1x32xf32>
    %305 = arith.truncf %304 : vector<1x32xf32> to vector<1x32xbf16>
    %c1_153 = arith.constant 1 : index
    %c0_154 = arith.constant 0 : index
    %c0_155 = arith.constant 0 : index
    %306 = vector.load %arg13[%c1_153, %c0_154, %c0_155] : memref<2x32x64xbf16, #tpu.memory_space<vmem>>, vector<1x32x64xbf16>
    %307 = vector.shape_cast %306 : vector<1x32x64xbf16> to vector<32x64xbf16>
    %cst_156 = arith.constant dense<0.000000e+00> : vector<1x64xf32>
    %308 = tpu.matmul %305, %307, %cst_156 {dimension_numbers = #tpu.dot_dimension_numbers<[1], [0], [0], [1], [0, 0, 1, 1], [], []>} : vector<1x32xbf16>, vector<32x64xbf16>, vector<1x64xf32> -> vector<1x64xf32>
    %c1_157 = arith.constant 1 : index
    %c0_158 = arith.constant 0 : index
    %c0_159 = arith.constant 0 : index
    %309 = vector.load %arg14[%c1_157, %c0_158, %c0_159] : memref<2x1x64xf32, #tpu.memory_space<vmem>>, vector<1x1x64xf32>
    %310 = vector.shape_cast %309 : vector<1x1x64xf32> to vector<1x64xf32>
    %311 = arith.addf %308, %310 : vector<1x64xf32>
    %cst_160 = arith.constant 0.999994993 : f32
    %312 = vector.broadcast %cst_160 : f32 to vector<1x64xf32>
    %313 = arith.mulf %311, %312 : vector<1x64xf32>
    %cst_161 = arith.constant 0.000000e+00 : f32
    %314 = vector.broadcast %cst_161 : f32 to vector<1x64xf32>
    %315 = arith.maximumf %313, %314 : vector<1x64xf32>
    %316 = arith.truncf %315 : vector<1x64xf32> to vector<1x64xbf16>
    %c1_162 = arith.constant 1 : index
    %c0_163 = arith.constant 0 : index
    %c0_164 = arith.constant 0 : index
    %317 = vector.load %arg15[%c1_162, %c0_163, %c0_164] : memref<2x64x32xbf16, #tpu.memory_space<vmem>>, vector<1x64x32xbf16>
    %318 = vector.shape_cast %317 : vector<1x64x32xbf16> to vector<64x32xbf16>
    %cst_165 = arith.constant dense<0.000000e+00> : vector<1x32xf32>
    %319 = tpu.matmul %316, %318, %cst_165 {dimension_numbers = #tpu.dot_dimension_numbers<[1], [0], [0], [1], [0, 0, 1, 1], [], []>} : vector<1x64xbf16>, vector<64x32xbf16>, vector<1x32xf32> -> vector<1x32xf32>
    %c1_166 = arith.constant 1 : index
    %c0_167 = arith.constant 0 : index
    %c0_168 = arith.constant 0 : index
    %320 = vector.load %arg16[%c1_166, %c0_167, %c0_168] : memref<2x1x32xf32, #tpu.memory_space<vmem>>, vector<1x1x32xf32>
    %321 = vector.shape_cast %320 : vector<1x1x32xf32> to vector<1x32xf32>
    %322 = arith.addf %319, %321 : vector<1x32xf32>
    %cst_169 = arith.constant 0.999994993 : f32
    %323 = vector.broadcast %cst_169 : f32 to vector<1x32xf32>
    %324 = arith.mulf %322, %323 : vector<1x32xf32>
    %cst_170 = arith.constant 0.000000e+00 : f32
    %325 = vector.broadcast %cst_170 : f32 to vector<1x32xf32>
    %326 = arith.maximumf %324, %325 : vector<1x32xf32>
    %327 = arith.addf %167, %326 : vector<1x32xf32>
    %328 = vector.broadcast %327 : vector<1x32xf32> to vector<8x32xf32>
    %329 = arith.addf %267, %328 : vector<8x32xf32>
    %330 = arith.truncf %329 : vector<8x32xf32> to vector<8x32xbf16>
    %c2 = arith.constant 2 : index
    %c0_171 = arith.constant 0 : index
    %c0_172 = arith.constant 0 : index
    %331 = vector.load %arg4[%c2, %c0_171, %c0_172] : memref<3x32x96xbf16, #tpu.memory_space<vmem>>, vector<1x32x96xbf16>
    %332 = vector.shape_cast %331 : vector<1x32x96xbf16> to vector<32x96xbf16>
    %cst_173 = arith.constant dense<0.000000e+00> : vector<8x96xf32>
    %333 = tpu.matmul %330, %332, %cst_173 {dimension_numbers = #tpu.dot_dimension_numbers<[1], [0], [0], [1], [0, 0, 1, 1], [], []>} : vector<8x32xbf16>, vector<32x96xbf16>, vector<8x96xf32> -> vector<8x96xf32>
    %334 = arith.truncf %333 : vector<8x96xf32> to vector<8x96xbf16>
    %c2_174 = arith.constant 2 : index
    %c0_175 = arith.constant 0 : index
    %c0_176 = arith.constant 0 : index
    %335 = vector.load %arg5[%c2_174, %c0_175, %c0_176] : memref<3x96x3xbf16, #tpu.memory_space<vmem>>, vector<1x96x3xbf16>
    %336 = vector.shape_cast %335 : vector<1x96x3xbf16> to vector<96x3xbf16>
    %cst_177 = arith.constant dense<0.000000e+00> : vector<8x3xf32>
    %337 = tpu.matmul %334, %336, %cst_177 {dimension_numbers = #tpu.dot_dimension_numbers<[1], [0], [0], [1], [0, 0, 1, 1], [], []>} : vector<8x96xbf16>, vector<96x3xbf16>, vector<8x3xf32> -> vector<8x3xf32>
    %c2_178 = arith.constant 2 : index
    %c0_179 = arith.constant 0 : index
    %c0_180 = arith.constant 0 : index
    %338 = vector.load %arg6[%c2_178, %c0_179, %c0_180] : memref<3x3x96xbf16, #tpu.memory_space<vmem>>, vector<1x3x96xbf16>
    %339 = vector.shape_cast %338 : vector<1x3x96xbf16> to vector<3x96xbf16>
    %cst_181 = arith.constant dense<0.000000e+00> : vector<3x8xf32>
    %340 = tpu.matmul %339, %334, %cst_181 {dimension_numbers = #tpu.dot_dimension_numbers<[1], [1], [0], [0], [0, 0, 1, 0], [], []>} : vector<3x96xbf16>, vector<8x96xbf16>, vector<3x8xf32> -> vector<3x8xf32>
    %341 = vector.extract_strided_slice %337 {offsets = [0, 0], sizes = [8, 1], strides = [1, 1]} : vector<8x3xf32> to vector<8x1xf32>
    %342 = vector.extract_strided_slice %340 {offsets = [0, 0], sizes = [1, 8], strides = [1, 1]} : vector<3x8xf32> to vector<1x8xf32>
    %343 = vector.broadcast %341 : vector<8x1xf32> to vector<8x8xf32>
    %344 = vector.broadcast %342 : vector<1x8xf32> to vector<8x8xf32>
    %345 = arith.addf %343, %344 : vector<8x8xf32>
    %cst_182 = arith.constant 0.000000e+00 : f32
    %346 = vector.broadcast %cst_182 : f32 to vector<8x8xf32>
    %347 = arith.cmpf oge, %345, %346 : vector<8x8xf32>
    %cst_183 = arith.constant 2.000000e-01 : f32
    %348 = vector.broadcast %cst_183 : f32 to vector<8x8xf32>
    %349 = arith.mulf %348, %345 : vector<8x8xf32>
    %350 = arith.select %347, %345, %349 : vector<8x8xi1>, vector<8x8xf32>
    %cst_184 = arith.constant -1.000000e+30 : f32
    %351 = vector.broadcast %cst_184 : f32 to vector<8x8xf32>
    %352 = arith.select %5, %350, %351 : vector<8x8xi1>, vector<8x8xf32>
    %cst_185 = arith.constant dense<0xFF800000> : vector<8xf32>
    %353 = vector.multi_reduction <maximumf>, %352, %cst_185 [0] : vector<8x8xf32> to vector<8xf32>
    %354 = vector.shape_cast %353 : vector<8xf32> to vector<1x8xf32>
    %355 = vector.broadcast %354 : vector<1x8xf32> to vector<8x8xf32>
    %356 = arith.subf %352, %355 : vector<8x8xf32>
    %357 = math.exp %356 : vector<8x8xf32>
    %cst_186 = arith.constant dense<0.000000e+00> : vector<8xf32>
    %358 = vector.multi_reduction <add>, %357, %cst_186 [0] : vector<8x8xf32> to vector<8xf32>
    %359 = vector.shape_cast %358 : vector<8xf32> to vector<1x8xf32>
    %360 = vector.broadcast %359 : vector<1x8xf32> to vector<8x8xf32>
    %361 = arith.divf %357, %360 : vector<8x8xf32>
    %362 = arith.truncf %361 : vector<8x8xf32> to vector<8x8xbf16>
    %363 = vector.extract_strided_slice %334 {offsets = [0, 0], sizes = [8, 32], strides = [1, 1]} : vector<8x96xbf16> to vector<8x32xbf16>
    %cst_187 = arith.constant dense<0.000000e+00> : vector<8x32xf32>
    %364 = tpu.matmul %362, %363, %cst_187 {dimension_numbers = #tpu.dot_dimension_numbers<[0], [0], [1], [1], [0, 1, 1, 1], [], []>} : vector<8x8xbf16>, vector<8x32xbf16>, vector<8x32xf32> -> vector<8x32xf32>
    %c0_188 = arith.constant 0 : index
    %c0_189 = arith.constant 0 : index
    %365 = vector.load %arg18[%c0_188, %c0_189] : memref<8x96xf32, #tpu.memory_space<vmem>>, vector<8x32xf32>
    tpu.vector_store %arg18[%c0_188, %c0_189], %364 {strides = array<i32>} : memref<8x96xf32, #tpu.memory_space<vmem>>, vector<8x32xf32>,
    %366 = vector.extract_strided_slice %337 {offsets = [0, 1], sizes = [8, 1], strides = [1, 1]} : vector<8x3xf32> to vector<8x1xf32>
    %367 = vector.extract_strided_slice %340 {offsets = [1, 0], sizes = [1, 8], strides = [1, 1]} : vector<3x8xf32> to vector<1x8xf32>
    %368 = vector.broadcast %366 : vector<8x1xf32> to vector<8x8xf32>
    %369 = vector.broadcast %367 : vector<1x8xf32> to vector<8x8xf32>
    %370 = arith.addf %368, %369 : vector<8x8xf32>
    %cst_190 = arith.constant 0.000000e+00 : f32
    %371 = vector.broadcast %cst_190 : f32 to vector<8x8xf32>
    %372 = arith.cmpf oge, %370, %371 : vector<8x8xf32>
    %cst_191 = arith.constant 2.000000e-01 : f32
    %373 = vector.broadcast %cst_191 : f32 to vector<8x8xf32>
    %374 = arith.mulf %373, %370 : vector<8x8xf32>
    %375 = arith.select %372, %370, %374 : vector<8x8xi1>, vector<8x8xf32>
    %cst_192 = arith.constant -1.000000e+30 : f32
    %376 = vector.broadcast %cst_192 : f32 to vector<8x8xf32>
    %377 = arith.select %5, %375, %376 : vector<8x8xi1>, vector<8x8xf32>
    %cst_193 = arith.constant dense<0xFF800000> : vector<8xf32>
    %378 = vector.multi_reduction <maximumf>, %377, %cst_193 [0] : vector<8x8xf32> to vector<8xf32>
    %379 = vector.shape_cast %378 : vector<8xf32> to vector<1x8xf32>
    %380 = vector.broadcast %379 : vector<1x8xf32> to vector<8x8xf32>
    %381 = arith.subf %377, %380 : vector<8x8xf32>
    %382 = math.exp %381 : vector<8x8xf32>
    %cst_194 = arith.constant dense<0.000000e+00> : vector<8xf32>
    %383 = vector.multi_reduction <add>, %382, %cst_194 [0] : vector<8x8xf32> to vector<8xf32>
    %384 = vector.shape_cast %383 : vector<8xf32> to vector<1x8xf32>
    %385 = vector.broadcast %384 : vector<1x8xf32> to vector<8x8xf32>
    %386 = arith.divf %382, %385 : vector<8x8xf32>
    %387 = arith.truncf %386 : vector<8x8xf32> to vector<8x8xbf16>
    %388 = vector.extract_strided_slice %334 {offsets = [0, 32], sizes = [8, 32], strides = [1, 1]} : vector<8x96xbf16> to vector<8x32xbf16>
    %cst_195 = arith.constant dense<0.000000e+00> : vector<8x32xf32>
    %389 = tpu.matmul %387, %388, %cst_195 {dimension_numbers = #tpu.dot_dimension_numbers<[0], [0], [1], [1], [0, 1, 1, 1], [], []>} : vector<8x8xbf16>, vector<8x32xbf16>, vector<8x32xf32> -> vector<8x32xf32>
    %c0_196 = arith.constant 0 : index
    %c32_197 = arith.constant 32 : index
    %390 = vector.load %arg18[%c0_196, %c32_197] : memref<8x96xf32, #tpu.memory_space<vmem>>, vector<8x32xf32>
    tpu.vector_store %arg18[%c0_196, %c32_197], %389 {strides = array<i32>} : memref<8x96xf32, #tpu.memory_space<vmem>>, vector<8x32xf32>,
    %391 = vector.extract_strided_slice %337 {offsets = [0, 2], sizes = [8, 1], strides = [1, 1]} : vector<8x3xf32> to vector<8x1xf32>
    %392 = vector.extract_strided_slice %340 {offsets = [2, 0], sizes = [1, 8], strides = [1, 1]} : vector<3x8xf32> to vector<1x8xf32>
    %393 = vector.broadcast %391 : vector<8x1xf32> to vector<8x8xf32>
    %394 = vector.broadcast %392 : vector<1x8xf32> to vector<8x8xf32>
    %395 = arith.addf %393, %394 : vector<8x8xf32>
    %cst_198 = arith.constant 0.000000e+00 : f32
    %396 = vector.broadcast %cst_198 : f32 to vector<8x8xf32>
    %397 = arith.cmpf oge, %395, %396 : vector<8x8xf32>
    %cst_199 = arith.constant 2.000000e-01 : f32
    %398 = vector.broadcast %cst_199 : f32 to vector<8x8xf32>
    %399 = arith.mulf %398, %395 : vector<8x8xf32>
    %400 = arith.select %397, %395, %399 : vector<8x8xi1>, vector<8x8xf32>
    %cst_200 = arith.constant -1.000000e+30 : f32
    %401 = vector.broadcast %cst_200 : f32 to vector<8x8xf32>
    %402 = arith.select %5, %400, %401 : vector<8x8xi1>, vector<8x8xf32>
    %cst_201 = arith.constant dense<0xFF800000> : vector<8xf32>
    %403 = vector.multi_reduction <maximumf>, %402, %cst_201 [0] : vector<8x8xf32> to vector<8xf32>
    %404 = vector.shape_cast %403 : vector<8xf32> to vector<1x8xf32>
    %405 = vector.broadcast %404 : vector<1x8xf32> to vector<8x8xf32>
    %406 = arith.subf %402, %405 : vector<8x8xf32>
    %407 = math.exp %406 : vector<8x8xf32>
    %cst_202 = arith.constant dense<0.000000e+00> : vector<8xf32>
    %408 = vector.multi_reduction <add>, %407, %cst_202 [0] : vector<8x8xf32> to vector<8xf32>
    %409 = vector.shape_cast %408 : vector<8xf32> to vector<1x8xf32>
    %410 = vector.broadcast %409 : vector<1x8xf32> to vector<8x8xf32>
    %411 = arith.divf %407, %410 : vector<8x8xf32>
    %412 = arith.truncf %411 : vector<8x8xf32> to vector<8x8xbf16>
    %413 = vector.extract_strided_slice %334 {offsets = [0, 64], sizes = [8, 32], strides = [1, 1]} : vector<8x96xbf16> to vector<8x32xbf16>
    %cst_203 = arith.constant dense<0.000000e+00> : vector<8x32xf32>
    %414 = tpu.matmul %412, %413, %cst_203 {dimension_numbers = #tpu.dot_dimension_numbers<[0], [0], [1], [1], [0, 1, 1, 1], [], []>} : vector<8x8xbf16>, vector<8x32xbf16>, vector<8x32xf32> -> vector<8x32xf32>
    %c0_204 = arith.constant 0 : index
    %c64_205 = arith.constant 64 : index
    %415 = vector.load %arg18[%c0_204, %c64_205] : memref<8x96xf32, #tpu.memory_space<vmem>>, vector<8x32xf32>
    tpu.vector_store %arg18[%c0_204, %c64_205], %414 {strides = array<i32>} : memref<8x96xf32, #tpu.memory_space<vmem>>, vector<8x32xf32>,
    %c0_206 = arith.constant 0 : index
    %c0_207 = arith.constant 0 : index
    %416 = vector.load %arg18[%c0_206, %c0_207] : memref<8x96xf32, #tpu.memory_space<vmem>>, vector<8x96xf32>
    %417 = arith.truncf %416 : vector<8x96xf32> to vector<8x96xbf16>
    %c2_208 = arith.constant 2 : index
    %c0_209 = arith.constant 0 : index
    %c0_210 = arith.constant 0 : index
    %418 = vector.load %arg7[%c2_208, %c0_209, %c0_210] : memref<3x96x32xbf16, #tpu.memory_space<vmem>>, vector<1x96x32xbf16>
    %419 = vector.shape_cast %418 : vector<1x96x32xbf16> to vector<96x32xbf16>
    %cst_211 = arith.constant dense<0.000000e+00> : vector<8x32xf32>
    %420 = tpu.matmul %417, %419, %cst_211 {dimension_numbers = #tpu.dot_dimension_numbers<[1], [0], [0], [1], [0, 0, 1, 1], [], []>} : vector<8x96xbf16>, vector<96x32xbf16>, vector<8x32xf32> -> vector<8x32xf32>
    %c2_212 = arith.constant 2 : index
    %c0_213 = arith.constant 0 : index
    %c0_214 = arith.constant 0 : index
    %421 = vector.load %arg8[%c2_212, %c0_213, %c0_214] : memref<3x1x32xf32, #tpu.memory_space<vmem>>, vector<1x1x32xf32>
    %422 = vector.shape_cast %421 : vector<1x1x32xf32> to vector<1x32xf32>
    %423 = vector.broadcast %422 : vector<1x32xf32> to vector<8x32xf32>
    %424 = arith.addf %420, %423 : vector<8x32xf32>
    %425 = arith.addf %424, %329 : vector<8x32xf32>
    %426 = arith.truncf %425 : vector<8x32xf32> to vector<8x32xbf16>
    %c2_215 = arith.constant 2 : index
    %c0_216 = arith.constant 0 : index
    %c0_217 = arith.constant 0 : index
    %427 = vector.load %arg9[%c2_215, %c0_216, %c0_217] : memref<3x32x64xbf16, #tpu.memory_space<vmem>>, vector<1x32x64xbf16>
    %428 = vector.shape_cast %427 : vector<1x32x64xbf16> to vector<32x64xbf16>
    %cst_218 = arith.constant dense<0.000000e+00> : vector<8x64xf32>
    %429 = tpu.matmul %426, %428, %cst_218 {dimension_numbers = #tpu.dot_dimension_numbers<[1], [0], [0], [1], [0, 0, 1, 1], [], []>} : vector<8x32xbf16>, vector<32x64xbf16>, vector<8x64xf32> -> vector<8x64xf32>
    %c2_219 = arith.constant 2 : index
    %c0_220 = arith.constant 0 : index
    %c0_221 = arith.constant 0 : index
    %430 = vector.load %arg10[%c2_219, %c0_220, %c0_221] : memref<3x1x64xf32, #tpu.memory_space<vmem>>, vector<1x1x64xf32>
    %431 = vector.shape_cast %430 : vector<1x1x64xf32> to vector<1x64xf32>
    %432 = vector.broadcast %431 : vector<1x64xf32> to vector<8x64xf32>
    %433 = arith.addf %429, %432 : vector<8x64xf32>
    %cst_222 = arith.constant 0.000000e+00 : f32
    %434 = vector.broadcast %cst_222 : f32 to vector<8x64xf32>
    %435 = arith.maximumf %433, %434 : vector<8x64xf32>
    %c2_223 = arith.constant 2 : index
    %c0_224 = arith.constant 0 : index
    %c0_225 = arith.constant 0 : index
    %436 = vector.load %arg11[%c2_223, %c0_224, %c0_225] : memref<3x1x64xf32, #tpu.memory_space<vmem>>, vector<1x1x64xf32>
    %437 = vector.shape_cast %436 : vector<1x1x64xf32> to vector<1x64xf32>
    %438 = vector.broadcast %437 : vector<1x64xf32> to vector<8x64xf32>
    %439 = arith.mulf %435, %438 : vector<8x64xf32>
    %cst_226 = arith.constant dense<0.000000e+00> : vector<8xf32>
    %440 = vector.multi_reduction <add>, %439, %cst_226 [1] : vector<8x64xf32> to vector<8xf32>
    %441 = vector.shape_cast %440 : vector<8xf32> to vector<8x1xf32>
    %c2_227 = arith.constant 2 : index
    %c0_228 = arith.constant 0 : index
    %c0_229 = arith.constant 0 : index
    %442 = vector.load %arg12[%c2_227, %c0_228, %c0_229] : memref<3x1x1xf32, #tpu.memory_space<vmem>>, vector<1x1x1xf32>
    %443 = vector.shape_cast %442 : vector<1x1x1xf32> to vector<1x1xf32>
    %444 = vector.broadcast %443 : vector<1x1xf32> to vector<8x1xf32>
    %445 = arith.addf %441, %444 : vector<8x1xf32>
    %cst_230 = arith.constant dense<0xFF800000> : vector<1xf32>
    %446 = vector.multi_reduction <maximumf>, %445, %cst_230 [0] : vector<8x1xf32> to vector<1xf32>
    %447 = vector.shape_cast %446 : vector<1xf32> to vector<1x1xf32>
    %448 = vector.broadcast %447 : vector<1x1xf32> to vector<8x1xf32>
    %449 = arith.subf %445, %448 : vector<8x1xf32>
    %450 = math.exp %449 : vector<8x1xf32>
    %cst_231 = arith.constant dense<0.000000e+00> : vector<1xf32>
    %451 = vector.multi_reduction <add>, %450, %cst_231 [0] : vector<8x1xf32> to vector<1xf32>
    %452 = vector.shape_cast %451 : vector<1xf32> to vector<1x1xf32>
    %453 = vector.broadcast %452 : vector<1x1xf32> to vector<8x1xf32>
    %454 = arith.divf %450, %453 : vector<8x1xf32>
    %455 = vector.broadcast %454 : vector<8x1xf32> to vector<8x32xf32>
    %456 = arith.mulf %455, %425 : vector<8x32xf32>
    %cst_232 = arith.constant dense<0.000000e+00> : vector<32xf32>
    %457 = vector.multi_reduction <add>, %456, %cst_232 [0] : vector<8x32xf32> to vector<32xf32>
    %458 = vector.shape_cast %457 : vector<32xf32> to vector<1x32xf32>
    %459 = arith.addf %301, %458 : vector<1x32xf32>
    %cst_233 = arith.constant 0.333333343 : f32
    %460 = vector.broadcast %cst_233 : f32 to vector<1x32xf32>
    %461 = arith.mulf %459, %460 : vector<1x32xf32>
    %c0_234 = arith.constant 0 : index
    %c0_235 = arith.constant 0 : index
    %c0_236 = arith.constant 0 : index
    %462 = vector.load %arg17[%c0_234, %c0_235, %c0_236] : memref<1x1x32xf32, #tpu.memory_space<vmem>>, vector<1x1x32xf32>
    %463 = vector.shape_cast %462 : vector<1x1x32xf32> to vector<1x32xf32>
    %464 = vector.shape_cast %461 : vector<1x32xf32> to vector<1x1x32xf32>
    tpu.vector_store %arg17[%c0_234, %c0_235, %c0_236], %464 {strides = array<i32>} : memref<1x1x32xf32, #tpu.memory_space<vmem>>, vector<1x1x32xf32>,
    return
  }
  func.func @transform_0(%arg0: i32) -> (i32, i32, i32) {
    %c0_i32 = arith.constant 0 : i32
    %c0_i32_0 = arith.constant 0 : i32
    %c0_i32_1 = arith.constant 0 : i32
    return %arg0, %c0_i32, %c0_i32_0 : i32, i32, i32
  }
  func.func @transform_1(%arg0: i32) -> (i32, i32, i32) {
    %c0_i32 = arith.constant 0 : i32
    %c0_i32_0 = arith.constant 0 : i32
    %c0_i32_1 = arith.constant 0 : i32
    return %arg0, %c0_i32, %c0_i32_0 : i32, i32, i32
  }
  func.func @transform_2(%arg0: i32) -> (i32, i32) {
    %c0_i32 = arith.constant 0 : i32
    %c0_i32_0 = arith.constant 0 : i32
    %c0_i32_1 = arith.constant 0 : i32
    return %c0_i32, %c0_i32_0 : i32, i32
  }
  func.func @transform_3(%arg0: i32) -> (i32, i32, i32) {
    %c0_i32 = arith.constant 0 : i32
    %c0_i32_0 = arith.constant 0 : i32
    %c0_i32_1 = arith.constant 0 : i32
    %c0_i32_2 = arith.constant 0 : i32
    return %c0_i32, %c0_i32_0, %c0_i32_1 : i32, i32, i32
  }
  func.func @transform_4(%arg0: i32) -> (i32, i32, i32) {
    %c0_i32 = arith.constant 0 : i32
    %c0_i32_0 = arith.constant 0 : i32
    %c0_i32_1 = arith.constant 0 : i32
    %c0_i32_2 = arith.constant 0 : i32
    return %c0_i32, %c0_i32_0, %c0_i32_1 : i32, i32, i32
  }
  func.func @transform_5(%arg0: i32) -> (i32, i32, i32) {
    %c0_i32 = arith.constant 0 : i32
    %c0_i32_0 = arith.constant 0 : i32
    %c0_i32_1 = arith.constant 0 : i32
    %c0_i32_2 = arith.constant 0 : i32
    return %c0_i32, %c0_i32_0, %c0_i32_1 : i32, i32, i32
  }
  func.func @transform_6(%arg0: i32) -> (i32, i32, i32) {
    %c0_i32 = arith.constant 0 : i32
    %c0_i32_0 = arith.constant 0 : i32
    %c0_i32_1 = arith.constant 0 : i32
    %c0_i32_2 = arith.constant 0 : i32
    return %c0_i32, %c0_i32_0, %c0_i32_1 : i32, i32, i32
  }
  func.func @transform_7(%arg0: i32) -> (i32, i32, i32) {
    %c0_i32 = arith.constant 0 : i32
    %c0_i32_0 = arith.constant 0 : i32
    %c0_i32_1 = arith.constant 0 : i32
    %c0_i32_2 = arith.constant 0 : i32
    return %c0_i32, %c0_i32_0, %c0_i32_1 : i32, i32, i32
  }
  func.func @transform_8(%arg0: i32) -> (i32, i32, i32) {
    %c0_i32 = arith.constant 0 : i32
    %c0_i32_0 = arith.constant 0 : i32
    %c0_i32_1 = arith.constant 0 : i32
    %c0_i32_2 = arith.constant 0 : i32
    return %c0_i32, %c0_i32_0, %c0_i32_1 : i32, i32, i32
  }
  func.func @transform_9(%arg0: i32) -> (i32, i32, i32) {
    %c0_i32 = arith.constant 0 : i32
    %c0_i32_0 = arith.constant 0 : i32
    %c0_i32_1 = arith.constant 0 : i32
    %c0_i32_2 = arith.constant 0 : i32
    return %c0_i32, %c0_i32_0, %c0_i32_1 : i32, i32, i32
  }
  func.func @transform_10(%arg0: i32) -> (i32, i32, i32) {
    %c0_i32 = arith.constant 0 : i32
    %c0_i32_0 = arith.constant 0 : i32
    %c0_i32_1 = arith.constant 0 : i32
    %c0_i32_2 = arith.constant 0 : i32
    return %c0_i32, %c0_i32_0, %c0_i32_1 : i32, i32, i32
  }
  func.func @transform_11(%arg0: i32) -> (i32, i32, i32) {
    %c0_i32 = arith.constant 0 : i32
    %c0_i32_0 = arith.constant 0 : i32
    %c0_i32_1 = arith.constant 0 : i32
    %c0_i32_2 = arith.constant 0 : i32
    return %c0_i32, %c0_i32_0, %c0_i32_1 : i32, i32, i32
  }
  func.func @transform_12(%arg0: i32) -> (i32, i32, i32) {
    %c0_i32 = arith.constant 0 : i32
    %c0_i32_0 = arith.constant 0 : i32
    %c0_i32_1 = arith.constant 0 : i32
    %c0_i32_2 = arith.constant 0 : i32
    return %c0_i32, %c0_i32_0, %c0_i32_1 : i32, i32, i32
  }
  func.func @transform_13(%arg0: i32) -> (i32, i32, i32) {
    %c0_i32 = arith.constant 0 : i32
    %c0_i32_0 = arith.constant 0 : i32
    %c0_i32_1 = arith.constant 0 : i32
    %c0_i32_2 = arith.constant 0 : i32
    return %c0_i32, %c0_i32_0, %c0_i32_1 : i32, i32, i32
  }
  func.func @transform_14(%arg0: i32) -> (i32, i32, i32) {
    %c0_i32 = arith.constant 0 : i32
    %c0_i32_0 = arith.constant 0 : i32
    %c0_i32_1 = arith.constant 0 : i32
    %c0_i32_2 = arith.constant 0 : i32
    return %c0_i32, %c0_i32_0, %c0_i32_1 : i32, i32, i32
  }
  func.func @transform_15(%arg0: i32) -> (i32, i32, i32) {
    %c0_i32 = arith.constant 0 : i32
    %c0_i32_0 = arith.constant 0 : i32
    %c0_i32_1 = arith.constant 0 : i32
    %c0_i32_2 = arith.constant 0 : i32
    return %c0_i32, %c0_i32_0, %c0_i32_1 : i32, i32, i32
  }
  func.func @transform_16(%arg0: i32) -> (i32, i32, i32) {
    %c0_i32 = arith.constant 0 : i32
    %c0_i32_0 = arith.constant 0 : i32
    %c0_i32_1 = arith.constant 0 : i32
    return %arg0, %c0_i32, %c0_i32_0 : i32, i32, i32
  }
}

</mosaic_0001>

<llo_original>
// kernel: mlap_forward_pallas.1
$region0: #{mlap_forward_pallas.1}
  #allocation0 [shape = 'u32[]', space=smem, size = 0x4, offset = 0x4, fixed_abs, tag = 'smem constant byte address 0x4 - core index']
  #allocation1 [shape = 'u32[72,128]{1,0:T(1,128)}', space=vmem, size = 0x9000, scoped, tag = 'internal scratch']
  #allocation2 [shape = 'f32[8,96]{1,0:T(8,128)}', space=vmem, size = 0x1000, scoped, tag = 'scratch operand']
  %s0 = inlined_call_operand.vmem [shape: f32[2,8,32], index: 0, kind: input, shape index: {}]
  %s1 = inlined_call_operand.vmem [shape: f32[2,8,8], index: 1, kind: input, shape index: {}]
  %s2 = inlined_call_operand.vmem [shape: f32[1,32], index: 2, kind: input, shape index: {}]
  %s3 = inlined_call_operand.vmem [shape: bf16[3,32,96], index: 3, kind: input, shape index: {}]
  %s4 = inlined_call_operand.vmem [shape: bf16[3,96,3], index: 4, kind: input, shape index: {}]
  %s5 = inlined_call_operand.vmem [shape: bf16[3,3,96], index: 5, kind: input, shape index: {}]
  %s6 = inlined_call_operand.vmem [shape: bf16[3,96,32], index: 6, kind: input, shape index: {}]
  %s7 = inlined_call_operand.vmem [shape: f32[3,1,32], index: 7, kind: input, shape index: {}]
  %s8 = inlined_call_operand.vmem [shape: bf16[3,32,64], index: 8, kind: input, shape index: {}]
  %s9 = inlined_call_operand.vmem [shape: f32[3,1,64], index: 9, kind: input, shape index: {}]
  %s10 = inlined_call_operand.vmem [shape: f32[3,1,64], index: 10, kind: input, shape index: {}]
  %s11 = inlined_call_operand.vmem [shape: f32[3,1,1], index: 11, kind: input, shape index: {}]
  %s12 = inlined_call_operand.vmem [shape: bf16[2,32,64], index: 12, kind: input, shape index: {}]
  %s13 = inlined_call_operand.vmem [shape: f32[2,1,64], index: 13, kind: input, shape index: {}]
  %s14 = inlined_call_operand.vmem [shape: bf16[2,64,32], index: 14, kind: input, shape index: {}]
  %s15 = inlined_call_operand.vmem [shape: f32[2,1,32], index: 15, kind: input, shape index: {}]
  %s16 = inlined_call_operand.hbm [shape: f32[2,1,32], index: 16, kind: output, shape index: {}]
  %s17 = sld [smem:[#allocation0]]
  $region97: #{mlap_forward_pallas.1} parent=0
    _
  %s19 = ssub.s32 1, %s17
  %s20 = scalar_select 0, %s19, %s17
  $region1: #{mlap_forward_pallas.1} parent=0
    #allocation3 [shape = 'u8[1024]{0}', space=vmem, size = 0x400, scoped, tag = 'output window, operand 0']
    #allocation4 [shape = 's32[2]{0}', space=sflag, size = 0x8, scoped, tag = 'scoped memory for mlap_forward_pallas.1']
    %21 = vsyncpa [#allocation4], 0
    %s22 = scalar_lea.sflag [#allocation4], 1
    %23 = vsyncpa %s22, 0
    loop: start=0, step=1, limit=4
    $region2: #{mlap_forward_pallas.1} parent=1 // loop_pre_header
      _
    $region3: #{mlap_forward_pallas.1} parent=1 // loop_header
      %s25 = sphi 0, %s29
      %p26 = scmp.ge.s32.totalorder %s25, 4
      %s35 = sphi 0, %s37
      %s38 = sphi 0, %s35
      %s39 = sphi 0, %s38
      %s55 = sphi 0, %s39
      %s61 = sphi 0, %s63
      %s64 = sphi 0, %s61
      %s65 = sphi 0, %s64
      %s81 = sphi 0, %s65
      %s85 = sphi 0, %s85
      %s87 = sphi 0, %s85
      %s88 = sphi 0, %s87
      %s102 = sphi 0, %s88
      %s106 = sphi 0, %s106
      %s108 = sphi 0, %s106
      %s109 = sphi 0, %s108
      %s123 = sphi 0, %s109
      %s127 = sphi 0, %s127
      %s129 = sphi 0, %s127
      %s130 = sphi 0, %s129
      %s144 = sphi 0, %s130
      %s148 = sphi 0, %s148
      %s150 = sphi 0, %s148
      %s151 = sphi 0, %s150
      %s165 = sphi 0, %s151
      %s169 = sphi 0, %s169
      %s171 = sphi 0, %s169
      %s172 = sphi 0, %s171
      %s186 = sphi 0, %s172
      %s190 = sphi 0, %s190
      %s192 = sphi 0, %s190
      %s193 = sphi 0, %s192
      %s207 = sphi 0, %s193
      %s211 = sphi 0, %s211
      %s213 = sphi 0, %s211
      %s214 = sphi 0, %s213
      %s228 = sphi 0, %s214
      %s232 = sphi 0, %s232
      %s234 = sphi 0, %s232
      %s235 = sphi 0, %s234
      %s249 = sphi 0, %s235
      %s253 = sphi 0, %s253
      %s255 = sphi 0, %s253
      %s256 = sphi 0, %s255
      %s270 = sphi 0, %s256
      %s274 = sphi 0, %s274
      %s276 = sphi 0, %s274
      %s277 = sphi 0, %s276
      %s291 = sphi 0, %s277
      %s295 = sphi 0, %s295
      %s297 = sphi 0, %s295
      %s298 = sphi 0, %s297
      %s312 = sphi 0, %s298
      %s316 = sphi 0, %s316
      %s318 = sphi 0, %s316
      %s319 = sphi 0, %s318
      %s333 = sphi 0, %s319
      %s337 = sphi 0, %s337
      %s339 = sphi 0, %s337
      %s340 = sphi 0, %s339
      %s354 = sphi 0, %s340
      %s358 = sphi 0, %s358
      %s360 = sphi 0, %s358
      %s361 = sphi 0, %s360
      %s375 = sphi 0, %s361
      %s381 = sphi 0, %s383
      %s384 = sphi 0, %s381
      %s385 = sphi 0, %s384
      %s401 = sphi 0, %s385
    $region4: #{mlap_forward_pallas.1} parent=1 // loop_header_branch
      %28 = sbr.rel (%p26) target = $region8
    $region5: #{mlap_forward_pallas.1} parent=1 // loop_body
      %s30 = ssub.s32 %s25, 1
      %s31 = ssub.s32 %s25, 2
      %s32 = sadd.s32 %s25, 1
      %s33 = ssub.s32 %s25, %s32
      %p34 = scmp.eq.s32.totalorder %s33, 0
      %s36 = sadd.s32 %s35, 1
      %s37 = scalar_select %p34, %s35, %s36
      %p40 = pneg %p34
      %p41 = scmp.eq.s32.totalorder %s25, 1
      %p42 = por %p40, %p41
      %p43 = scmp.ne.s32.totalorder %s35, %s38
      %p44 = scmp.eq.s32.totalorder %s25, 0
      %p45 = por %p43, %p44
      %p46 = scmp.ne.s32.totalorder %s35, %s38
      %p47 = scmp.eq.s32.totalorder %s30, 1
      %p48 = por %p46, %p47
      %p49 = scmp.ne.s32.totalorder %s38, %s39
      %p50 = scmp.eq.s32.totalorder %s30, 0
      %p51 = por %p49, %p50
      %p52 = scmp.ne.s32.totalorder %s38, %s39
      %p53 = scmp.eq.s32.totalorder %s31, 1
      %p54 = por %p52, %p53
      %p56 = scmp.ne.s32.totalorder %s39, %s55
      %p57 = scmp.eq.s32.totalorder %s31, 0
      %p58 = por %p56, %p57
      %s59 = ssub.s32 %s25, %s32
      %p60 = scmp.eq.s32.totalorder %s59, 0
      %s62 = sadd.s32 %s61, 1
      %s63 = scalar_select %p60, %s61, %s62
      %p66 = pneg %p60
      %p67 = scmp.eq.s32.totalorder %s25, 1
      %p68 = por %p66, %p67
      %p69 = scmp.ne.s32.totalorder %s61, %s64
      %p70 = scmp.eq.s32.totalorder %s25, 0
      %p71 = por %p69, %p70
      %p72 = scmp.ne.s32.totalorder %s61, %s64
      %p73 = scmp.eq.s32.totalorder %s30, 1
      %p74 = por %p72, %p73
      %p75 = scmp.ne.s32.totalorder %s64, %s65
      %p76 = scmp.eq.s32.totalorder %s30, 0
      %p77 = por %p75, %p76
      %p78 = scmp.ne.s32.totalorder %s64, %s65
      %p79 = scmp.eq.s32.totalorder %s31, 1
      %p80 = por %p78, %p79
      %p82 = scmp.ne.s32.totalorder %s65, %s81
      %p83 = scmp.eq.s32.totalorder %s31, 0
      %p84 = por %p82, %p83
      %s86 = sadd.s32 %s85, 1
      %p89 = scmp.eq.s32.totalorder %s25, 1
      %p90 = scmp.ne.s32.totalorder %s85, %s87
      %p91 = scmp.eq.s32.totalorder %s25, 0
      %p92 = por %p90, %p91
      %p93 = scmp.ne.s32.totalorder %s85, %s87
      %p94 = scmp.eq.s32.totalorder %s30, 1
      %p95 = por %p93, %p94
      %p96 = scmp.ne.s32.totalorder %s87, %s88
      %p97 = scmp.eq.s32.totalorder %s30, 0
      %p98 = por %p96, %p97
      %p99 = scmp.ne.s32.totalorder %s87, %s88
      %p100 = scmp.eq.s32.totalorder %s31, 1
      %p101 = por %p99, %p100
      %p103 = scmp.ne.s32.totalorder %s88, %s102
      %p104 = scmp.eq.s32.totalorder %s31, 0
      %p105 = por %p103, %p104
      %s107 = sadd.s32 %s106, 1
      %p110 = scmp.eq.s32.totalorder %s25, 1
      %p111 = scmp.ne.s32.totalorder %s106, %s108
      %p112 = scmp.eq.s32.totalorder %s25, 0
      %p113 = por %p111, %p112
      %p114 = scmp.ne.s32.totalorder %s106, %s108
      %p115 = scmp.eq.s32.totalorder %s30, 1
      %p116 = por %p114, %p115
      %p117 = scmp.ne.s32.totalorder %s108, %s109
      %p118 = scmp.eq.s32.totalorder %s30, 0
      %p119 = por %p117, %p118
      %p120 = scmp.ne.s32.totalorder %s108, %s109
      %p121 = scmp.eq.s32.totalorder %s31, 1
      %p122 = por %p120, %p121
      %p124 = scmp.ne.s32.totalorder %s109, %s123
      %p125 = scmp.eq.s32.totalorder %s31, 0
      %p126 = por %p124, %p125
      %s128 = sadd.s32 %s127, 1
      %p131 = scmp.eq.s32.totalorder %s25, 1
      %p132 = scmp.ne.s32.totalorder %s127, %s129
      %p133 = scmp.eq.s32.totalorder %s25, 0
      %p134 = por %p132, %p133
      %p135 = scmp.ne.s32.totalorder %s127, %s129
      %p136 = scmp.eq.s32.totalorder %s30, 1
      %p137 = por %p135, %p136
      %p138 = scmp.ne.s32.totalorder %s129, %s130
      %p139 = scmp.eq.s32.totalorder %s30, 0
      %p140 = por %p138, %p139
      %p141 = scmp.ne.s32.totalorder %s129, %s130
      %p142 = scmp.eq.s32.totalorder %s31, 1
      %p143 = por %p141, %p142
      %p145 = scmp.ne.s32.totalorder %s130, %s144
      %p146 = scmp.eq.s32.totalorder %s31, 0
      %p147 = por %p145, %p146
      %s149 = sadd.s32 %s148, 1
      %p152 = scmp.eq.s32.totalorder %s25, 1
      %p153 = scmp.ne.s32.totalorder %s148, %s150
      %p154 = scmp.eq.s32.totalorder %s25, 0
      %p155 = por %p153, %p154
      %p156 = scmp.ne.s32.totalorder %s148, %s150
      %p157 = scmp.eq.s32.totalorder %s30, 1
      %p158 = por %p156, %p157
      %p159 = scmp.ne.s32.totalorder %s150, %s151
      %p160 = scmp.eq.s32.totalorder %s30, 0
      %p161 = por %p159, %p160
      %p162 = scmp.ne.s32.totalorder %s150, %s151
      %p163 = scmp.eq.s32.totalorder %s31, 1
      %p164 = por %p162, %p163
      %p166 = scmp.ne.s32.totalorder %s151, %s165
      %p167 = scmp.eq.s32.totalorder %s31, 0
      %p168 = por %p166, %p167
      %s170 = sadd.s32 %s169, 1
      %p173 = scmp.eq.s32.totalorder %s25, 1
      %p174 = scmp.ne.s32.totalorder %s169, %s171
      %p175 = scmp.eq.s32.totalorder %s25, 0
      %p176 = por %p174, %p175
      %p177 = scmp.ne.s32.totalorder %s169, %s171
      %p178 = scmp.eq.s32.totalorder %s30, 1
      %p179 = por %p177, %p178
      %p180 = scmp.ne.s32.totalorder %s171, %s172
      %p181 = scmp.eq.s32.totalorder %s30, 0
      %p182 = por %p180, %p181
      %p183 = scmp.ne.s32.totalorder %s171, %s172
      %p184 = scmp.eq.s32.totalorder %s31, 1
      %p185 = por %p183, %p184
      %p187 = scmp.ne.s32.totalorder %s172, %s186
      %p188 = scmp.eq.s32.totalorder %s31, 0
      %p189 = por %p187, %p188
      %s191 = sadd.s32 %s190, 1
      %p194 = scmp.eq.s32.totalorder %s25, 1
      %p195 = scmp.ne.s32.totalorder %s190, %s192
      %p196 = scmp.eq.s32.totalorder %s25, 0
      %p197 = por %p195, %p196
      %p198 = scmp.ne.s32.totalorder %s190, %s192
      %p199 = scmp.eq.s32.totalorder %s30, 1
      %p200 = por %p198, %p199
      %p201 = scmp.ne.s32.totalorder %s192, %s193
      %p202 = scmp.eq.s32.totalorder %s30, 0
      %p203 = por %p201, %p202
      %p204 = scmp.ne.s32.totalorder %s192, %s193
      %p205 = scmp.eq.s32.totalorder %s31, 1
      %p206 = por %p204, %p205
      %p208 = scmp.ne.s32.totalorder %s193, %s207
      %p209 = scmp.eq.s32.totalorder %s31, 0
      %p210 = por %p208, %p209
      %s212 = sadd.s32 %s211, 1
      %p215 = scmp.eq.s32.totalorder %s25, 1
      %p216 = scmp.ne.s32.totalorder %s211, %s213
      %p217 = scmp.eq.s32.totalorder %s25, 0
      %p218 = por %p216, %p217
      %p219 = scmp.ne.s32.totalorder %s211, %s213
      %p220 = scmp.eq.s32.totalorder %s30, 1
      %p221 = por %p219, %p220
      %p222 = scmp.ne.s32.totalorder %s213, %s214
      %p223 = scmp.eq.s32.totalorder %s30, 0
      %p224 = por %p222, %p223
      %p225 = scmp.ne.s32.totalorder %s213, %s214
      %p226 = scmp.eq.s32.totalorder %s31, 1
      %p227 = por %p225, %p226
      %p229 = scmp.ne.s32.totalorder %s214, %s228
      %p230 = scmp.eq.s32.totalorder %s31, 0
      %p231 = por %p229, %p230
      %s233 = sadd.s32 %s232, 1
      %p236 = scmp.eq.s32.totalorder %s25, 1
      %p237 = scmp.ne.s32.totalorder %s232, %s234
      %p238 = scmp.eq.s32.totalorder %s25, 0
      %p239 = por %p237, %p238
      %p240 = scmp.ne.s32.totalorder %s232, %s234
      %p241 = scmp.eq.s32.totalorder %s30, 1
      %p242 = por %p240, %p241
      %p243 = scmp.ne.s32.totalorder %s234, %s235
      %p244 = scmp.eq.s32.totalorder %s30, 0
      %p245 = por %p243, %p244
      %p246 = scmp.ne.s32.totalorder %s234, %s235
      %p247 = scmp.eq.s32.totalorder %s31, 1
      %p248 = por %p246, %p247
      %p250 = scmp.ne.s32.totalorder %s235, %s249
      %p251 = scmp.eq.s32.totalorder %s31, 0
      %p252 = por %p250, %p251
      %s254 = sadd.s32 %s253, 1
      %p257 = scmp.eq.s32.totalorder %s25, 1
      %p258 = scmp.ne.s32.totalorder %s253, %s255
      %p259 = scmp.eq.s32.totalorder %s25, 0
      %p260 = por %p258, %p259
      %p261 = scmp.ne.s32.totalorder %s253, %s255
      %p262 = scmp.eq.s32.totalorder %s30, 1
      %p263 = por %p261, %p262
      %p264 = scmp.ne.s32.totalorder %s255, %s256
      %p265 = scmp.eq.s32.totalorder %s30, 0
      %p266 = por %p264, %p265
      %p267 = scmp.ne.s32.totalorder %s255, %s256
      %p268 = scmp.eq.s32.totalorder %s31, 1
      %p269 = por %p267, %p268
      %p271 = scmp.ne.s32.totalorder %s256, %s270
      %p272 = scmp.eq.s32.totalorder %s31, 0
      %p273 = por %p271, %p272
      %s275 = sadd.s32 %s274, 1
      %p278 = scmp.eq.s32.totalorder %s25, 1
      %p279 = scmp.ne.s32.totalorder %s274, %s276
      %p280 = scmp.eq.s32.totalorder %s25, 0
      %p281 = por %p279, %p280
      %p282 = scmp.ne.s32.totalorder %s274, %s276
      %p283 = scmp.eq.s32.totalorder %s30, 1
      %p284 = por %p282, %p283
      %p285 = scmp.ne.s32.totalorder %s276, %s277
      %p286 = scmp.eq.s32.totalorder %s30, 0
      %p287 = por %p285, %p286
      %p288 = scmp.ne.s32.totalorder %s276, %s277
      %p289 = scmp.eq.s32.totalorder %s31, 1
      %p290 = por %p288, %p289
      %p292 = scmp.ne.s32.totalorder %s277, %s291
      %p293 = scmp.eq.s32.totalorder %s31, 0
      %p294 = por %p292, %p293
      %s296 = sadd.s32 %s295, 1
      %p299 = scmp.eq.s32.totalorder %s25, 1
      %p300 = scmp.ne.s32.totalorder %s295, %s297
      %p301 = scmp.eq.s32.totalorder %s25, 0
      %p302 = por %p300, %p301
      %p303 = scmp.ne.s32.totalorder %s295, %s297
      %p304 = scmp.eq.s32.totalorder %s30, 1
      %p305 = por %p303, %p304
      %p306 = scmp.ne.s32.totalorder %s297, %s298
      %p307 = scmp.eq.s32.totalorder %s30, 0
      %p308 = por %p306, %p307
      %p309 = scmp.ne.s32.totalorder %s297, %s298
      %p310 = scmp.eq.s32.totalorder %s31, 1
      %p311 = por %p309, %p310
      %p313 = scmp.ne.s32.totalorder %s298, %s312
      %p314 = scmp.eq.s32.totalorder %s31, 0
      %p315 = por %p313, %p314
      %s317 = sadd.s32 %s316, 1
      %p320 = scmp.eq.s32.totalorder %s25, 1
      %p321 = scmp.ne.s32.totalorder %s316, %s318
      %p322 = scmp.eq.s32.totalorder %s25, 0
      %p323 = por %p321, %p322
      %p324 = scmp.ne.s32.totalorder %s316, %s318
      %p325 = scmp.eq.s32.totalorder %s30, 1
      %p326 = por %p324, %p325
      %p327 = scmp.ne.s32.totalorder %s318, %s319
      %p328 = scmp.eq.s32.totalorder %s30, 0
      %p329 = por %p327, %p328
      %p330 = scmp.ne.s32.totalorder %s318, %s319
      %p331 = scmp.eq.s32.totalorder %s31, 1
      %p332 = por %p330, %p331
      %p334 = scmp.ne.s32.totalorder %s319, %s333
      %p335 = scmp.eq.s32.totalorder %s31, 0
      %p336 = por %p334, %p335
      %s338 = sadd.s32 %s337, 1
      %p341 = scmp.eq.s32.totalorder %s25, 1
      %p342 = scmp.ne.s32.totalorder %s337, %s339
      %p343 = scmp.eq.s32.totalorder %s25, 0
      %p344 = por %p342, %p343
      %p345 = scmp.ne.s32.totalorder %s337, %s339
      %p346 = scmp.eq.s32.totalorder %s30, 1
      %p347 = por %p345, %p346
      %p348 = scmp.ne.s32.totalorder %s339, %s340
      %p349 = scmp.eq.s32.totalorder %s30, 0
      %p350 = por %p348, %p349
      %p351 = scmp.ne.s32.totalorder %s339, %s340
      %p352 = scmp.eq.s32.totalorder %s31, 1
      %p353 = por %p351, %p352
      %p355 = scmp.ne.s32.totalorder %s340, %s354
      %p356 = scmp.eq.s32.totalorder %s31, 0
      %p357 = por %p355, %p356
      %s359 = sadd.s32 %s358, 1
      %p362 = scmp.eq.s32.totalorder %s25, 1
      %p363 = scmp.ne.s32.totalorder %s358, %s360
      %p364 = scmp.eq.s32.totalorder %s25, 0
      %p365 = por %p363, %p364
      %p366 = scmp.ne.s32.totalorder %s358, %s360
      %p367 = scmp.eq.s32.totalorder %s30, 1
      %p368 = por %p366, %p367
      %p369 = scmp.ne.s32.totalorder %s360, %s361
      %p370 = scmp.eq.s32.totalorder %s30, 0
      %p371 = por %p369, %p370
      %p372 = scmp.ne.s32.totalorder %s360, %s361
      %p373 = scmp.eq.s32.totalorder %s31, 1
      %p374 = por %p372, %p373
      %p376 = scmp.ne.s32.totalorder %s361, %s375
      %p377 = scmp.eq.s32.totalorder %s31, 0
      %p378 = por %p376, %p377
      %s379 = ssub.s32 %s25, %s32
      %p380 = scmp.eq.s32.totalorder %s379, 0
      %s382 = sadd.s32 %s381, 1
      %s383 = scalar_select %p380, %s381, %s382
      %p386 = pneg %p380
      %p387 = scmp.eq.s32.totalorder %s25, 1
      %p388 = por %p386, %p387
      %p389 = scmp.ne.s32.totalorder %s381, %s384
      %p390 = scmp.eq.s32.totalorder %s25, 0
      %p391 = por %p389, %p390
      %p392 = scmp.ne.s32.totalorder %s381, %s384
      %p393 = scmp.eq.s32.totalorder %s30, 1
      %p394 = por %p392, %p393
      %p395 = scmp.ne.s32.totalorder %s384, %s385
      %p396 = scmp.eq.s32.totalorder %s30, 0
      %p397 = por %p395, %p396
      %p398 = scmp.ne.s32.totalorder %s384, %s385
      %p399 = scmp.eq.s32.totalorder %s31, 1
      %p400 = por %p398, %p399
      %p402 = scmp.ne.s32.totalorder %s385, %s401
      %p403 = scmp.eq.s32.totalorder %s31, 0
      %p404 = por %p402, %p403
      %p405 = scmp.le.s32.totalorder 1, %s25
      %p406 = scmp.lt.s32.totalorder %s25, 3
      %p407 = pnand %p405, %p406
      %p408 = pneg %p407
      // Predicated region
      $region9: #{mlap_forward_pallas.1} parent=5 // pred_check
        _
      $region10: #{mlap_forward_pallas.1} parent=5 // pred_check_branch
        %410 = sbr.rel (%p407) target = $region12
      $region11: #{mlap_forward_pallas.1} parent=5 // pred_region
        %s411 = ssub.s32 %s25, 1
        // Predicated region
        $region13: #{mlap_forward_pallas.1} parent=11 // pred_check
          %p412 = pneg %p98
        $region14: #{mlap_forward_pallas.1} parent=11 // pred_check_branch
          %414 = sbr.rel (%p412) target = $region16
        $region15: #{mlap_forward_pallas.1} parent=11 // pred_region
          _
        $region16: #{mlap_forward_pallas.1} parent=11 // pred_fallthru
          _
        // Predicated region
        $region17: #{mlap_forward_pallas.1} parent=11 // pred_check
          %p415 = pneg %p119
        $region18: #{mlap_forward_pallas.1} parent=11 // pred_check_branch
          %417 = sbr.rel (%p415) target = $region20
        $region19: #{mlap_forward_pallas.1} parent=11 // pred_region
          _
        $region20: #{mlap_forward_pallas.1} parent=11 // pred_fallthru
          _
        // Predicated region
        $region21: #{mlap_forward_pallas.1} parent=11 // pred_check
          %p418 = pneg %p140
        $region22: #{mlap_forward_pallas.1} parent=11 // pred_check_branch
          %420 = sbr.rel (%p418) target = $region24
        $region23: #{mlap_forward_pallas.1} parent=11 // pred_region
          _
        $region24: #{mlap_forward_pallas.1} parent=11 // pred_fallthru
          _
        // Predicated region
        $region25: #{mlap_forward_pallas.1} parent=11 // pred_check
          %p421 = pneg %p161
        $region26: #{mlap_forward_pallas.1} parent=11 // pred_check_branch
          %423 = sbr.rel (%p421) target = $region28
        $region27: #{mlap_forward_pallas.1} parent=11 // pred_region
          _
        $region28: #{mlap_forward_pallas.1} parent=11 // pred_fallthru
          _
        // Predicated region
        $region29: #{mlap_forward_pallas.1} parent=11 // pred_check
          %p424 = pneg %p182
        $region30: #{mlap_forward_pallas.1} parent=11 // pred_check_branch
          %426 = sbr.rel (%p424) target = $region32
        $region31: #{mlap_forward_pallas.1} parent=11 // pred_region
          _
        $region32: #{mlap_forward_pallas.1} parent=11 // pred_fallthru
          _
        // Predicated region
        $region33: #{mlap_forward_pallas.1} parent=11 // pred_check
          %p427 = pneg %p203
        $region34: #{mlap_forward_pallas.1} parent=11 // pred_check_branch
          %429 = sbr.rel (%p427) target = $region36
        $region35: #{mlap_forward_pallas.1} parent=11 // pred_region
          _
        $region36: #{mlap_forward_pallas.1} parent=11 // pred_fallthru
          _
        // Predicated region
        $region37: #{mlap_forward_pallas.1} parent=11 // pred_check
          %p430 = pneg %p224
        $region38: #{mlap_forward_pallas.1} parent=11 // pred_check_branch
          %432 = sbr.rel (%p430) target = $region40
        $region39: #{mlap_forward_pallas.1} parent=11 // pred_region
          _
        $region40: #{mlap_forward_pallas.1} parent=11 // pred_fallthru
          _
        // Predicated region
        $region41: #{mlap_forward_pallas.1} parent=11 // pred_check
          %p433 = pneg %p245
        $region42: #{mlap_forward_pallas.1} parent=11 // pred_check_branch
          %435 = sbr.rel (%p433) target = $region44
        $region43: #{mlap_forward_pallas.1} parent=11 // pred_region
          _
        $region44: #{mlap_forward_pallas.1} parent=11 // pred_fallthru
          _
        // Predicated region
        $region45: #{mlap_forward_pallas.1} parent=11 // pred_check
          %p436 = pneg %p266
        $region46: #{mlap_forward_pallas.1} parent=11 // pred_check_branch
          %438 = sbr.rel (%p436) target = $region48
        $region47: #{mlap_forward_pallas.1} parent=11 // pred_region
          _
        $region48: #{mlap_forward_pallas.1} parent=11 // pred_fallthru
          _
        // Predicated region
        $region49: #{mlap_forward_pallas.1} parent=11 // pred_check
          %p439 = pneg %p287
        $region50: #{mlap_forward_pallas.1} parent=11 // pred_check_branch
          %441 = sbr.rel (%p439) target = $region52
        $region51: #{mlap_forward_pallas.1} parent=11 // pred_region
          _
        $region52: #{mlap_forward_pallas.1} parent=11 // pred_fallthru
          _
        // Predicated region
        $region53: #{mlap_forward_pallas.1} parent=11 // pred_check
          %p442 = pneg %p308
        $region54: #{mlap_forward_pallas.1} parent=11 // pred_check_branch
          %444 = sbr.rel (%p442) target = $region56
        $region55: #{mlap_forward_pallas.1} parent=11 // pred_region
          _
        $region56: #{mlap_forward_pallas.1} parent=11 // pred_fallthru
          _
        // Predicated region
        $region57: #{mlap_forward_pallas.1} parent=11 // pred_check
          %p445 = pneg %p329
        $region58: #{mlap_forward_pallas.1} parent=11 // pred_check_branch
          %447 = sbr.rel (%p445) target = $region60
        $region59: #{mlap_forward_pallas.1} parent=11 // pred_region
          _
        $region60: #{mlap_forward_pallas.1} parent=11 // pred_fallthru
          _
        // Predicated region
        $region61: #{mlap_forward_pallas.1} parent=11 // pred_check
          %p448 = pneg %p350
        $region62: #{mlap_forward_pallas.1} parent=11 // pred_check_branch
          %450 = sbr.rel (%p448) target = $region64
        $region63: #{mlap_forward_pallas.1} parent=11 // pred_region
          _
        $region64: #{mlap_forward_pallas.1} parent=11 // pred_fallthru
          _
        // Predicated region
        $region65: #{mlap_forward_pallas.1} parent=11 // pred_check
          %p451 = pneg %p371
        $region66: #{mlap_forward_pallas.1} parent=11 // pred_check_branch
          %453 = sbr.rel (%p451) target = $region68
        $region67: #{mlap_forward_pallas.1} parent=11 // pred_region
          _
        $region68: #{mlap_forward_pallas.1} parent=11 // pred_fallthru
          _
      $region12: #{mlap_forward_pallas.1} parent=5 // pred_fallthru
        _
      %p454 = scmp.lt.s32.totalorder %s25, 2
      // Predicated region
      $region69: #{mlap_forward_pallas.1} parent=5 // pred_check
        %p455 = pneg %p454
      $region70: #{mlap_forward_pallas.1} parent=5 // pred_check_branch
        %457 = sbr.rel (%p455) target = $region72
      $region71: #{mlap_forward_pallas.1} parent=5 // pred_region
        // Predicated region
        $region73: #{mlap_forward_pallas.1} parent=71 // pred_check
          %p458 = pneg %p45
        $region74: #{mlap_forward_pallas.1} parent=71 // pred_check_branch
          %460 = sbr.rel (%p458) target = $region76
        $region75: #{mlap_forward_pallas.1} parent=71 // pred_region
          %p461 = scmp.lt.s32.totalorder %s25, 1
          %s462 = scalar_select %p461, %s25, 1
          %s463 = smul.addr %s462, 8
          %s464 = scalar_lea.vmem %s0, %s463
        $region76: #{mlap_forward_pallas.1} parent=71 // pred_fallthru
          _
        // Predicated region
        $region77: #{mlap_forward_pallas.1} parent=71 // pred_check
          %p465 = pneg %p71
        $region78: #{mlap_forward_pallas.1} parent=71 // pred_check_branch
          %467 = sbr.rel (%p465) target = $region80
        $region79: #{mlap_forward_pallas.1} parent=71 // pred_region
          %p468 = scmp.lt.s32.totalorder %s25, 1
          %s469 = scalar_select %p468, %s25, 1
          %s470 = smul.addr %s469, 8
          %s471 = scalar_lea.vmem %s1, %s470
        $region80: #{mlap_forward_pallas.1} parent=71 // pred_fallthru
          _
      $region72: #{mlap_forward_pallas.1} parent=5 // pred_fallthru
        _
      %p472 = scmp.le.s32.totalorder 1, %s25
      %p473 = scmp.lt.s32.totalorder %s25, 3
      %p474 = pnand %p472, %p473
      %p475 = pneg %p474
      // Predicated region
      $region81: #{mlap_forward_pallas.1} parent=5 // pred_check
        _
      $region82: #{mlap_forward_pallas.1} parent=5 // pred_check_branch
        %477 = sbr.rel (%p474) target = $region84
      $region83: #{mlap_forward_pallas.1} parent=5 // pred_region
        %s478 = ssub.s32 %s25, 1
        %p479 = scmp.lt.s32.totalorder %s30, 1
        %s480 = scalar_select %p479, %s30, 1
        %s481 = smul.addr %s480, 8
        %s482 = scalar_lea.vmem %s0, %s481
        %p483 = pneg %p51
        %p484 = pneg %p48
        %p485 = scmp.lt.s32.totalorder %s30, 1
        %s486 = scalar_select %p485, %s30, 1
        %s487 = smul.addr %s486, 8
        %s488 = scalar_lea.vmem %s1, %s487
        %p489 = pneg %p77
        %p490 = pneg %p74
        %p491 = pneg %p98
        %p492 = pneg %p95
        %p493 = pneg %p119
        %p494 = pneg %p116
        %p495 = pneg %p140
        %p496 = pneg %p137
        %p497 = pneg %p161
        %p498 = pneg %p158
        %p499 = pneg %p182
        %p500 = pneg %p179
        %p501 = pneg %p203
        %p502 = pneg %p200
        %p503 = pneg %p224
        %p504 = pneg %p221
        %p505 = pneg %p245
        %p506 = pneg %p242
        %p507 = pneg %p266
        %p508 = pneg %p263
        %p509 = pneg %p287
        %p510 = pneg %p284
        %p511 = pneg %p308
        %p512 = pneg %p305
        %p513 = pneg %p329
        %p514 = pneg %p326
        %p515 = pneg %p350
        %p516 = pneg %p347
        %p517 = pneg %p371
        %p518 = pneg %p368
        %p519 = pneg %p397
        %p520 = pneg %p394
        %s521 = sand.u32 %s384, 1
        %s522 = scalar_lea.sflag [#allocation4], %s521
        %s523 = sand.u32 %s384, 1
        %s524 = scalar_lea.vmem [#allocation3], %s523
        %p525 = scmp.lt.s32.totalorder %s30, 1
        %s526 = scalar_select %p525, %s30, 1
        %s527 = smul.addr %s526, 8
        %s528 = scalar_lea.vmem %s0, %s527
        %p529 = scmp.lt.s32.totalorder %s30, 1
        %s530 = scalar_select %p529, %s30, 1
        %s531 = smul.addr %s530, 8
        %s532 = scalar_lea.vmem %s1, %s531
        %v534 = vld [vmem:[%s528] sm:$0xff]
        %v535 = vld [vmem:[%s532] sm:$0xff]
        %vm536 = vcmp.gt.f32.partialorder %v535, 0.0
        %v537 = vld [vmem:[%s2] sm:$0x1]
        %v539 = vperm.slane %v537, 0
        %v541 = vadd.f32 %v534, %v539
        %v542 = vpack.c.bf16 %v541, %v541
        %v543 = vld [vmem:[%s3] sm:$0xf]
        %v544 = vld [vmem:[%s3 + $0x4] sm:$0xf]
        %v545 = vld [vmem:[%s3 + $0x8] sm:$0xf]
        %v546 = vld [vmem:[%s3 + $0xc] sm:$0xf]
        %v551 = vunpack.c.l.b16 %v543
        %v552 = vunpack.c.l.b16 %v544
        %v553 = vunpack.c.l.b16 %v545
        %v554 = vunpack.c.l.b16 %v546
        %v555 = vpack.c.b16 %v552, %v551
        %v556 = vpack.c.b16 %v554, %v553
        %vm559 = vcmask 261120
        %v561 = vsel %vm559, %v542, 0
        %563 = vmatpush.bf16.msra.mxu0 0
        %564 = vmatpush.bf16.msra.mxu0 0
        %565 = vmatpush.bf16.msra.mxu0 0
        %566 = vmatpush.bf16.msra.mxu0 0
        %567 = vmatpush.bf16.msra.mxu0 0
        %568 = vmatpush.bf16.msra.mxu0 0
        %569 = vmatpush.bf16.msra.mxu0 %v556
        %570 = vmatpush.bf16.msra.mxu0 %v555
        %571 = vmatmul.bf16.gmra.mxu0 %v561
        %v572 = vpop.f32.mrf.mxu0
        %v573 = vadd.f32 0.0, %v572
        %v574 = vpop.f32.mrf.mxu0
        %575 = vdwg.mxu0
        %v576 = vpack.c.bf16 %v573, %v573
        %v577 = vld [vmem:[%s4] sm:$0xf]
        %v578 = vld [vmem:[%s4 + $0x4] sm:$0xf]
        %v579 = vld [vmem:[%s4 + $0x8] sm:$0xf]
        %v580 = vld [vmem:[%s4 + $0xc] sm:$0xf]
        %v581 = vld [vmem:[%s4 + $0x10] sm:$0xf]
        %v582 = vld [vmem:[%s4 + $0x14] sm:$0xf]
        %v583 = vld [vmem:[%s4 + $0x18] sm:$0xf]
        %v584 = vld [vmem:[%s4 + $0x1c] sm:$0xf]
        %v585 = vld [vmem:[%s4 + $0x20] sm:$0xf]
        %v586 = vld [vmem:[%s4 + $0x24] sm:$0xf]
        %v587 = vld [vmem:[%s4 + $0x28] sm:$0xf]
        %v588 = vld [vmem:[%s4 + $0x2c] sm:$0xf]
        %v601 = vunpack.c.l.b16 %v577
        %v602 = vunpack.c.l.b16 %v578
        %v603 = vunpack.c.l.b16 %v579
        %v604 = vunpack.c.l.b16 %v580
        %v605 = vunpack.c.l.b16 %v581
        %v606 = vunpack.c.l.b16 %v582
        %v607 = vunpack.c.l.b16 %v583
        %v608 = vunpack.c.l.b16 %v584
        %v609 = vunpack.c.l.b16 %v585
        %v610 = vunpack.c.l.b16 %v586
        %v611 = vunpack.c.l.b16 %v587
        %v612 = vunpack.c.l.b16 %v588
        %v613 = vpack.c.b16 %v602, %v601
        %v614 = vpack.c.b16 %v604, %v603
        %v615 = vpack.c.b16 %v606, %v605
        %v616 = vpack.c.b16 %v608, %v607
        %v617 = vpack.c.b16 %v610, %v609
        %v618 = vpack.c.b16 %v612, %v611
        %vm625 = vcmask 785408
        %v627 = vsel %vm625, %v576, 0
        %629 = vmatpush.bf16.msra.mxu0 0
        %630 = vmatpush.bf16.msra.mxu0 0
        %631 = vmatpush.bf16.msra.mxu0 %v618
        %632 = vmatpush.bf16.msra.mxu0 %v617
        %633 = vmatpush.bf16.msra.mxu0 %v616
        %634 = vmatpush.bf16.msra.mxu0 %v615
        %635 = vmatpush.bf16.msra.mxu0 %v614
        %636 = vmatpush.bf16.msra.mxu0 %v613
        %637 = vmatmul.bf16.gmra.mxu0 %v627
        %v638 = vpop.f32.mrf.mxu0
        %v639 = vadd.f32 0.0, %v638
        %v640 = vpop.f32.mrf.mxu0
        %641 = vdwg.mxu0
        %v642 = vld [vmem:[%s5] sm:$0x3]
        %v644 = vsel %vm625, %v642, 0
        %646 = vmatpush.bf16.xpose.msra.mxu0 0
        %647 = vmatpush.bf16.xpose.msra.mxu0 0
        %648 = vmatpush.bf16.xpose.msra.mxu0 0
        %649 = vmatpush.bf16.xpose.msra.mxu0 0
        %650 = vmatpush.bf16.xpose.msra.mxu0 0
        %651 = vmatpush.bf16.xpose.msra.mxu0 0
        %652 = vmatpush.bf16.xpose.msra.mxu0 0
        %653 = vmatpush.bf16.xpose.msra.mxu0 %v627
        %654 = vmatmul.bf16.gmra.mxu0 %v644
        %v655 = vpop.f32.mrf.mxu0
        %v656 = vadd.f32 0.0, %v655
        %v657 = vpop.f32.mrf.mxu0
        %658 = vdwg.mxu0
        %660 = vset.pattern.permute.xlu0 0
        %661 = vperm.xlu0 %660, %v639
        %v662 = vpop.permute.xlu0 %661
        %v664 = vperm.slane %v656, 0
        %v665 = vadd.f32 %v662, %v664
        %vm666 = vcmp.ge.f32.partialorder %v665, 0.0
        %v667 = vmul.f32 %v665, 0.2
        %v668 = vsel %vm666, %v665, %v667
        %v669 = vsel %vm536, %v668, -1e+30
        %vm670 = vcmask 64512
        %v671 = vsel %vm670, %v669, -inf
        %v672 = vrot.slane %v671, 4
        %v673 = vmax.f32 %v671, %v672
        %v674 = vrot.slane %v673, 2
        %v675 = vmax.f32 %v673, %v674
        %v676 = vrot.slane %v675, 1
        %v677 = vmax.f32 %v675, %v676
        %v678 = vsub.f32 %v669, %v677
        %v679 = vmul.f32 %v678, 1.442695
        %v680 = vpow.pop %v679
        %v681 = vsel %vm670, %v680, 0.0
        %v682 = vrot.slane %v681, 4
        %v683 = vadd.f32 %v681, %v682
        %v684 = vrot.slane %v683, 2
        %v685 = vadd.f32 %v683, %v684
        %v686 = vrot.slane %v685, 1
        %v687 = vadd.f32 %v685, %v686
        %v688 = vrcp.pop %v687
        %v689 = vmul.f32 %v687, %v688
        %v690 = vsub.f32 1.0, %v689
        %v691 = vmul.f32 %v688, %v690
        %v692 = vadd.f32 %v688, %v691
        %vm693 = vweird.f32 %v687
        %vm694 = vweird.f32 %v688
        %vm695 = vmor %vm693, %vm694
        %v696 = vsel %vm695, %v688, %v692
        %v697 = vand.u32 2147483647, %v687
        %vm698 = vcmp.eq.f32.partialorder %v697, 8.507059e+37
        %v699 = vand.u32 %v687, 2147483648
        %v700 = vor.u32 1.1754944e-38, %v699
        %v701 = vsel %vm698, %v700, %v696
        %v702 = vmul.f32 %v680, %v701
        %v703 = vpack.c.bf16 %v702, %v702
        %704 = vxpose.xlu0.c.b16.start [1/8] %v703, 128
        %705 = vxpose.xlu0.c.b16.cont [2/8] 0, 128
        %706 = vxpose.xlu0.c.b16.cont [3/8] 0, 128
        %707 = vxpose.xlu0.c.b16.cont [4/8] 0, 128
        %708 = vxpose.xlu0.c.b16.cont [5/8] 0, 128
        %709 = vxpose.xlu0.c.b16.cont [6/8] 0, 128
        %710 = vxpose.xlu0.c.b16.cont [7/8] 0, 128
        %711 = vxpose.xlu0.c.b16.end [8/8] 0, 128
        %v712 = vpop.trf.xlu0
        %v713 = vpop.trf.xlu0
        %v714 = vpop.trf.xlu0
        %v715 = vpop.trf.xlu0
        %v716 = vpop.trf.xlu0
        %v717 = vpop.trf.xlu0
        %v718 = vpop.trf.xlu0
        %v719 = vpop.trf.xlu0
        %v721 = vsel %vm670, %v712, 0
        %vm723 = vcmask 1043456
        %v724 = vsel %vm723, %v576, 0
        %726 = vmatpush.bf16.msra.mxu0 0
        %727 = vmatpush.bf16.msra.mxu0 0
        %728 = vmatpush.bf16.msra.mxu0 0
        %729 = vmatpush.bf16.msra.mxu0 0
        %730 = vmatpush.bf16.msra.mxu0 0
        %731 = vmatpush.bf16.msra.mxu0 0
        %732 = vmatpush.bf16.msra.mxu0 0
        %733 = vmatpush.bf16.msra.mxu0 %v724
        %734 = vmatmul.bf16.gmra.mxu0 %v721
        %v735 = vpop.f32.mrf.mxu0
        %v736 = vadd.f32 0.0, %v735
        %v737 = vpop.f32.mrf.mxu0
        %738 = vdwg.mxu0
        %739 = vst.msk [vmem:[#allocation2] sm:$0xff] %vm559, %v736
        %740 = vset.pattern.permute.xlu0 1
        %741 = vperm.xlu0 %740, %v639
        %v742 = vpop.permute.xlu0 %741
        %v744 = vperm.slane %v656, 1
        %v745 = vadd.f32 %v742, %v744
        %vm746 = vcmp.ge.f32.partialorder %v745, 0.0
        %v747 = vmul.f32 %v745, 0.2
        %v748 = vsel %vm746, %v745, %v747
        %v749 = vsel %vm536, %v748, -1e+30
        %v750 = vsel %vm670, %v749, -inf
        %v751 = vrot.slane %v750, 4
        %v752 = vmax.f32 %v750, %v751
        %v753 = vrot.slane %v752, 2
        %v754 = vmax.f32 %v752, %v753
        %v755 = vrot.slane %v754, 1
        %v756 = vmax.f32 %v754, %v755
        %v757 = vsub.f32 %v749, %v756
        %v758 = vmul.f32 %v757, 1.442695
        %v759 = vpow.pop %v758
        %v760 = vsel %vm670, %v759, 0.0
        %v761 = vrot.slane %v760, 4
        %v762 = vadd.f32 %v760, %v761
        %v763 = vrot.slane %v762, 2
        %v764 = vadd.f32 %v762, %v763
        %v765 = vrot.slane %v764, 1
        %v766 = vadd.f32 %v764, %v765
        %v767 = vrcp.pop %v766
        %v768 = vmul.f32 %v766, %v767
        %v769 = vsub.f32 1.0, %v768
        %v770 = vmul.f32 %v767, %v769
        %v771 = vadd.f32 %v767, %v770
        %vm772 = vweird.f32 %v766
        %vm773 = vweird.f32 %v767
        %vm774 = vmor %vm772, %vm773
        %v775 = vsel %vm774, %v767, %v771
        %v776 = vand.u32 2147483647, %v766
        %vm777 = vcmp.eq.f32.partialorder %v776, 8.507059e+37
        %v778 = vand.u32 %v766, 2147483648
        %v779 = vor.u32 1.1754944e-38, %v778
        %v780 = vsel %vm777, %v779, %v775
        %v781 = vmul.f32 %v759, %v780
        %v782 = vpack.c.bf16 %v781, %v781
        %783 = vxpose.xlu0.c.b16.start [1/8] %v782, 128
        %784 = vxpose.xlu0.c.b16.cont [2/8] 0, 128
        %785 = vxpose.xlu0.c.b16.cont [3/8] 0, 128
        %786 = vxpose.xlu0.c.b16.cont [4/8] 0, 128
        %787 = vxpose.xlu0.c.b16.cont [5/8] 0, 128
        %788 = vxpose.xlu0.c.b16.cont [6/8] 0, 128
        %789 = vxpose.xlu0.c.b16.cont [7/8] 0, 128
        %790 = vxpose.xlu0.c.b16.end [8/8] 0, 128
        %v791 = vpop.trf.xlu0
        %v792 = vpop.trf.xlu0
        %v793 = vpop.trf.xlu0
        %v794 = vpop.trf.xlu0
        %v795 = vpop.trf.xlu0
        %v796 = vpop.trf.xlu0
        %v797 = vpop.trf.xlu0
        %v798 = vpop.trf.xlu0
        %v800 = vunpack.c.l.b16 %v576
        %v801 = vpack.c.b16 %v800, %v800
        %802 = vrot.lane.b32.xlu0 %v801, 96
        %v803 = vpop.permute.xlu0 %802
        %v805 = vsel %vm670, %v791, 0
        %v808 = vsel %vm723, %v803, 0
        %810 = vmatpush.bf16.msra.mxu0 0
        %811 = vmatpush.bf16.msra.mxu0 0
        %812 = vmatpush.bf16.msra.mxu0 0
        %813 = vmatpush.bf16.msra.mxu0 0
        %814 = vmatpush.bf16.msra.mxu0 0
        %815 = vmatpush.bf16.msra.mxu0 0
        %816 = vmatpush.bf16.msra.mxu0 0
        %817 = vmatpush.bf16.msra.mxu0 %v808
        %818 = vmatmul.bf16.gmra.mxu0 %v805
        %v819 = vpop.f32.mrf.mxu0
        %v820 = vadd.f32 0.0, %v819
        %v821 = vpop.f32.mrf.mxu0
        %822 = vdwg.mxu0
        %824 = vrot.lane.b32.xlu0 %v820, 32
        %v825 = vpop.permute.xlu0 %824
        %vm827 = vcmask 523520
        %828 = vst.msk [vmem:[#allocation2] sm:$0xff] %vm827, %v825
        %829 = vset.pattern.permute.xlu0 2
        %830 = vperm.xlu0 %829, %v639
        %v831 = vpop.permute.xlu0 %830
        %v833 = vperm.slane %v656, 2
        %v834 = vadd.f32 %v831, %v833
        %vm835 = vcmp.ge.f32.partialorder %v834, 0.0
        %v836 = vmul.f32 %v834, 0.2
        %v837 = vsel %vm835, %v834, %v836
        %v838 = vsel %vm536, %v837, -1e+30
        %v839 = vsel %vm670, %v838, -inf
        %v840 = vrot.slane %v839, 4
        %v841 = vmax.f32 %v839, %v840
        %v842 = vrot.slane %v841, 2
        %v843 = vmax.f32 %v841, %v842
        %v844 = vrot.slane %v843, 1
        %v845 = vmax.f32 %v843, %v844
        %v846 = vsub.f32 %v838, %v845
        %v847 = vmul.f32 %v846, 1.442695
        %v848 = vpow.pop %v847
        %v849 = vsel %vm670, %v848, 0.0
        %v850 = vrot.slane %v849, 4
        %v851 = vadd.f32 %v849, %v850
        %v852 = vrot.slane %v851, 2
        %v853 = vadd.f32 %v851, %v852
        %v854 = vrot.slane %v853, 1
        %v855 = vadd.f32 %v853, %v854
        %v856 = vrcp.pop %v855
        %v857 = vmul.f32 %v855, %v856
        %v858 = vsub.f32 1.0, %v857
        %v859 = vmul.f32 %v856, %v858
        %v860 = vadd.f32 %v856, %v859
        %vm861 = vweird.f32 %v855
        %vm862 = vweird.f32 %v856
        %vm863 = vmor %vm861, %vm862
        %v864 = vsel %vm863, %v856, %v860
        %v865 = vand.u32 2147483647, %v855
        %vm866 = vcmp.eq.f32.partialorder %v865, 8.507059e+37
        %v867 = vand.u32 %v855, 2147483648
        %v868 = vor.u32 1.1754944e-38, %v867
        %v869 = vsel %vm866, %v868, %v864
        %v870 = vmul.f32 %v848, %v869
        %v871 = vpack.c.bf16 %v870, %v870
        %872 = vxpose.xlu0.c.b16.start [1/8] %v871, 128
        %873 = vxpose.xlu0.c.b16.cont [2/8] 0, 128
        %874 = vxpose.xlu0.c.b16.cont [3/8] 0, 128
        %875 = vxpose.xlu0.c.b16.cont [4/8] 0, 128
        %876 = vxpose.xlu0.c.b16.cont [5/8] 0, 128
        %877 = vxpose.xlu0.c.b16.cont [6/8] 0, 128
        %878 = vxpose.xlu0.c.b16.cont [7/8] 0, 128
        %879 = vxpose.xlu0.c.b16.end [8/8] 0, 128
        %v880 = vpop.trf.xlu0
        %v881 = vpop.trf.xlu0
        %v882 = vpop.trf.xlu0
        %v883 = vpop.trf.xlu0
        %v884 = vpop.trf.xlu0
        %v885 = vpop.trf.xlu0
        %v886 = vpop.trf.xlu0
        %v887 = vpop.trf.xlu0
        %888 = vrot.lane.b32.xlu0 %v801, 64
        %v889 = vpop.permute.xlu0 %888
        %v891 = vsel %vm670, %v880, 0
        %v894 = vsel %vm723, %v889, 0
        %896 = vmatpush.bf16.msra.mxu0 0
        %897 = vmatpush.bf16.msra.mxu0 0
        %898 = vmatpush.bf16.msra.mxu0 0
        %899 = vmatpush.bf16.msra.mxu0 0
        %900 = vmatpush.bf16.msra.mxu0 0
        %901 = vmatpush.bf16.msra.mxu0 0
        %902 = vmatpush.bf16.msra.mxu0 0
        %903 = vmatpush.bf16.msra.mxu0 %v894
        %904 = vmatmul.bf16.gmra.mxu0 %v891
        %v905 = vpop.f32.mrf.mxu0
        %v906 = vadd.f32 0.0, %v905
        %v907 = vpop.f32.mrf.mxu0
        %908 = vdwg.mxu0
        %910 = vrot.lane.b32.xlu0 %v906, 64
        %v911 = vpop.permute.xlu0 %910
        %vm913 = vcmask 785920
        %914 = vst.msk [vmem:[#allocation2] sm:$0xff] %vm913, %v911
        %v915 = vld [vmem:[#allocation2] sm:$0xff]
        %v916 = vpack.c.bf16 %v915, %v915
        %v917 = vld [vmem:[%s6] sm:$0xf]
        %v918 = vld [vmem:[%s6 + $0x4] sm:$0xf]
        %v919 = vld [vmem:[%s6 + $0x8] sm:$0xf]
        %v920 = vld [vmem:[%s6 + $0xc] sm:$0xf]
        %v921 = vld [vmem:[%s6 + $0x10] sm:$0xf]
        %v922 = vld [vmem:[%s6 + $0x14] sm:$0xf]
        %v923 = vld [vmem:[%s6 + $0x18] sm:$0xf]
        %v924 = vld [vmem:[%s6 + $0x1c] sm:$0xf]
        %v925 = vld [vmem:[%s6 + $0x20] sm:$0xf]
        %v926 = vld [vmem:[%s6 + $0x24] sm:$0xf]
        %v927 = vld [vmem:[%s6 + $0x28] sm:$0xf]
        %v928 = vld [vmem:[%s6 + $0x2c] sm:$0xf]
        %v929 = vld [vmem:[%s7] sm:$0x1]
        %v931 = vperm.slane %v929, 0
        %v945 = vunpack.c.l.b16 %v917
        %v946 = vunpack.c.l.b16 %v918
        %v947 = vunpack.c.l.b16 %v919
        %v948 = vunpack.c.l.b16 %v920
        %v949 = vunpack.c.l.b16 %v921
        %v950 = vunpack.c.l.b16 %v922
        %v951 = vunpack.c.l.b16 %v923
        %v952 = vunpack.c.l.b16 %v924
        %v953 = vunpack.c.l.b16 %v925
        %v954 = vunpack.c.l.b16 %v926
        %v955 = vunpack.c.l.b16 %v927
        %v956 = vunpack.c.l.b16 %v928
        %v957 = vpack.c.b16 %v946, %v945
        %v958 = vpack.c.b16 %v948, %v947
        %v959 = vpack.c.b16 %v950, %v949
        %v960 = vpack.c.b16 %v952, %v951
        %v961 = vpack.c.b16 %v954, %v953
        %v962 = vpack.c.b16 %v956, %v955
        %v970 = vsel %vm625, %v916, 0
        %972 = vmatpush.bf16.msra.mxu0 0
        %973 = vmatpush.bf16.msra.mxu0 0
        %974 = vmatpush.bf16.msra.mxu0 %v962
        %975 = vmatpush.bf16.msra.mxu0 %v961
        %976 = vmatpush.bf16.msra.mxu0 %v960
        %977 = vmatpush.bf16.msra.mxu0 %v959
        %978 = vmatpush.bf16.msra.mxu0 %v958
        %979 = vmatpush.bf16.msra.mxu0 %v957
        %980 = vmatmul.bf16.gmra.mxu0 %v970
        %v981 = vpop.f32.mrf.mxu0
        %v982 = vadd.f32 %v931, %v981
        %v983 = vpop.f32.mrf.mxu0
        %984 = vdwg.mxu0
        %v985 = vmax.f32 %v982, 0.0
        %v986 = vadd.f32 %v985, %v541
        %v987 = vpack.c.bf16 %v986, %v986
        %v988 = vld [vmem:[%s8] sm:$0xf]
        %v989 = vld [vmem:[%s8 + $0x4] sm:$0xf]
        %v990 = vld [vmem:[%s8 + $0x8] sm:$0xf]
        %v991 = vld [vmem:[%s8 + $0xc] sm:$0xf]
        %v992 = vld [vmem:[%s9] sm:$0x1]
        %v994 = vperm.slane %v992, 0
        %v1000 = vunpack.c.l.b16 %v988
        %v1001 = vunpack.c.l.b16 %v989
        %v1002 = vunpack.c.l.b16 %v990
        %v1003 = vunpack.c.l.b16 %v991
        %v1004 = vpack.c.b16 %v1001, %v1000
        %v1005 = vpack.c.b16 %v1003, %v1002
        %v1009 = vsel %vm559, %v987, 0
        %1011 = vmatpush.bf16.msra.mxu0 0
        %1012 = vmatpush.bf16.msra.mxu0 0
        %1013 = vmatpush.bf16.msra.mxu0 0
        %1014 = vmatpush.bf16.msra.mxu0 0
        %1015 = vmatpush.bf16.msra.mxu0 0
        %1016 = vmatpush.bf16.msra.mxu0 0
        %1017 = vmatpush.bf16.msra.mxu0 %v1005
        %1018 = vmatpush.bf16.msra.mxu0 %v1004
        %1019 = vmatmul.bf16.gmra.mxu0 %v1009
        %v1020 = vpop.f32.mrf.mxu0
        %v1021 = vadd.f32 %v994, %v1020
        %v1022 = vpop.f32.mrf.mxu0
        %1023 = vdwg.mxu0
        %v1024 = vmax.f32 %v1021, 0.0
        %v1025 = vld [vmem:[%s10] sm:$0x1]
        %v1027 = vperm.slane %v1025, 0
        %v1029 = vmul.f32 %v1024, %v1027
        %vm1030 = vcmask 523264
        %v1031 = vsel %vm1030, %v1029, 0.0
        %1032 = vadd.xlane.f32.xlu0 %v1031
        %v1033 = vpop.xlane.xlu0 %1032
        %v1034 = vld [vmem:[%s11] sm:$0x1]
        %v1036 = vperm.slane %v1034, 0
        %v1038 = vadd.f32 %v1033, %v1036
        %vm1039 = vcmask 7168
        %v1040 = vsel %vm1039, %v1038, -inf
        %v1041 = vrot.slane %v1040, 4
        %v1042 = vmax.f32 %v1040, %v1041
        %v1043 = vrot.slane %v1042, 2
        %v1044 = vmax.f32 %v1042, %v1043
        %v1045 = vrot.slane %v1044, 1
        %v1046 = vmax.f32 %v1044, %v1045
        %v1047 = vsub.f32 %v1038, %v1046
        %v1048 = vmul.f32 %v1047, 1.442695
        %v1049 = vpow.pop %v1048
        %v1050 = vsel %vm1039, %v1049, 0.0
        %v1051 = vrot.slane %v1050, 4
        %v1052 = vadd.f32 %v1050, %v1051
        %v1053 = vrot.slane %v1052, 2
        %v1054 = vadd.f32 %v1052, %v1053
        %v1055 = vrot.slane %v1054, 1
        %v1056 = vadd.f32 %v1054, %v1055
        %v1057 = vrcp.pop %v1056
        %v1058 = vmul.f32 %v1056, %v1057
        %v1059 = vsub.f32 1.0, %v1058
        %v1060 = vmul.f32 %v1057, %v1059
        %v1061 = vadd.f32 %v1057, %v1060
        %vm1062 = vweird.f32 %v1056
        %vm1063 = vweird.f32 %v1057
        %vm1064 = vmor %vm1062, %vm1063
        %v1065 = vsel %vm1064, %v1057, %v1061
        %v1066 = vand.u32 2147483647, %v1056
        %vm1067 = vcmp.eq.f32.partialorder %v1066, 8.507059e+37
        %v1068 = vand.u32 %v1056, 2147483648
        %v1069 = vor.u32 1.1754944e-38, %v1068
        %v1070 = vsel %vm1067, %v1069, %v1065
        %v1071 = vmul.f32 %v1049, %v1070
        %1073 = vset.pattern.permute.xlu0 0
        %1074 = vperm.xlu0 %1073, %v1071
        %v1075 = vpop.permute.xlu0 %1074
        %v1077 = vmul.f32 %v1075, %v986
        %v1078 = vsel %vm559, %v1077, 0.0
        %v1079 = vrot.slane %v1078, 4
        %v1080 = vadd.f32 %v1078, %v1079
        %v1081 = vrot.slane %v1080, 2
        %v1082 = vadd.f32 %v1080, %v1081
        %v1083 = vrot.slane %v1082, 1
        %v1084 = vadd.f32 %v1082, %v1083
        %v1085 = vadd.f32 %v1084, 0.0
        %v1086 = vsel %vm559, %v986, 0.0
        %v1087 = vrot.slane %v1086, 4
        %v1088 = vadd.f32 %v1086, %v1087
        %v1089 = vrot.slane %v1088, 2
        %v1090 = vadd.f32 %v1088, %v1089
        %v1091 = vrot.slane %v1090, 1
        %v1092 = vadd.f32 %v1090, %v1091
        %v1093 = vadd.f32 %v1092, %v537
        %v1094 = vpack.c.bf16 %v1093, %v1093
        %v1095 = vld [vmem:[%s12] sm:$0xf]
        %v1096 = vld [vmem:[%s12 + $0x4] sm:$0xf]
        %v1097 = vld [vmem:[%s12 + $0x8] sm:$0xf]
        %v1098 = vld [vmem:[%s12 + $0xc] sm:$0xf]
        %v1099 = vld [vmem:[%s13] sm:$0x1]
        %v1104 = vunpack.c.l.b16 %v1095
        %v1105 = vunpack.c.l.b16 %v1096
        %v1106 = vunpack.c.l.b16 %v1097
        %v1107 = vunpack.c.l.b16 %v1098
        %v1108 = vpack.c.b16 %v1105, %v1104
        %v1109 = vpack.c.b16 %v1107, %v1106
        %v1113 = vsel %vm559, %v1094, 0
        %1115 = vmatpush.bf16.msra.mxu0 0
        %1116 = vmatpush.bf16.msra.mxu0 0
        %1117 = vmatpush.bf16.msra.mxu0 0
        %1118 = vmatpush.bf16.msra.mxu0 0
        %1119 = vmatpush.bf16.msra.mxu0 0
        %1120 = vmatpush.bf16.msra.mxu0 0
        %1121 = vmatpush.bf16.msra.mxu0 %v1109
        %1122 = vmatpush.bf16.msra.mxu0 %v1108
        %1123 = vmatmul.bf16.gmra.mxu0 %v1113
        %v1124 = vpop.f32.mrf.mxu0
        %v1125 = vadd.f32 %v1099, %v1124
        %v1126 = vpop.f32.mrf.mxu0
        %1127 = vdwg.mxu0
        %v1128 = vmul.f32 %v1125, 0.999995
        %v1129 = vmax.f32 %v1128, 0.0
        %v1130 = vpack.c.bf16 %v1129, %v1129
        %v1131 = vld [vmem:[%s14] sm:$0xf]
        %v1132 = vld [vmem:[%s14 + $0x4] sm:$0xf]
        %v1133 = vld [vmem:[%s14 + $0x8] sm:$0xf]
        %v1134 = vld [vmem:[%s14 + $0xc] sm:$0xf]
        %v1135 = vld [vmem:[%s14 + $0x10] sm:$0xf]
        %v1136 = vld [vmem:[%s14 + $0x14] sm:$0xf]
        %v1137 = vld [vmem:[%s14 + $0x18] sm:$0xf]
        %v1138 = vld [vmem:[%s14 + $0x1c] sm:$0xf]
        %v1139 = vld [vmem:[%s15] sm:$0x1]
        %v1148 = vunpack.c.l.b16 %v1131
        %v1149 = vunpack.c.l.b16 %v1132
        %v1150 = vunpack.c.l.b16 %v1133
        %v1151 = vunpack.c.l.b16 %v1134
        %v1152 = vunpack.c.l.b16 %v1135
        %v1153 = vunpack.c.l.b16 %v1136
        %v1154 = vunpack.c.l.b16 %v1137
        %v1155 = vunpack.c.l.b16 %v1138
        %v1156 = vpack.c.b16 %v1149, %v1148
        %v1157 = vpack.c.b16 %v1151, %v1150
        %v1158 = vpack.c.b16 %v1153, %v1152
        %v1159 = vpack.c.b16 %v1155, %v1154
        %v1165 = vsel %vm1030, %v1130, 0
        %1167 = vmatpush.bf16.msra.mxu0 0
        %1168 = vmatpush.bf16.msra.mxu0 0
        %1169 = vmatpush.bf16.msra.mxu0 0
        %1170 = vmatpush.bf16.msra.mxu0 0
        %1171 = vmatpush.bf16.msra.mxu0 %v1159
        %1172 = vmatpush.bf16.msra.mxu0 %v1158
        %1173 = vmatpush.bf16.msra.mxu0 %v1157
        %1174 = vmatpush.bf16.msra.mxu0 %v1156
        %1175 = vmatmul.bf16.gmra.mxu0 %v1165
        %v1176 = vpop.f32.mrf.mxu0
        %v1177 = vadd.f32 %v1139, %v1176
        %v1178 = vpop.f32.mrf.mxu0
        %1179 = vdwg.mxu0
        %v1180 = vmul.f32 %v1177, 0.999995
        %v1181 = vmax.f32 %v1180, 0.0
        %v1182 = vadd.f32 %v537, %v1181
        %v1184 = vperm.slane %v1182, 0
        %v1186 = vadd.f32 %v986, %v1184
        %v1187 = vpack.c.bf16 %v1186, %v1186
        %s1188 = scalar_lea.vmem %s3, 16
        %v1189 = vld [vmem:[%s1188] sm:$0xf]
        %v1190 = vld [vmem:[%s1188 + $0x4] sm:$0xf]
        %v1191 = vld [vmem:[%s1188 + $0x8] sm:$0xf]
        %v1192 = vld [vmem:[%s1188 + $0xc] sm:$0xf]
        %v1197 = vunpack.c.l.b16 %v1189
        %v1198 = vunpack.c.l.b16 %v1190
        %v1199 = vunpack.c.l.b16 %v1191
        %v1200 = vunpack.c.l.b16 %v1192
        %v1201 = vpack.c.b16 %v1198, %v1197
        %v1202 = vpack.c.b16 %v1200, %v1199
        %v1206 = vsel %vm559, %v1187, 0
        %1208 = vmatpush.bf16.msra.mxu0 0
        %1209 = vmatpush.bf16.msra.mxu0 0
        %1210 = vmatpush.bf16.msra.mxu0 0
        %1211 = vmatpush.bf16.msra.mxu0 0
        %1212 = vmatpush.bf16.msra.mxu0 0
        %1213 = vmatpush.bf16.msra.mxu0 0
        %1214 = vmatpush.bf16.msra.mxu0 %v1202
        %1215 = vmatpush.bf16.msra.mxu0 %v1201
        %1216 = vmatmul.bf16.gmra.mxu0 %v1206
        %v1217 = vpop.f32.mrf.mxu0
        %v1218 = vadd.f32 0.0, %v1217
        %v1219 = vpop.f32.mrf.mxu0
        %1220 = vdwg.mxu0
        %v1221 = vpack.c.bf16 %v1218, %v1218
        %s1222 = scalar_lea.vmem %s4, 48
        %v1223 = vld [vmem:[%s1222] sm:$0xf]
        %v1224 = vld [vmem:[%s1222 + $0x4] sm:$0xf]
        %v1225 = vld [vmem:[%s1222 + $0x8] sm:$0xf]
        %v1226 = vld [vmem:[%s1222 + $0xc] sm:$0xf]
        %v1227 = vld [vmem:[%s1222 + $0x10] sm:$0xf]
        %v1228 = vld [vmem:[%s1222 + $0x14] sm:$0xf]
        %v1229 = vld [vmem:[%s1222 + $0x18] sm:$0xf]
        %v1230 = vld [vmem:[%s1222 + $0x1c] sm:$0xf]
        %v1231 = vld [vmem:[%s1222 + $0x20] sm:$0xf]
        %v1232 = vld [vmem:[%s1222 + $0x24] sm:$0xf]
        %v1233 = vld [vmem:[%s1222 + $0x28] sm:$0xf]
        %v1234 = vld [vmem:[%s1222 + $0x2c] sm:$0xf]
        %v1247 = vunpack.c.l.b16 %v1223
        %v1248 = vunpack.c.l.b16 %v1224
        %v1249 = vunpack.c.l.b16 %v1225
        %v1250 = vunpack.c.l.b16 %v1226
        %v1251 = vunpack.c.l.b16 %v1227
        %v1252 = vunpack.c.l.b16 %v1228
        %v1253 = vunpack.c.l.b16 %v1229
        %v1254 = vunpack.c.l.b16 %v1230
        %v1255 = vunpack.c.l.b16 %v1231
        %v1256 = vunpack.c.l.b16 %v1232
        %v1257 = vunpack.c.l.b16 %v1233
        %v1258 = vunpack.c.l.b16 %v1234
        %v1259 = vpack.c.b16 %v1248, %v1247
        %v1260 = vpack.c.b16 %v1250, %v1249
        %v1261 = vpack.c.b16 %v1252, %v1251
        %v1262 = vpack.c.b16 %v1254, %v1253
        %v1263 = vpack.c.b16 %v1256, %v1255
        %v1264 = vpack.c.b16 %v1258, %v1257
        %v1272 = vsel %vm625, %v1221, 0
        %1274 = vmatpush.bf16.msra.mxu0 0
        %1275 = vmatpush.bf16.msra.mxu0 0
        %1276 = vmatpush.bf16.msra.mxu0 %v1264
        %1277 = vmatpush.bf16.msra.mxu0 %v1263
        %1278 = vmatpush.bf16.msra.mxu0 %v1262
        %1279 = vmatpush.bf16.msra.mxu0 %v1261
        %1280 = vmatpush.bf16.msra.mxu0 %v1260
        %1281 = vmatpush.bf16.msra.mxu0 %v1259
        %1282 = vmatmul.bf16.gmra.mxu0 %v1272
        %v1283 = vpop.f32.mrf.mxu0
        %v1284 = vadd.f32 0.0, %v1283
        %v1285 = vpop.f32.mrf.mxu0
        %1286 = vdwg.mxu0
        %s1287 = scalar_lea.vmem %s5, 2
        %v1288 = vld [vmem:[%s1287] sm:$0x3]
        %v1290 = vsel %vm625, %v1288, 0
        %1292 = vmatpush.bf16.xpose.msra.mxu0 0
        %1293 = vmatpush.bf16.xpose.msra.mxu0 0
        %1294 = vmatpush.bf16.xpose.msra.mxu0 0
        %1295 = vmatpush.bf16.xpose.msra.mxu0 0
        %1296 = vmatpush.bf16.xpose.msra.mxu0 0
        %1297 = vmatpush.bf16.xpose.msra.mxu0 0
        %1298 = vmatpush.bf16.xpose.msra.mxu0 0
        %1299 = vmatpush.bf16.xpose.msra.mxu0 %v1272
        %1300 = vmatmul.bf16.gmra.mxu0 %v1290
        %v1301 = vpop.f32.mrf.mxu0
        %v1302 = vadd.f32 0.0, %v1301
        %v1303 = vpop.f32.mrf.mxu0
        %1304 = vdwg.mxu0
        %1306 = vset.pattern.permute.xlu0 0
        %1307 = vperm.xlu0 %1306, %v1284
        %v1308 = vpop.permute.xlu0 %1307
        %v1310 = vperm.slane %v1302, 0
        %v1311 = vadd.f32 %v1308, %v1310
        %vm1312 = vcmp.ge.f32.partialorder %v1311, 0.0
        %v1313 = vmul.f32 %v1311, 0.2
        %v1314 = vsel %vm1312, %v1311, %v1313
        %v1315 = vsel %vm536, %v1314, -1e+30
        %v1316 = vsel %vm670, %v1315, -inf
        %v1317 = vrot.slane %v1316, 4
        %v1318 = vmax.f32 %v1316, %v1317
        %v1319 = vrot.slane %v1318, 2
        %v1320 = vmax.f32 %v1318, %v1319
        %v1321 = vrot.slane %v1320, 1
        %v1322 = vmax.f32 %v1320, %v1321
        %v1323 = vsub.f32 %v1315, %v1322
        %v1324 = vmul.f32 %v1323, 1.442695
        %v1325 = vpow.pop %v1324
        %v1326 = vsel %vm670, %v1325, 0.0
        %v1327 = vrot.slane %v1326, 4
        %v1328 = vadd.f32 %v1326, %v1327
        %v1329 = vrot.slane %v1328, 2
        %v1330 = vadd.f32 %v1328, %v1329
        %v1331 = vrot.slane %v1330, 1
        %v1332 = vadd.f32 %v1330, %v1331
        %v1333 = vrcp.pop %v1332
        %v1334 = vmul.f32 %v1332, %v1333
        %v1335 = vsub.f32 1.0, %v1334
        %v1336 = vmul.f32 %v1333, %v1335
        %v1337 = vadd.f32 %v1333, %v1336
        %vm1338 = vweird.f32 %v1332
        %vm1339 = vweird.f32 %v1333
        %vm1340 = vmor %vm1338, %vm1339
        %v1341 = vsel %vm1340, %v1333, %v1337
        %v1342 = vand.u32 2147483647, %v1332
        %vm1343 = vcmp.eq.f32.partialorder %v1342, 8.507059e+37
        %v1344 = vand.u32 %v1332, 2147483648
        %v1345 = vor.u32 1.1754944e-38, %v1344
        %v1346 = vsel %vm1343, %v1345, %v1341
        %v1347 = vmul.f32 %v1325, %v1346
        %v1348 = vpack.c.bf16 %v1347, %v1347
        %1349 = vxpose.xlu0.c.b16.start [1/8] %v1348, 128
        %1350 = vxpose.xlu0.c.b16.cont [2/8] 0, 128
        %1351 = vxpose.xlu0.c.b16.cont [3/8] 0, 128
        %1352 = vxpose.xlu0.c.b16.cont [4/8] 0, 128
        %1353 = vxpose.xlu0.c.b16.cont [5/8] 0, 128
        %1354 = vxpose.xlu0.c.b16.cont [6/8] 0, 128
        %1355 = vxpose.xlu0.c.b16.cont [7/8] 0, 128
        %1356 = vxpose.xlu0.c.b16.end [8/8] 0, 128
        %v1357 = vpop.trf.xlu0
        %v1358 = vpop.trf.xlu0
        %v1359 = vpop.trf.xlu0
        %v1360 = vpop.trf.xlu0
        %v1361 = vpop.trf.xlu0
        %v1362 = vpop.trf.xlu0
        %v1363 = vpop.trf.xlu0
        %v1364 = vpop.trf.xlu0
        %v1366 = vsel %vm670, %v1357, 0
        %v1368 = vsel %vm723, %v1221, 0
        %1370 = vmatpush.bf16.msra.mxu0 0
        %1371 = vmatpush.bf16.msra.mxu0 0
        %1372 = vmatpush.bf16.msra.mxu0 0
        %1373 = vmatpush.bf16.msra.mxu0 0
        %1374 = vmatpush.bf16.msra.mxu0 0
        %1375 = vmatpush.bf16.msra.mxu0 0
        %1376 = vmatpush.bf16.msra.mxu0 0
        %1377 = vmatpush.bf16.msra.mxu0 %v1368
        %1378 = vmatmul.bf16.gmra.mxu0 %v1366
        %v1379 = vpop.f32.mrf.mxu0
        %v1380 = vadd.f32 0.0, %v1379
        %v1381 = vpop.f32.mrf.mxu0
        %1382 = vdwg.mxu0
        %1383 = vst.msk [vmem:[#allocation2] sm:$0xff] %vm559, %v1380
        %1384 = vset.pattern.permute.xlu0 1
        %1385 = vperm.xlu0 %1384, %v1284
        %v1386 = vpop.permute.xlu0 %1385
        %v1388 = vperm.slane %v1302, 1
        %v1389 = vadd.f32 %v1386, %v1388
        %vm1390 = vcmp.ge.f32.partialorder %v1389, 0.0
        %v1391 = vmul.f32 %v1389, 0.2
        %v1392 = vsel %vm1390, %v1389, %v1391
        %v1393 = vsel %vm536, %v1392, -1e+30
        %v1394 = vsel %vm670, %v1393, -inf
        %v1395 = vrot.slane %v1394, 4
        %v1396 = vmax.f32 %v1394, %v1395
        %v1397 = vrot.slane %v1396, 2
        %v1398 = vmax.f32 %v1396, %v1397
        %v1399 = vrot.slane %v1398, 1
        %v1400 = vmax.f32 %v1398, %v1399
        %v1401 = vsub.f32 %v1393, %v1400
        %v1402 = vmul.f32 %v1401, 1.442695
        %v1403 = vpow.pop %v1402
        %v1404 = vsel %vm670, %v1403, 0.0
        %v1405 = vrot.slane %v1404, 4
        %v1406 = vadd.f32 %v1404, %v1405
        %v1407 = vrot.slane %v1406, 2
        %v1408 = vadd.f32 %v1406, %v1407
        %v1409 = vrot.slane %v1408, 1
        %v1410 = vadd.f32 %v1408, %v1409
        %v1411 = vrcp.pop %v1410
        %v1412 = vmul.f32 %v1410, %v1411
        %v1413 = vsub.f32 1.0, %v1412
        %v1414 = vmul.f32 %v1411, %v1413
        %v1415 = vadd.f32 %v1411, %v1414
        %vm1416 = vweird.f32 %v1410
        %vm1417 = vweird.f32 %v1411
        %vm1418 = vmor %vm1416, %vm1417
        %v1419 = vsel %vm1418, %v1411, %v1415
        %v1420 = vand.u32 2147483647, %v1410
        %vm1421 = vcmp.eq.f32.partialorder %v1420, 8.507059e+37
        %v1422 = vand.u32 %v1410, 2147483648
        %v1423 = vor.u32 1.1754944e-38, %v1422
        %v1424 = vsel %vm1421, %v1423, %v1419
        %v1425 = vmul.f32 %v1403, %v1424
        %v1426 = vpack.c.bf16 %v1425, %v1425
        %1427 = vxpose.xlu0.c.b16.start [1/8] %v1426, 128
        %1428 = vxpose.xlu0.c.b16.cont [2/8] 0, 128
        %1429 = vxpose.xlu0.c.b16.cont [3/8] 0, 128
        %1430 = vxpose.xlu0.c.b16.cont [4/8] 0, 128
        %1431 = vxpose.xlu0.c.b16.cont [5/8] 0, 128
        %1432 = vxpose.xlu0.c.b16.cont [6/8] 0, 128
        %1433 = vxpose.xlu0.c.b16.cont [7/8] 0, 128
        %1434 = vxpose.xlu0.c.b16.end [8/8] 0, 128
        %v1435 = vpop.trf.xlu0
        %v1436 = vpop.trf.xlu0
        %v1437 = vpop.trf.xlu0
        %v1438 = vpop.trf.xlu0
        %v1439 = vpop.trf.xlu0
        %v1440 = vpop.trf.xlu0
        %v1441 = vpop.trf.xlu0
        %v1442 = vpop.trf.xlu0
        %v1444 = vunpack.c.l.b16 %v1221
        %v1445 = vpack.c.b16 %v1444, %v1444
        %1446 = vrot.lane.b32.xlu0 %v1445, 96
        %v1447 = vpop.permute.xlu0 %1446
        %v1449 = vsel %vm670, %v1435, 0
        %v1452 = vsel %vm723, %v1447, 0
        %1454 = vmatpush.bf16.msra.mxu0 0
        %1455 = vmatpush.bf16.msra.mxu0 0
        %1456 = vmatpush.bf16.msra.mxu0 0
        %1457 = vmatpush.bf16.msra.mxu0 0
        %1458 = vmatpush.bf16.msra.mxu0 0
        %1459 = vmatpush.bf16.msra.mxu0 0
        %1460 = vmatpush.bf16.msra.mxu0 0
        %1461 = vmatpush.bf16.msra.mxu0 %v1452
        %1462 = vmatmul.bf16.gmra.mxu0 %v1449
        %v1463 = vpop.f32.mrf.mxu0
        %v1464 = vadd.f32 0.0, %v1463
        %v1465 = vpop.f32.mrf.mxu0
        %1466 = vdwg.mxu0
        %1468 = vrot.lane.b32.xlu0 %v1464, 32
        %v1469 = vpop.permute.xlu0 %1468
        %1471 = vst.msk [vmem:[#allocation2] sm:$0xff] %vm827, %v1469
        %1472 = vset.pattern.permute.xlu0 2
        %1473 = vperm.xlu0 %1472, %v1284
        %v1474 = vpop.permute.xlu0 %1473
        %v1476 = vperm.slane %v1302, 2
        %v1477 = vadd.f32 %v1474, %v1476
        %vm1478 = vcmp.ge.f32.partialorder %v1477, 0.0
        %v1479 = vmul.f32 %v1477, 0.2
        %v1480 = vsel %vm1478, %v1477, %v1479
        %v1481 = vsel %vm536, %v1480, -1e+30
        %v1482 = vsel %vm670, %v1481, -inf
        %v1483 = vrot.slane %v1482, 4
        %v1484 = vmax.f32 %v1482, %v1483
        %v1485 = vrot.slane %v1484, 2
        %v1486 = vmax.f32 %v1484, %v1485
        %v1487 = vrot.slane %v1486, 1
        %v1488 = vmax.f32 %v1486, %v1487
        %v1489 = vsub.f32 %v1481, %v1488
        %v1490 = vmul.f32 %v1489, 1.442695
        %v1491 = vpow.pop %v1490
        %v1492 = vsel %vm670, %v1491, 0.0
        %v1493 = vrot.slane %v1492, 4
        %v1494 = vadd.f32 %v1492, %v1493
        %v1495 = vrot.slane %v1494, 2
        %v1496 = vadd.f32 %v1494, %v1495
        %v1497 = vrot.slane %v1496, 1
        %v1498 = vadd.f32 %v1496, %v1497
        %v1499 = vrcp.pop %v1498
        %v1500 = vmul.f32 %v1498, %v1499
        %v1501 = vsub.f32 1.0, %v1500
        %v1502 = vmul.f32 %v1499, %v1501
        %v1503 = vadd.f32 %v1499, %v1502
        %vm1504 = vweird.f32 %v1498
        %vm1505 = vweird.f32 %v1499
        %vm1506 = vmor %vm1504, %vm1505
        %v1507 = vsel %vm1506, %v1499, %v1503
        %v1508 = vand.u32 2147483647, %v1498
        %vm1509 = vcmp.eq.f32.partialorder %v1508, 8.507059e+37
        %v1510 = vand.u32 %v1498, 2147483648
        %v1511 = vor.u32 1.1754944e-38, %v1510
        %v1512 = vsel %vm1509, %v1511, %v1507
        %v1513 = vmul.f32 %v1491, %v1512
        %v1514 = vpack.c.bf16 %v1513, %v1513
        %1515 = vxpose.xlu0.c.b16.start [1/8] %v1514, 128
        %1516 = vxpose.xlu0.c.b16.cont [2/8] 0, 128
        %1517 = vxpose.xlu0.c.b16.cont [3/8] 0, 128
        %1518 = vxpose.xlu0.c.b16.cont [4/8] 0, 128
        %1519 = vxpose.xlu0.c.b16.cont [5/8] 0, 128
        %1520 = vxpose.xlu0.c.b16.cont [6/8] 0, 128
        %1521 = vxpose.xlu0.c.b16.cont [7/8] 0, 128
        %1522 = vxpose.xlu0.c.b16.end [8/8] 0, 128
        %v1523 = vpop.trf.xlu0
        %v1524 = vpop.trf.xlu0
        %v1525 = vpop.trf.xlu0
        %v1526 = vpop.trf.xlu0
        %v1527 = vpop.trf.xlu0
        %v1528 = vpop.trf.xlu0
        %v1529 = vpop.trf.xlu0
        %v1530 = vpop.trf.xlu0
        %1531 = vrot.lane.b32.xlu0 %v1445, 64
        %v1532 = vpop.permute.xlu0 %1531
        %v1534 = vsel %vm670, %v1523, 0
        %v1537 = vsel %vm723, %v1532, 0
        %1539 = vmatpush.bf16.msra.mxu0 0
        %1540 = vmatpush.bf16.msra.mxu0 0
        %1541 = vmatpush.bf16.msra.mxu0 0
        %1542 = vmatpush.bf16.msra.mxu0 0
        %1543 = vmatpush.bf16.msra.mxu0 0
        %1544 = vmatpush.bf16.msra.mxu0 0
        %1545 = vmatpush.bf16.msra.mxu0 0
        %1546 = vmatpush.bf16.msra.mxu0 %v1537
        %1547 = vmatmul.bf16.gmra.mxu0 %v1534
        %v1548 = vpop.f32.mrf.mxu0
        %v1549 = vadd.f32 0.0, %v1548
        %v1550 = vpop.f32.mrf.mxu0
        %1551 = vdwg.mxu0
        %1553 = vrot.lane.b32.xlu0 %v1549, 64
        %v1554 = vpop.permute.xlu0 %1553
        %1556 = vst.msk [vmem:[#allocation2] sm:$0xff] %vm913, %v1554
        %v1557 = vld [vmem:[#allocation2] sm:$0xff]
        %v1558 = vpack.c.bf16 %v1557, %v1557
        %s1559 = scalar_lea.vmem %s6, 48
        %v1560 = vld [vmem:[%s1559] sm:$0xf]
        %v1561 = vld [vmem:[%s1559 + $0x4] sm:$0xf]
        %v1562 = vld [vmem:[%s1559 + $0x8] sm:$0xf]
        %v1563 = vld [vmem:[%s1559 + $0xc] sm:$0xf]
        %v1564 = vld [vmem:[%s1559 + $0x10] sm:$0xf]
        %v1565 = vld [vmem:[%s1559 + $0x14] sm:$0xf]
        %v1566 = vld [vmem:[%s1559 + $0x18] sm:$0xf]
        %v1567 = vld [vmem:[%s1559 + $0x1c] sm:$0xf]
        %v1568 = vld [vmem:[%s1559 + $0x20] sm:$0xf]
        %v1569 = vld [vmem:[%s1559 + $0x24] sm:$0xf]
        %v1570 = vld [vmem:[%s1559 + $0x28] sm:$0xf]
        %v1571 = vld [vmem:[%s1559 + $0x2c] sm:$0xf]
        %s1572 = scalar_lea.vmem %s7, 1
        %v1573 = vld [vmem:[%s1572] sm:$0x1]
        %v1575 = vperm.slane %v1573, 0
        %v1589 = vunpack.c.l.b16 %v1560
        %v1590 = vunpack.c.l.b16 %v1561
        %v1591 = vunpack.c.l.b16 %v1562
        %v1592 = vunpack.c.l.b16 %v1563
        %v1593 = vunpack.c.l.b16 %v1564
        %v1594 = vunpack.c.l.b16 %v1565
        %v1595 = vunpack.c.l.b16 %v1566
        %v1596 = vunpack.c.l.b16 %v1567
        %v1597 = vunpack.c.l.b16 %v1568
        %v1598 = vunpack.c.l.b16 %v1569
        %v1599 = vunpack.c.l.b16 %v1570
        %v1600 = vunpack.c.l.b16 %v1571
        %v1601 = vpack.c.b16 %v1590, %v1589
        %v1602 = vpack.c.b16 %v1592, %v1591
        %v1603 = vpack.c.b16 %v1594, %v1593
        %v1604 = vpack.c.b16 %v1596, %v1595
        %v1605 = vpack.c.b16 %v1598, %v1597
        %v1606 = vpack.c.b16 %v1600, %v1599
        %v1614 = vsel %vm625, %v1558, 0
        %1616 = vmatpush.bf16.msra.mxu0 0
        %1617 = vmatpush.bf16.msra.mxu0 0
        %1618 = vmatpush.bf16.msra.mxu0 %v1606
        %1619 = vmatpush.bf16.msra.mxu0 %v1605
        %1620 = vmatpush.bf16.msra.mxu0 %v1604
        %1621 = vmatpush.bf16.msra.mxu0 %v1603
        %1622 = vmatpush.bf16.msra.mxu0 %v1602
        %1623 = vmatpush.bf16.msra.mxu0 %v1601
        %1624 = vmatmul.bf16.gmra.mxu0 %v1614
        %v1625 = vpop.f32.mrf.mxu0
        %v1626 = vadd.f32 %v1575, %v1625
        %v1627 = vpop.f32.mrf.mxu0
        %1628 = vdwg.mxu0
        %v1629 = vmax.f32 %v1626, 0.0
        %v1630 = vadd.f32 %v1629, %v1186
        %v1631 = vpack.c.bf16 %v1630, %v1630
        %s1632 = scalar_lea.vmem %s8, 16
        %v1633 = vld [vmem:[%s1632] sm:$0xf]
        %v1634 = vld [vmem:[%s1632 + $0x4] sm:$0xf]
        %v1635 = vld [vmem:[%s1632 + $0x8] sm:$0xf]
        %v1636 = vld [vmem:[%s1632 + $0xc] sm:$0xf]
        %s1637 = scalar_lea.vmem %s9, 1
        %v1638 = vld [vmem:[%s1637] sm:$0x1]
        %v1640 = vperm.slane %v1638, 0
        %v1646 = vunpack.c.l.b16 %v1633
        %v1647 = vunpack.c.l.b16 %v1634
        %v1648 = vunpack.c.l.b16 %v1635
        %v1649 = vunpack.c.l.b16 %v1636
        %v1650 = vpack.c.b16 %v1647, %v1646
        %v1651 = vpack.c.b16 %v1649, %v1648
        %v1655 = vsel %vm559, %v1631, 0
        %1657 = vmatpush.bf16.msra.mxu0 0
        %1658 = vmatpush.bf16.msra.mxu0 0
        %1659 = vmatpush.bf16.msra.mxu0 0
        %1660 = vmatpush.bf16.msra.mxu0 0
        %1661 = vmatpush.bf16.msra.mxu0 0
        %1662 = vmatpush.bf16.msra.mxu0 0
        %1663 = vmatpush.bf16.msra.mxu0 %v1651
        %1664 = vmatpush.bf16.msra.mxu0 %v1650
        %1665 = vmatmul.bf16.gmra.mxu0 %v1655
        %v1666 = vpop.f32.mrf.mxu0
        %v1667 = vadd.f32 %v1640, %v1666
        %v1668 = vpop.f32.mrf.mxu0
        %1669 = vdwg.mxu0
        %v1670 = vmax.f32 %v1667, 0.0
        %s1671 = scalar_lea.vmem %s10, 1
        %v1672 = vld [vmem:[%s1671] sm:$0x1]
        %v1674 = vperm.slane %v1672, 0
        %v1676 = vmul.f32 %v1670, %v1674
        %v1677 = vsel %vm1030, %v1676, 0.0
        %1678 = vadd.xlane.f32.xlu0 %v1677
        %v1679 = vpop.xlane.xlu0 %1678
        %s1680 = scalar_lea.vmem %s11, 1
        %v1681 = vld [vmem:[%s1680] sm:$0x1]
        %v1683 = vperm.slane %v1681, 0
        %v1685 = vadd.f32 %v1679, %v1683
        %v1686 = vsel %vm1039, %v1685, -inf
        %v1687 = vrot.slane %v1686, 4
        %v1688 = vmax.f32 %v1686, %v1687
        %v1689 = vrot.slane %v1688, 2
        %v1690 = vmax.f32 %v1688, %v1689
        %v1691 = vrot.slane %v1690, 1
        %v1692 = vmax.f32 %v1690, %v1691
        %v1693 = vsub.f32 %v1685, %v1692
        %v1694 = vmul.f32 %v1693, 1.442695
        %v1695 = vpow.pop %v1694
        %v1696 = vsel %vm1039, %v1695, 0.0
        %v1697 = vrot.slane %v1696, 4
        %v1698 = vadd.f32 %v1696, %v1697
        %v1699 = vrot.slane %v1698, 2
        %v1700 = vadd.f32 %v1698, %v1699
        %v1701 = vrot.slane %v1700, 1
        %v1702 = vadd.f32 %v1700, %v1701
        %v1703 = vrcp.pop %v1702
        %v1704 = vmul.f32 %v1702, %v1703
        %v1705 = vsub.f32 1.0, %v1704
        %v1706 = vmul.f32 %v1703, %v1705
        %v1707 = vadd.f32 %v1703, %v1706
        %vm1708 = vweird.f32 %v1702
        %vm1709 = vweird.f32 %v1703
        %vm1710 = vmor %vm1708, %vm1709
        %v1711 = vsel %vm1710, %v1703, %v1707
        %v1712 = vand.u32 2147483647, %v1702
        %vm1713 = vcmp.eq.f32.partialorder %v1712, 8.507059e+37
        %v1714 = vand.u32 %v1702, 2147483648
        %v1715 = vor.u32 1.1754944e-38, %v1714
        %v1716 = vsel %vm1713, %v1715, %v1711
        %v1717 = vmul.f32 %v1695, %v1716
        %1719 = vset.pattern.permute.xlu0 0
        %1720 = vperm.xlu0 %1719, %v1717
        %v1721 = vpop.permute.xlu0 %1720
        %v1723 = vmul.f32 %v1721, %v1630
        %v1724 = vsel %vm559, %v1723, 0.0
        %v1725 = vrot.slane %v1724, 4
        %v1726 = vadd.f32 %v1724, %v1725
        %v1727 = vrot.slane %v1726, 2
        %v1728 = vadd.f32 %v1726, %v1727
        %v1729 = vrot.slane %v1728, 1
        %v1730 = vadd.f32 %v1728, %v1729
        %v1731 = vadd.f32 %v1085, %v1730
        %v1732 = vsel %vm559, %v1630, 0.0
        %v1733 = vrot.slane %v1732, 4
        %v1734 = vadd.f32 %v1732, %v1733
        %v1735 = vrot.slane %v1734, 2
        %v1736 = vadd.f32 %v1734, %v1735
        %v1737 = vrot.slane %v1736, 1
        %v1738 = vadd.f32 %v1736, %v1737
        %v1739 = vadd.f32 %v1738, %v1182
        %v1740 = vpack.c.bf16 %v1739, %v1739
        %s1741 = scalar_lea.vmem %s12, 16
        %v1742 = vld [vmem:[%s1741] sm:$0xf]
        %v1743 = vld [vmem:[%s1741 + $0x4] sm:$0xf]
        %v1744 = vld [vmem:[%s1741 + $0x8] sm:$0xf]
        %v1745 = vld [vmem:[%s1741 + $0xc] sm:$0xf]
        %s1746 = scalar_lea.vmem %s13, 1
        %v1747 = vld [vmem:[%s1746] sm:$0x1]
        %v1752 = vunpack.c.l.b16 %v1742
        %v1753 = vunpack.c.l.b16 %v1743
        %v1754 = vunpack.c.l.b16 %v1744
        %v1755 = vunpack.c.l.b16 %v1745
        %v1756 = vpack.c.b16 %v1753, %v1752
        %v1757 = vpack.c.b16 %v1755, %v1754
        %v1761 = vsel %vm559, %v1740, 0
        %1763 = vmatpush.bf16.msra.mxu0 0
        %1764 = vmatpush.bf16.msra.mxu0 0
        %1765 = vmatpush.bf16.msra.mxu0 0
        %1766 = vmatpush.bf16.msra.mxu0 0
        %1767 = vmatpush.bf16.msra.mxu0 0
        %1768 = vmatpush.bf16.msra.mxu0 0
        %1769 = vmatpush.bf16.msra.mxu0 %v1757
        %1770 = vmatpush.bf16.msra.mxu0 %v1756
        %1771 = vmatmul.bf16.gmra.mxu0 %v1761
        %v1772 = vpop.f32.mrf.mxu0
        %v1773 = vadd.f32 %v1747, %v1772
        %v1774 = vpop.f32.mrf.mxu0
        %1775 = vdwg.mxu0
        %v1776 = vmul.f32 %v1773, 0.999995
        %v1777 = vmax.f32 %v1776, 0.0
        %v1778 = vpack.c.bf16 %v1777, %v1777
        %s1779 = scalar_lea.vmem %s14, 32
        %v1780 = vld [vmem:[%s1779] sm:$0xf]
        %v1781 = vld [vmem:[%s1779 + $0x4] sm:$0xf]
        %v1782 = vld [vmem:[%s1779 + $0x8] sm:$0xf]
        %v1783 = vld [vmem:[%s1779 + $0xc] sm:$0xf]
        %v1784 = vld [vmem:[%s1779 + $0x10] sm:$0xf]
        %v1785 = vld [vmem:[%s1779 + $0x14] sm:$0xf]
        %v1786 = vld [vmem:[%s1779 + $0x18] sm:$0xf]
        %v1787 = vld [vmem:[%s1779 + $0x1c] sm:$0xf]
        %s1788 = scalar_lea.vmem %s15, 1
        %v1789 = vld [vmem:[%s1788] sm:$0x1]
        %v1798 = vunpack.c.l.b16 %v1780
        %v1799 = vunpack.c.l.b16 %v1781
        %v1800 = vunpack.c.l.b16 %v1782
        %v1801 = vunpack.c.l.b16 %v1783
        %v1802 = vunpack.c.l.b16 %v1784
        %v1803 = vunpack.c.l.b16 %v1785
        %v1804 = vunpack.c.l.b16 %v1786
        %v1805 = vunpack.c.l.b16 %v1787
        %v1806 = vpack.c.b16 %v1799, %v1798
        %v1807 = vpack.c.b16 %v1801, %v1800
        %v1808 = vpack.c.b16 %v1803, %v1802
        %v1809 = vpack.c.b16 %v1805, %v1804
        %v1815 = vsel %vm1030, %v1778, 0
        %1817 = vmatpush.bf16.msra.mxu0 0
        %1818 = vmatpush.bf16.msra.mxu0 0
        %1819 = vmatpush.bf16.msra.mxu0 0
        %1820 = vmatpush.bf16.msra.mxu0 0
        %1821 = vmatpush.bf16.msra.mxu0 %v1809
        %1822 = vmatpush.bf16.msra.mxu0 %v1808
        %1823 = vmatpush.bf16.msra.mxu0 %v1807
        %1824 = vmatpush.bf16.msra.mxu0 %v1806
        %1825 = vmatmul.bf16.gmra.mxu0 %v1815
        %v1826 = vpop.f32.mrf.mxu0
        %v1827 = vadd.f32 %v1789, %v1826
        %v1828 = vpop.f32.mrf.mxu0
        %1829 = vdwg.mxu0
        %v1830 = vmul.f32 %v1827, 0.999995
        %v1831 = vmax.f32 %v1830, 0.0
        %v1832 = vadd.f32 %v1182, %v1831
        %v1834 = vperm.slane %v1832, 0
        %v1836 = vadd.f32 %v1630, %v1834
        %v1837 = vpack.c.bf16 %v1836, %v1836
        %s1838 = scalar_lea.vmem %s3, 32
        %v1839 = vld [vmem:[%s1838] sm:$0xf]
        %v1840 = vld [vmem:[%s1838 + $0x4] sm:$0xf]
        %v1841 = vld [vmem:[%s1838 + $0x8] sm:$0xf]
        %v1842 = vld [vmem:[%s1838 + $0xc] sm:$0xf]
        %v1847 = vunpack.c.l.b16 %v1839
        %v1848 = vunpack.c.l.b16 %v1840
        %v1849 = vunpack.c.l.b16 %v1841
        %v1850 = vunpack.c.l.b16 %v1842
        %v1851 = vpack.c.b16 %v1848, %v1847
        %v1852 = vpack.c.b16 %v1850, %v1849
        %v1856 = vsel %vm559, %v1837, 0
        %1858 = vmatpush.bf16.msra.mxu0 0
        %1859 = vmatpush.bf16.msra.mxu0 0
        %1860 = vmatpush.bf16.msra.mxu0 0
        %1861 = vmatpush.bf16.msra.mxu0 0
        %1862 = vmatpush.bf16.msra.mxu0 0
        %1863 = vmatpush.bf16.msra.mxu0 0
        %1864 = vmatpush.bf16.msra.mxu0 %v1852
        %1865 = vmatpush.bf16.msra.mxu0 %v1851
        %1866 = vmatmul.bf16.gmra.mxu0 %v1856
        %v1867 = vpop.f32.mrf.mxu0
        %v1868 = vadd.f32 0.0, %v1867
        %v1869 = vpop.f32.mrf.mxu0
        %1870 = vdwg.mxu0
        %v1871 = vpack.c.bf16 %v1868, %v1868
        %s1872 = scalar_lea.vmem %s4, 96
        %v1873 = vld [vmem:[%s1872] sm:$0xf]
        %v1874 = vld [vmem:[%s1872 + $0x4] sm:$0xf]
        %v1875 = vld [vmem:[%s1872 + $0x8] sm:$0xf]
        %v1876 = vld [vmem:[%s1872 + $0xc] sm:$0xf]
        %v1877 = vld [vmem:[%s1872 + $0x10] sm:$0xf]
        %v1878 = vld [vmem:[%s1872 + $0x14] sm:$0xf]
        %v1879 = vld [vmem:[%s1872 + $0x18] sm:$0xf]
        %v1880 = vld [vmem:[%s1872 + $0x1c] sm:$0xf]
        %v1881 = vld [vmem:[%s1872 + $0x20] sm:$0xf]
        %v1882 = vld [vmem:[%s1872 + $0x24] sm:$0xf]
        %v1883 = vld [vmem:[%s1872 + $0x28] sm:$0xf]
        %v1884 = vld [vmem:[%s1872 + $0x2c] sm:$0xf]
        %v1897 = vunpack.c.l.b16 %v1873
        %v1898 = vunpack.c.l.b16 %v1874
        %v1899 = vunpack.c.l.b16 %v1875
        %v1900 = vunpack.c.l.b16 %v1876
        %v1901 = vunpack.c.l.b16 %v1877
        %v1902 = vunpack.c.l.b16 %v1878
        %v1903 = vunpack.c.l.b16 %v1879
        %v1904 = vunpack.c.l.b16 %v1880
        %v1905 = vunpack.c.l.b16 %v1881
        %v1906 = vunpack.c.l.b16 %v1882
        %v1907 = vunpack.c.l.b16 %v1883
        %v1908 = vunpack.c.l.b16 %v1884
        %v1909 = vpack.c.b16 %v1898, %v1897
        %v1910 = vpack.c.b16 %v1900, %v1899
        %v1911 = vpack.c.b16 %v1902, %v1901
        %v1912 = vpack.c.b16 %v1904, %v1903
        %v1913 = vpack.c.b16 %v1906, %v1905
        %v1914 = vpack.c.b16 %v1908, %v1907
        %v1922 = vsel %vm625, %v1871, 0
        %1924 = vmatpush.bf16.msra.mxu0 0
        %1925 = vmatpush.bf16.msra.mxu0 0
        %1926 = vmatpush.bf16.msra.mxu0 %v1914
        %1927 = vmatpush.bf16.msra.mxu0 %v1913
        %1928 = vmatpush.bf16.msra.mxu0 %v1912
        %1929 = vmatpush.bf16.msra.mxu0 %v1911
        %1930 = vmatpush.bf16.msra.mxu0 %v1910
        %1931 = vmatpush.bf16.msra.mxu0 %v1909
        %1932 = vmatmul.bf16.gmra.mxu0 %v1922
        %v1933 = vpop.f32.mrf.mxu0
        %v1934 = vadd.f32 0.0, %v1933
        %v1935 = vpop.f32.mrf.mxu0
        %1936 = vdwg.mxu0
        %s1937 = scalar_lea.vmem %s5, 4
        %v1938 = vld [vmem:[%s1937] sm:$0x3]
        %v1940 = vsel %vm625, %v1938, 0
        %1942 = vmatpush.bf16.xpose.msra.mxu0 0
        %1943 = vmatpush.bf16.xpose.msra.mxu0 0
        %1944 = vmatpush.bf16.xpose.msra.mxu0 0
        %1945 = vmatpush.bf16.xpose.msra.mxu0 0
        %1946 = vmatpush.bf16.xpose.msra.mxu0 0
        %1947 = vmatpush.bf16.xpose.msra.mxu0 0
        %1948 = vmatpush.bf16.xpose.msra.mxu0 0
        %1949 = vmatpush.bf16.xpose.msra.mxu0 %v1922
        %1950 = vmatmul.bf16.gmra.mxu0 %v1940
        %v1951 = vpop.f32.mrf.mxu0
        %v1952 = vadd.f32 0.0, %v1951
        %v1953 = vpop.f32.mrf.mxu0
        %1954 = vdwg.mxu0
        %1956 = vset.pattern.permute.xlu0 0
        %1957 = vperm.xlu0 %1956, %v1934
        %v1958 = vpop.permute.xlu0 %1957
        %v1960 = vperm.slane %v1952, 0
        %v1961 = vadd.f32 %v1958, %v1960
        %vm1962 = vcmp.ge.f32.partialorder %v1961, 0.0
        %v1963 = vmul.f32 %v1961, 0.2
        %v1964 = vsel %vm1962, %v1961, %v1963
        %v1965 = vsel %vm536, %v1964, -1e+30
        %v1966 = vsel %vm670, %v1965, -inf
        %v1967 = vrot.slane %v1966, 4
        %v1968 = vmax.f32 %v1966, %v1967
        %v1969 = vrot.slane %v1968, 2
        %v1970 = vmax.f32 %v1968, %v1969
        %v1971 = vrot.slane %v1970, 1
        %v1972 = vmax.f32 %v1970, %v1971
        %v1973 = vsub.f32 %v1965, %v1972
        %v1974 = vmul.f32 %v1973, 1.442695
        %v1975 = vpow.pop %v1974
        %v1976 = vsel %vm670, %v1975, 0.0
        %v1977 = vrot.slane %v1976, 4
        %v1978 = vadd.f32 %v1976, %v1977
        %v1979 = vrot.slane %v1978, 2
        %v1980 = vadd.f32 %v1978, %v1979
        %v1981 = vrot.slane %v1980, 1
        %v1982 = vadd.f32 %v1980, %v1981
        %v1983 = vrcp.pop %v1982
        %v1984 = vmul.f32 %v1982, %v1983
        %v1985 = vsub.f32 1.0, %v1984
        %v1986 = vmul.f32 %v1983, %v1985
        %v1987 = vadd.f32 %v1983, %v1986
        %vm1988 = vweird.f32 %v1982
        %vm1989 = vweird.f32 %v1983
        %vm1990 = vmor %vm1988, %vm1989
        %v1991 = vsel %vm1990, %v1983, %v1987
        %v1992 = vand.u32 2147483647, %v1982
        %vm1993 = vcmp.eq.f32.partialorder %v1992, 8.507059e+37
        %v1994 = vand.u32 %v1982, 2147483648
        %v1995 = vor.u32 1.1754944e-38, %v1994
        %v1996 = vsel %vm1993, %v1995, %v1991
        %v1997 = vmul.f32 %v1975, %v1996
        %v1998 = vpack.c.bf16 %v1997, %v1997
        %1999 = vxpose.xlu0.c.b16.start [1/8] %v1998, 128
        %2000 = vxpose.xlu0.c.b16.cont [2/8] 0, 128
        %2001 = vxpose.xlu0.c.b16.cont [3/8] 0, 128
        %2002 = vxpose.xlu0.c.b16.cont [4/8] 0, 128
        %2003 = vxpose.xlu0.c.b16.cont [5/8] 0, 128
        %2004 = vxpose.xlu0.c.b16.cont [6/8] 0, 128
        %2005 = vxpose.xlu0.c.b16.cont [7/8] 0, 128
        %2006 = vxpose.xlu0.c.b16.end [8/8] 0, 128
        %v2007 = vpop.trf.xlu0
        %v2008 = vpop.trf.xlu0
        %v2009 = vpop.trf.xlu0
        %v2010 = vpop.trf.xlu0
        %v2011 = vpop.trf.xlu0
        %v2012 = vpop.trf.xlu0
        %v2013 = vpop.trf.xlu0
        %v2014 = vpop.trf.xlu0
        %v2016 = vsel %vm670, %v2007, 0
        %v2018 = vsel %vm723, %v1871, 0
        %2020 = vmatpush.bf16.msra.mxu0 0
        %2021 = vmatpush.bf16.msra.mxu0 0
        %2022 = vmatpush.bf16.msra.mxu0 0
        %2023 = vmatpush.bf16.msra.mxu0 0
        %2024 = vmatpush.bf16.msra.mxu0 0
        %2025 = vmatpush.bf16.msra.mxu0 0
        %2026 = vmatpush.bf16.msra.mxu0 0
        %2027 = vmatpush.bf16.msra.mxu0 %v2018
        %2028 = vmatmul.bf16.gmra.mxu0 %v2016
        %v2029 = vpop.f32.mrf.mxu0
        %v2030 = vadd.f32 0.0, %v2029
        %v2031 = vpop.f32.mrf.mxu0
        %2032 = vdwg.mxu0
        %2033 = vst.msk [vmem:[#allocation2] sm:$0xff] %vm559, %v2030
        %2034 = vset.pattern.permute.xlu0 1
        %2035 = vperm.xlu0 %2034, %v1934
        %v2036 = vpop.permute.xlu0 %2035
        %v2038 = vperm.slane %v1952, 1
        %v2039 = vadd.f32 %v2036, %v2038
        %vm2040 = vcmp.ge.f32.partialorder %v2039, 0.0
        %v2041 = vmul.f32 %v2039, 0.2
        %v2042 = vsel %vm2040, %v2039, %v2041
        %v2043 = vsel %vm536, %v2042, -1e+30
        %v2044 = vsel %vm670, %v2043, -inf
        %v2045 = vrot.slane %v2044, 4
        %v2046 = vmax.f32 %v2044, %v2045
        %v2047 = vrot.slane %v2046, 2
        %v2048 = vmax.f32 %v2046, %v2047
        %v2049 = vrot.slane %v2048, 1
        %v2050 = vmax.f32 %v2048, %v2049
        %v2051 = vsub.f32 %v2043, %v2050
        %v2052 = vmul.f32 %v2051, 1.442695
        %v2053 = vpow.pop %v2052
        %v2054 = vsel %vm670, %v2053, 0.0
        %v2055 = vrot.slane %v2054, 4
        %v2056 = vadd.f32 %v2054, %v2055
        %v2057 = vrot.slane %v2056, 2
        %v2058 = vadd.f32 %v2056, %v2057
        %v2059 = vrot.slane %v2058, 1
        %v2060 = vadd.f32 %v2058, %v2059
        %v2061 = vrcp.pop %v2060
        %v2062 = vmul.f32 %v2060, %v2061
        %v2063 = vsub.f32 1.0, %v2062
        %v2064 = vmul.f32 %v2061, %v2063
        %v2065 = vadd.f32 %v2061, %v2064
        %vm2066 = vweird.f32 %v2060
        %vm2067 = vweird.f32 %v2061
        %vm2068 = vmor %vm2066, %vm2067
        %v2069 = vsel %vm2068, %v2061, %v2065
        %v2070 = vand.u32 2147483647, %v2060
        %vm2071 = vcmp.eq.f32.partialorder %v2070, 8.507059e+37
        %v2072 = vand.u32 %v2060, 2147483648
        %v2073 = vor.u32 1.1754944e-38, %v2072
        %v2074 = vsel %vm2071, %v2073, %v2069
        %v2075 = vmul.f32 %v2053, %v2074
        %v2076 = vpack.c.bf16 %v2075, %v2075
        %2077 = vxpose.xlu0.c.b16.start [1/8] %v2076, 128
        %2078 = vxpose.xlu0.c.b16.cont [2/8] 0, 128
        %2079 = vxpose.xlu0.c.b16.cont [3/8] 0, 128
        %2080 = vxpose.xlu0.c.b16.cont [4/8] 0, 128
        %2081 = vxpose.xlu0.c.b16.cont [5/8] 0, 128
        %2082 = vxpose.xlu0.c.b16.cont [6/8] 0, 128
        %2083 = vxpose.xlu0.c.b16.cont [7/8] 0, 128
        %2084 = vxpose.xlu0.c.b16.end [8/8] 0, 128
        %v2085 = vpop.trf.xlu0
        %v2086 = vpop.trf.xlu0
        %v2087 = vpop.trf.xlu0
        %v2088 = vpop.trf.xlu0
        %v2089 = vpop.trf.xlu0
        %v2090 = vpop.trf.xlu0
        %v2091 = vpop.trf.xlu0
        %v2092 = vpop.trf.xlu0
        %v2094 = vunpack.c.l.b16 %v1871
        %v2095 = vpack.c.b16 %v2094, %v2094
        %2096 = vrot.lane.b32.xlu0 %v2095, 96
        %v2097 = vpop.permute.xlu0 %2096
        %v2099 = vsel %vm670, %v2085, 0
        %v2102 = vsel %vm723, %v2097, 0
        %2104 = vmatpush.bf16.msra.mxu0 0
        %2105 = vmatpush.bf16.msra.mxu0 0
        %2106 = vmatpush.bf16.msra.mxu0 0
        %2107 = vmatpush.bf16.msra.mxu0 0
        %2108 = vmatpush.bf16.msra.mxu0 0
        %2109 = vmatpush.bf16.msra.mxu0 0
        %2110 = vmatpush.bf16.msra.mxu0 0
        %2111 = vmatpush.bf16.msra.mxu0 %v2102
        %2112 = vmatmul.bf16.gmra.mxu0 %v2099
        %v2113 = vpop.f32.mrf.mxu0
        %v2114 = vadd.f32 0.0, %v2113
        %v2115 = vpop.f32.mrf.mxu0
        %2116 = vdwg.mxu0
        %2118 = vrot.lane.b32.xlu0 %v2114, 32
        %v2119 = vpop.permute.xlu0 %2118
        %2121 = vst.msk [vmem:[#allocation2] sm:$0xff] %vm827, %v2119
        %2122 = vset.pattern.permute.xlu0 2
        %2123 = vperm.xlu0 %2122, %v1934
        %v2124 = vpop.permute.xlu0 %2123
        %v2126 = vperm.slane %v1952, 2
        %v2127 = vadd.f32 %v2124, %v2126
        %vm2128 = vcmp.ge.f32.partialorder %v2127, 0.0
        %v2129 = vmul.f32 %v2127, 0.2
        %v2130 = vsel %vm2128, %v2127, %v2129
        %v2131 = vsel %vm536, %v2130, -1e+30
        %v2132 = vsel %vm670, %v2131, -inf
        %v2133 = vrot.slane %v2132, 4
        %v2134 = vmax.f32 %v2132, %v2133
        %v2135 = vrot.slane %v2134, 2
        %v2136 = vmax.f32 %v2134, %v2135
        %v2137 = vrot.slane %v2136, 1
        %v2138 = vmax.f32 %v2136, %v2137
        %v2139 = vsub.f32 %v2131, %v2138
        %v2140 = vmul.f32 %v2139, 1.442695
        %v2141 = vpow.pop %v2140
        %v2142 = vsel %vm670, %v2141, 0.0
        %v2143 = vrot.slane %v2142, 4
        %v2144 = vadd.f32 %v2142, %v2143
        %v2145 = vrot.slane %v2144, 2
        %v2146 = vadd.f32 %v2144, %v2145
        %v2147 = vrot.slane %v2146, 1
        %v2148 = vadd.f32 %v2146, %v2147
        %v2149 = vrcp.pop %v2148
        %v2150 = vmul.f32 %v2148, %v2149
        %v2151 = vsub.f32 1.0, %v2150
        %v2152 = vmul.f32 %v2149, %v2151
        %v2153 = vadd.f32 %v2149, %v2152
        %vm2154 = vweird.f32 %v2148
        %vm2155 = vweird.f32 %v2149
        %vm2156 = vmor %vm2154, %vm2155
        %v2157 = vsel %vm2156, %v2149, %v2153
        %v2158 = vand.u32 2147483647, %v2148
        %vm2159 = vcmp.eq.f32.partialorder %v2158, 8.507059e+37
        %v2160 = vand.u32 %v2148, 2147483648
        %v2161 = vor.u32 1.1754944e-38, %v2160
        %v2162 = vsel %vm2159, %v2161, %v2157
        %v2163 = vmul.f32 %v2141, %v2162
        %v2164 = vpack.c.bf16 %v2163, %v2163
        %2165 = vxpose.xlu0.c.b16.start [1/8] %v2164, 128
        %2166 = vxpose.xlu0.c.b16.cont [2/8] 0, 128
        %2167 = vxpose.xlu0.c.b16.cont [3/8] 0, 128
        %2168 = vxpose.xlu0.c.b16.cont [4/8] 0, 128
        %2169 = vxpose.xlu0.c.b16.cont [5/8] 0, 128
        %2170 = vxpose.xlu0.c.b16.cont [6/8] 0, 128
        %2171 = vxpose.xlu0.c.b16.cont [7/8] 0, 128
        %2172 = vxpose.xlu0.c.b16.end [8/8] 0, 128
        %v2173 = vpop.trf.xlu0
        %v2174 = vpop.trf.xlu0
        %v2175 = vpop.trf.xlu0
        %v2176 = vpop.trf.xlu0
        %v2177 = vpop.trf.xlu0
        %v2178 = vpop.trf.xlu0
        %v2179 = vpop.trf.xlu0
        %v2180 = vpop.trf.xlu0
        %2181 = vrot.lane.b32.xlu0 %v2095, 64
        %v2182 = vpop.permute.xlu0 %2181
        %v2184 = vsel %vm670, %v2173, 0
        %v2187 = vsel %vm723, %v2182, 0
        %2189 = vmatpush.bf16.msra.mxu0 0
        %2190 = vmatpush.bf16.msra.mxu0 0
        %2191 = vmatpush.bf16.msra.mxu0 0
        %2192 = vmatpush.bf16.msra.mxu0 0
        %2193 = vmatpush.bf16.msra.mxu0 0
        %2194 = vmatpush.bf16.msra.mxu0 0
        %2195 = vmatpush.bf16.msra.mxu0 0
        %2196 = vmatpush.bf16.msra.mxu0 %v2187
        %2197 = vmatmul.bf16.gmra.mxu0 %v2184
        %v2198 = vpop.f32.mrf.mxu0
        %v2199 = vadd.f32 0.0, %v2198
        %v2200 = vpop.f32.mrf.mxu0
        %2201 = vdwg.mxu0
        %2203 = vrot.lane.b32.xlu0 %v2199, 64
        %v2204 = vpop.permute.xlu0 %2203
        %2206 = vst.msk [vmem:[#allocation2] sm:$0xff] %vm913, %v2204
        %v2207 = vld [vmem:[#allocation2] sm:$0xff]
        %v2208 = vpack.c.bf16 %v2207, %v2207
        %s2209 = scalar_lea.vmem %s6, 96
        %v2210 = vld [vmem:[%s2209] sm:$0xf]
        %v2211 = vld [vmem:[%s2209 + $0x4] sm:$0xf]
        %v2212 = vld [vmem:[%s2209 + $0x8] sm:$0xf]
        %v2213 = vld [vmem:[%s2209 + $0xc] sm:$0xf]
        %v2214 = vld [vmem:[%s2209 + $0x10] sm:$0xf]
        %v2215 = vld [vmem:[%s2209 + $0x14] sm:$0xf]
        %v2216 = vld [vmem:[%s2209 + $0x18] sm:$0xf]
        %v2217 = vld [vmem:[%s2209 + $0x1c] sm:$0xf]
        %v2218 = vld [vmem:[%s2209 + $0x20] sm:$0xf]
        %v2219 = vld [vmem:[%s2209 + $0x24] sm:$0xf]
        %v2220 = vld [vmem:[%s2209 + $0x28] sm:$0xf]
        %v2221 = vld [vmem:[%s2209 + $0x2c] sm:$0xf]
        %s2222 = scalar_lea.vmem %s7, 2
        %v2223 = vld [vmem:[%s2222] sm:$0x1]
        %v2225 = vperm.slane %v2223, 0
        %v2239 = vunpack.c.l.b16 %v2210
        %v2240 = vunpack.c.l.b16 %v2211
        %v2241 = vunpack.c.l.b16 %v2212
        %v2242 = vunpack.c.l.b16 %v2213
        %v2243 = vunpack.c.l.b16 %v2214
        %v2244 = vunpack.c.l.b16 %v2215
        %v2245 = vunpack.c.l.b16 %v2216
        %v2246 = vunpack.c.l.b16 %v2217
        %v2247 = vunpack.c.l.b16 %v2218
        %v2248 = vunpack.c.l.b16 %v2219
        %v2249 = vunpack.c.l.b16 %v2220
        %v2250 = vunpack.c.l.b16 %v2221
        %v2251 = vpack.c.b16 %v2240, %v2239
        %v2252 = vpack.c.b16 %v2242, %v2241
        %v2253 = vpack.c.b16 %v2244, %v2243
        %v2254 = vpack.c.b16 %v2246, %v2245
        %v2255 = vpack.c.b16 %v2248, %v2247
        %v2256 = vpack.c.b16 %v2250, %v2249
        %v2264 = vsel %vm625, %v2208, 0
        %2266 = vmatpush.bf16.msra.mxu0 0
        %2267 = vmatpush.bf16.msra.mxu0 0
        %2268 = vmatpush.bf16.msra.mxu0 %v2256
        %2269 = vmatpush.bf16.msra.mxu0 %v2255
        %2270 = vmatpush.bf16.msra.mxu0 %v2254
        %2271 = vmatpush.bf16.msra.mxu0 %v2253
        %2272 = vmatpush.bf16.msra.mxu0 %v2252
        %2273 = vmatpush.bf16.msra.mxu0 %v2251
        %2274 = vmatmul.bf16.gmra.mxu0 %v2264
        %v2275 = vpop.f32.mrf.mxu0
        %v2276 = vadd.f32 %v2225, %v2275
        %v2277 = vpop.f32.mrf.mxu0
        %2278 = vdwg.mxu0
        %v2279 = vadd.f32 %v2276, %v1836
        %v2280 = vpack.c.bf16 %v2279, %v2279
        %s2281 = scalar_lea.vmem %s8, 32
        %v2282 = vld [vmem:[%s2281] sm:$0xf]
        %v2283 = vld [vmem:[%s2281 + $0x4] sm:$0xf]
        %v2284 = vld [vmem:[%s2281 + $0x8] sm:$0xf]
        %v2285 = vld [vmem:[%s2281 + $0xc] sm:$0xf]
        %s2286 = scalar_lea.vmem %s9, 2
        %v2287 = vld [vmem:[%s2286] sm:$0x1]
        %v2289 = vperm.slane %v2287, 0
        %v2295 = vunpack.c.l.b16 %v2282
        %v2296 = vunpack.c.l.b16 %v2283
        %v2297 = vunpack.c.l.b16 %v2284
        %v2298 = vunpack.c.l.b16 %v2285
        %v2299 = vpack.c.b16 %v2296, %v2295
        %v2300 = vpack.c.b16 %v2298, %v2297
        %v2304 = vsel %vm559, %v2280, 0
        %2306 = vmatpush.bf16.msra.mxu0 0
        %2307 = vmatpush.bf16.msra.mxu0 0
        %2308 = vmatpush.bf16.msra.mxu0 0
        %2309 = vmatpush.bf16.msra.mxu0 0
        %2310 = vmatpush.bf16.msra.mxu0 0
        %2311 = vmatpush.bf16.msra.mxu0 0
        %2312 = vmatpush.bf16.msra.mxu0 %v2300
        %2313 = vmatpush.bf16.msra.mxu0 %v2299
        %2314 = vmatmul.bf16.gmra.mxu0 %v2304
        %v2315 = vpop.f32.mrf.mxu0
        %v2316 = vadd.f32 %v2289, %v2315
        %v2317 = vpop.f32.mrf.mxu0
        %2318 = vdwg.mxu0
        %v2319 = vmax.f32 %v2316, 0.0
        %s2320 = scalar_lea.vmem %s10, 2
        %v2321 = vld [vmem:[%s2320] sm:$0x1]
        %v2323 = vperm.slane %v2321, 0
        %v2325 = vmul.f32 %v2319, %v2323
        %v2326 = vsel %vm1030, %v2325, 0.0
        %2327 = vadd.xlane.f32.xlu0 %v2326
        %v2328 = vpop.xlane.xlu0 %2327
        %s2329 = scalar_lea.vmem %s11, 2
        %v2330 = vld [vmem:[%s2329] sm:$0x1]
        %v2332 = vperm.slane %v2330, 0
        %v2334 = vadd.f32 %v2328, %v2332
        %v2335 = vsel %vm1039, %v2334, -inf
        %v2336 = vrot.slane %v2335, 4
        %v2337 = vmax.f32 %v2335, %v2336
        %v2338 = vrot.slane %v2337, 2
        %v2339 = vmax.f32 %v2337, %v2338
        %v2340 = vrot.slane %v2339, 1
        %v2341 = vmax.f32 %v2339, %v2340
        %v2342 = vsub.f32 %v2334, %v2341
        %v2343 = vmul.f32 %v2342, 1.442695
        %v2344 = vpow.pop %v2343
        %v2345 = vsel %vm1039, %v2344, 0.0
        %v2346 = vrot.slane %v2345, 4
        %v2347 = vadd.f32 %v2345, %v2346
        %v2348 = vrot.slane %v2347, 2
        %v2349 = vadd.f32 %v2347, %v2348
        %v2350 = vrot.slane %v2349, 1
        %v2351 = vadd.f32 %v2349, %v2350
        %v2352 = vrcp.pop %v2351
        %v2353 = vmul.f32 %v2351, %v2352
        %v2354 = vsub.f32 1.0, %v2353
        %v2355 = vmul.f32 %v2352, %v2354
        %v2356 = vadd.f32 %v2352, %v2355
        %vm2357 = vweird.f32 %v2351
        %vm2358 = vweird.f32 %v2352
        %vm2359 = vmor %vm2357, %vm2358
        %v2360 = vsel %vm2359, %v2352, %v2356
        %v2361 = vand.u32 2147483647, %v2351
        %vm2362 = vcmp.eq.f32.partialorder %v2361, 8.507059e+37
        %v2363 = vand.u32 %v2351, 2147483648
        %v2364 = vor.u32 1.1754944e-38, %v2363
        %v2365 = vsel %vm2362, %v2364, %v2360
        %v2366 = vmul.f32 %v2344, %v2365
        %2368 = vset.pattern.permute.xlu0 0
        %2369 = vperm.xlu0 %2368, %v2366
        %v2370 = vpop.permute.xlu0 %2369
        %v2372 = vmul.f32 %v2370, %v2279
        %v2373 = vsel %vm559, %v2372, 0.0
        %v2374 = vrot.slane %v2373, 4
        %v2375 = vadd.f32 %v2373, %v2374
        %v2376 = vrot.slane %v2375, 2
        %v2377 = vadd.f32 %v2375, %v2376
        %v2378 = vrot.slane %v2377, 1
        %v2379 = vadd.f32 %v2377, %v2378
        %v2380 = vadd.f32 %v1731, %v2379
        %v2381 = vmul.f32 %v2380, 0.33333334
        %vm2382 = vcmask 253952
        %2383 = vst.msk [vmem:[%s524] sm:$0x1] %vm2382, %v2381
        %s2384 = sand.u32 %s384, 1
        %s2385 = scalar_lea.sflag [#allocation4], %s2384
        %s2386 = sand.u32 %s384, 1
        %s2387 = scalar_lea.vmem [#allocation3], %s2386
        // Predicated region
        $region85: #{mlap_forward_pallas.1} parent=83 // pred_check
          %p2388 = pneg %p394
        $region86: #{mlap_forward_pallas.1} parent=83 // pred_check_branch
          %2390 = sbr.rel (%p2388) target = $region88
        $region87: #{mlap_forward_pallas.1} parent=83 // pred_region
          %2392 = vsyncadd %s2385, 0
          %s2393 = scalar_lea.hbm %s16, %s30
          %s2395 = sshll.u32 %s2387, 4
          %s2396 = int_to_ptr.vmem [resolvable:$true] %s2395
          %s2397 = sshll.u32 %s2393, 4
          %s2398 = int_to_ptr.hbm [resolvable:$true] %s2397
          %2400 = dma.vmem_to_hbm [thread:$0]  %s2396, 16, %s2398, %s2385
        $region88: #{mlap_forward_pallas.1} parent=83 // pred_fallthru
          _
      $region84: #{mlap_forward_pallas.1} parent=5 // pred_fallthru
        _
      %p2401 = scmp.le.s32.totalorder 2, %s25
      // Predicated region
      $region89: #{mlap_forward_pallas.1} parent=5 // pred_check
        %p2402 = pneg %p2401
      $region90: #{mlap_forward_pallas.1} parent=5 // pred_check_branch
        %2404 = sbr.rel (%p2402) target = $region92
      $region91: #{mlap_forward_pallas.1} parent=5 // pred_region
        %s2405 = ssub.s32 %s25, 2
        // Predicated region
        $region93: #{mlap_forward_pallas.1} parent=91 // pred_check
          %p2406 = pneg %p400
        $region94: #{mlap_forward_pallas.1} parent=91 // pred_check_branch
          %2408 = sbr.rel (%p2406) target = $region96
        $region95: #{mlap_forward_pallas.1} parent=91 // pred_region
          %s2409 = sand.u32 %s385, 1
          %s2410 = scalar_lea.sflag [#allocation4], %s2409
          %s2411 = sand.u32 %s385, 1
          %s2412 = scalar_lea.vmem [#allocation3], %s2411
          %2414 = dma.done %s2410, 16
        $region96: #{mlap_forward_pallas.1} parent=91 // pred_fallthru
          _
      $region92: #{mlap_forward_pallas.1} parent=5 // pred_fallthru
        _
    $region6: #{mlap_forward_pallas.1} parent=1 // loop_footer
      %s29 = sadd.s32 1, %s25
    $region7: #{mlap_forward_pallas.1} parent=1 // loop_footer_branch
      %24 = sbr.rel target = $region3
    $region8: #{mlap_forward_pallas.1} parent=1 // loop_exit
      _
    %2415 = vsyncpa [#allocation4], 1
    %s2416 = scalar_lea.sflag [#allocation4], 1
    %2417 = vsyncpa %s2416, 1

</llo_original>
